<compile_context>
chip_gen: v7x
topology: tpu7x:2x2x1
jax: 0.10.0
libtpu: 0.0.40
codegen_flags: <defaults>
</compile_context>

<pallas_src>
import jax
import jax.numpy as jnp
from jax import lax
from jax.experimental import pallas as pl
from jax.experimental.pallas import tpu as pltpu


def _round_up(x, m):
    return ((x + m - 1) // m) * m


def _full_spec(shape):
    n = len(shape)
    return pl.BlockSpec(shape, lambda i, n=n: (0,) * n)


# ----------------------------------------------------------------------------- #
# Kernel
# ----------------------------------------------------------------------------- #
def _make_fused_lstm_kernel(T, Bp, B_real, Hp, num_layers):
    """Fused (LSTM stack + classifier head) kernel body.

    Bp    : padded batch (multiple of 16), B_real : true batch (for BN stats)
    Hp    : padded per-gate width (128); gates occupy lane blocks [g*Hp, g*Hp+Hp)
    """

    def kernel(*refs):
        n_lw = 3 * num_layers
        x_ref = refs[0]                                   # (T*Bp, Lp)  bf16, time-major
        layer_refs = refs[1:1 + n_lw]                     # (wih, whh, b) per layer
        (fc1_w_ref, fc1_b_ref, bn_g_ref, bn_b_ref,
         fc2_w_ref, fc2_b_ref) = refs[1 + n_lw:1 + n_lw + 6]
        o_ref = refs[1 + n_lw + 6]                        # (Bp, 128) f32
        gates_scr, hseq_scr = refs[1 + n_lw + 7:]         # VMEM scratch

        h_last = jnp.zeros((Bp, Hp), jnp.float32)

        for layer in range(num_layers):
            wih_ref = layer_refs[3 * layer + 0]           # (in_pad, 4*Hp) bf16
            whh_ref = layer_refs[3 * layer + 1]           # (Hp, 4*Hp)     bf16
            b_ref = layer_refs[3 * layer + 2]             # (1, 4*Hp)      f32 (b_ih+b_hh)

            # Hoisted input projection for ALL timesteps: one big bf16 matmul.
            inp = x_ref[...] if layer == 0 else hseq_scr[...]
            gates_scr[...] = (
                jnp.dot(inp, wih_ref[...], preferred_element_type=jnp.float32)
                + b_ref[...])

            whh = whh_ref[...]                            # resident for the layer
            write_seq = layer < num_layers - 1            # next layer needs h-sequence

            h = jnp.zeros((Bp, Hp), jnp.float32)
            c = jnp.zeros((Bp, Hp), jnp.float32)

            # Serial recurrence: only h @ W_hh stays inside the loop.  T is
            # small & static -> fully unrolled, all slices tile-aligned.
            for t in range(T):
                g = gates_scr[t * Bp:(t + 1) * Bp, :] + jnp.dot(
                    h.astype(jnp.bfloat16), whh,
                    preferred_element_type=jnp.float32)   # (Bp, 4*Hp)
                # 128-lane aligned gate slabs: no cross-lane relayouts.
                i_g = jax.nn.sigmoid(g[:, 0 * Hp:1 * Hp])
                f_g = jax.nn.sigmoid(g[:, 1 * Hp:2 * Hp])
                g_g = jnp.tanh(g[:, 2 * Hp:3 * Hp])
                o_g = jax.nn.sigmoid(g[:, 3 * Hp:4 * Hp])
                c = f_g * c + i_g * g_g
                h = o_g * jnp.tanh(c)
                if write_seq:
                    # Dense store: Bp is a multiple of 16 -> full packed bf16 tile.
                    hseq_scr[t * Bp:(t + 1) * Bp, :] = h.astype(jnp.bfloat16)

            h_last = h                                    # top-layer h_T

        # -------- classifier head (fused epilogue) -------- #
        # Linear
        y = (jnp.dot(h_last.astype(jnp.bfloat16), fc1_w_ref[...],
                     preferred_element_type=jnp.float32) + fc1_b_ref[...])

        # BatchNorm1d (train mode): biased batch statistics over the REAL batch
        # rows only (padding rows are masked out of the reduction).
        row = lax.broadcasted_iota(jnp.int32, (Bp, Hp), 0)
        rmask = row < B_real
        inv_b = 1.0 / float(B_real)
        mu = jnp.sum(jnp.where(rmask, y, 0.0), axis=0, keepdims=True) * inv_b
        diff = jnp.where(rmask, y - mu, 0.0)
        var = jnp.sum(diff * diff, axis=0, keepdims=True) * inv_b
        y = bn_g_ref[...] * (y - mu) * lax.rsqrt(var + 1e-5) + bn_b_ref[...]
        y = jnp.maximum(y, 0.0)                           # ReLU

        # Linear (class dim lane-padded to 128) + Softmax(dim=-1).
        # Padded class lanes carry a -1e30 bias -> exp underflows to exactly 0.
        logits = (jnp.dot(y.astype(jnp.bfloat16), fc2_w_ref[...],
                          preferred_element_type=jnp.float32) + fc2_b_ref[...])
        logits = logits - jnp.max(logits, axis=-1, keepdims=True)
        e = jnp.exp(logits)
        o_ref[...] = e / jnp.sum(e, axis=-1, keepdims=True)

    return kernel


# ----------------------------------------------------------------------------- #
# Wrapper
# ----------------------------------------------------------------------------- #
def build_forward(*, seq_len, batch, latent_dim, hidden_dim, num_layers,
                  num_classes, c_pad=128):
    T, B, L, H = seq_len, batch, latent_dim, hidden_dim
    Lp = _round_up(L, 128)            # lane-pad contraction dims (MXU-native)
    Hp = _round_up(H, 128)            # per-gate lane block
    Bp = _round_up(max(B, 16), 16)    # sublane-dense (incl. packed bf16 stores)

    kernel = _make_fused_lstm_kernel(T, Bp, B, Hp, num_layers)

    # Advisory cost estimate for XLA's scheduler.
    flops = 2 * T * Bp * Lp * 4 * Hp                          # layer-0 input proj
    flops += 2 * T * Bp * Hp * 4 * Hp * (num_layers - 1)      # deeper input projs
    flops += 2 * T * Bp * Hp * 4 * Hp * num_layers            # h @ W_hh recurrence
    flops += 2 * Bp * Hp * Hp + 2 * Bp * Hp * c_pad           # head
    transcendentals = 5 * T * num_layers * Bp * Hp + Bp * c_pad + Bp * Hp
    w_bytes = Lp * 4 * Hp * 2 + (num_layers - 1) * Hp * 4 * Hp * 2
    w_bytes += num_layers * (Hp * 4 * Hp * 2 + 4 * Hp * 4)
    w_bytes += Hp * Hp * 2 + 3 * Hp * 4 + Hp * c_pad * 2 + c_pad * 4
    bytes_accessed = T * Bp * Lp * 2 + w_bytes + Bp * c_pad * 4
    cost = pl.CostEstimate(flops=int(flops),
                           transcendentals=int(transcendentals),
                           bytes_accessed=int(bytes_accessed))

    def forward(x, params):
        # x: (B, T, L) batch-first, like the PyTorch module.
        # Time-major + batch/lane zero-pad so timestep t occupies rows
        # [t*Bp, (t+1)*Bp) and the lane dim is 128-wide.  (Tiny shapes; this
        # wrapper-side reshuffle is negligible here.)
        x_tm = jnp.transpose(x, (1, 0, 2))                       # (T, B, L)
        x_tm = jnp.pad(x_tm, ((0, 0), (0, Bp - B), (0, Lp - L)))
        x2d = x_tm.reshape(T * Bp, Lp).astype(jnp.bfloat16)

        args = [x2d]
        for l in range(num_layers):
            args += [params[f"wih{l}"], params[f"whh{l}"], params[f"b{l}"]]
        args += [params["fc1_w"], params["fc1_b"], params["bn_gamma"],
                 params["bn_beta"], params["fc2_w"], params["fc2_b"]]

        out = pl.pallas_call(
            kernel,
            out_shape=jax.ShapeDtypeStruct((Bp, c_pad), jnp.float32),
            grid=(1,),
            in_specs=[_full_spec(a.shape) for a in args],
            out_specs=pl.BlockSpec((Bp, c_pad), lambda i: (0, 0)),
            scratch_shapes=[
                pltpu.VMEM((T * Bp, 4 * Hp), jnp.float32),   # hoisted gate pre-acts
                pltpu.VMEM((T * Bp, Hp), jnp.bfloat16),      # per-layer h sequence
            ],
            compiler_params=pltpu.CompilerParams(
                dimension_semantics=("arbitrary",),
                vmem_limit_bytes=32 * 1024 * 1024),
            cost_estimate=cost,
        )(*args)
        return out[:B, :num_classes]

    return jax.jit(forward)


# ----------------------------------------------------------------------------- #
# Parameters (deterministic, PyTorch-style init; padded, tile-aligned layout)
# ----------------------------------------------------------------------------- #
def make_params(key, latent_dim, hidden_dim, num_layers, num_classes, c_pad=128):
    H = hidden_dim
    Hp = _round_up(H, 128)
    Lp = _round_up(latent_dim, 128)
    keys = jax.random.split(key, 4 * num_layers + 4)
    ki = iter(range(len(keys)))
    k = 1.0 / float(H) ** 0.5
    p = {}

    def scatter_gates(dense, in_dim, in_pad):
        """(in_dim, 4H) dense -> (in_pad, 4*Hp) padded, per-gate 128-lane blocks."""
        out = jnp.zeros((in_pad, 4 * Hp), jnp.float32)
        for g in range(4):
            out = out.at[:in_dim, g * Hp:g * Hp + H].set(
                dense[:, g * H:(g + 1) * H])
        return out

    for l in range(num_layers):
        in_dim = latent_dim if l == 0 else H
        in_pad = Lp if l == 0 else Hp
        wih = jax.random.uniform(keys[next(ki)], (in_dim, 4 * H), jnp.float32, -k, k)
        whh = jax.random.uniform(keys[next(ki)], (H, 4 * H), jnp.float32, -k, k)
        b_ih = jax.random.uniform(keys[next(ki)], (1, 4 * H), jnp.float32, -k, k)
        b_hh = jax.random.uniform(keys[next(ki)], (1, 4 * H), jnp.float32, -k, k)
        p[f"wih{l}"] = scatter_gates(wih, in_dim, in_pad).astype(jnp.bfloat16)
        p[f"whh{l}"] = scatter_gates(whh, H, Hp).astype(jnp.bfloat16)
        b = jnp.zeros((1, 4 * Hp), jnp.float32)
        bsum = b_ih + b_hh
        for g in range(4):
            b = b.at[:, g * Hp:g * Hp + H].set(bsum[:, g * H:(g + 1) * H])
        p[f"b{l}"] = b                              # combined bias, f32, zero pad

    fc1_w = jax.random.uniform(keys[next(ki)], (H, H), jnp.float32, -k, k)
    fc1_b = jax.random.uniform(keys[next(ki)], (1, H), jnp.float32, -k, k)
    p["fc1_w"] = jnp.zeros((Hp, Hp), jnp.float32).at[:H, :H].set(fc1_w).astype(jnp.bfloat16)
    p["fc1_b"] = jnp.zeros((1, Hp), jnp.float32).at[:, :H].set(fc1_b)
    p["bn_gamma"] = jnp.zeros((1, Hp), jnp.float32).at[:, :H].set(1.0)
    p["bn_beta"] = jnp.zeros((1, Hp), jnp.float32)

    fc2_w = jax.random.uniform(keys[next(ki)], (H, num_classes), jnp.float32, -k, k)
    fc2_b = jax.random.uniform(keys[next(ki)], (1, num_classes), jnp.float32, -k, k)
    p["fc2_w"] = jnp.zeros((Hp, c_pad), jnp.float32).at[:H, :num_classes].set(
        fc2_w).astype(jnp.bfloat16)
    # Padded class lanes get a huge negative bias -> exact softmax over real classes.
    p["fc2_b"] = jnp.full((1, c_pad), -1e30, jnp.float32).at[:, :num_classes].set(fc2_b)
    return p


# ----------------------------------------------------------------------------- #
# Main
# ----------------------------------------------------------------------------- #
if __name__ == "__main__":
    B, T = 2, 8
    LATENT_DIM = 64
    HIDDEN_DIM = 32
    NUM_LAYERS = 2
    NUM_CLASSES = 10

    key = jax.random.PRNGKey(0)
    kx, kp = jax.random.split(key)
    x = jax.random.normal(kx, (B, T, LATENT_DIM), jnp.float32)
    params = make_params(kp, LATENT_DIM, HIDDEN_DIM, NUM_LAYERS, NUM_CLASSES)

    forward = build_forward(seq_len=T, batch=B, latent_dim=LATENT_DIM,
                            hidden_dim=HIDDEN_DIM, num_layers=NUM_LAYERS,
                            num_classes=NUM_CLASSES)

    preds = jax.block_until_ready(forward(x, params))

    assert preds.shape == (B, NUM_CLASSES)
    assert bool(jnp.all(jnp.isfinite(preds)))
    # softmax rows must sum to 1
    assert bool(jnp.allclose(jnp.sum(preds, axis=-1), 1.0, atol=1e-4))
    print("KERNEL_OK")
</pallas_src>

<mosaic_0001>
module attributes {stable_mosaic.version = 11 : i64} {
  func.func @kernel(%arg0: i32, %arg1: memref<128x128xbf16, #tpu.memory_space<vmem>>, %arg2: memref<128x512xbf16, #tpu.memory_space<vmem>>, %arg3: memref<128x512xbf16, #tpu.memory_space<vmem>>, %arg4: memref<1x512xf32, #tpu.memory_space<vmem>>, %arg5: memref<128x512xbf16, #tpu.memory_space<vmem>>, %arg6: memref<128x512xbf16, #tpu.memory_space<vmem>>, %arg7: memref<1x512xf32, #tpu.memory_space<vmem>>, %arg8: memref<128x128xbf16, #tpu.memory_space<vmem>>, %arg9: memref<1x128xf32, #tpu.memory_space<vmem>>, %arg10: memref<1x128xf32, #tpu.memory_space<vmem>>, %arg11: memref<1x128xf32, #tpu.memory_space<vmem>>, %arg12: memref<128x128xbf16, #tpu.memory_space<vmem>>, %arg13: memref<1x128xf32, #tpu.memory_space<vmem>>, %arg14: memref<16x128xf32, #tpu.memory_space<vmem>>, %arg15: memref<128x512xf32, #tpu.memory_space<vmem>>, %arg16: memref<128x128xbf16, #tpu.memory_space<vmem>>) attributes {dimension_semantics = [#tpu.dimension_semantics<arbitrary>], iteration_bounds = array<i64: 1>, scalar_prefetch = 0 : i64, scratch_operands = 2 : i64, tpu.core_type = #tpu.core_type<tc>, window_params = [{pipeline_mode = #tpu.pipeline_mode<synchronous>, transform_indices = @transform_0, window_bounds = array<i64: 128, 128>}, {pipeline_mode = #tpu.pipeline_mode<synchronous>, transform_indices = @transform_1, window_bounds = array<i64: 128, 512>}, {pipeline_mode = #tpu.pipeline_mode<synchronous>, transform_indices = @transform_2, window_bounds = array<i64: 128, 512>}, {pipeline_mode = #tpu.pipeline_mode<synchronous>, transform_indices = @transform_3, window_bounds = array<i64: 1, 512>}, {pipeline_mode = #tpu.pipeline_mode<synchronous>, transform_indices = @transform_4, window_bounds = array<i64: 128, 512>}, {pipeline_mode = #tpu.pipeline_mode<synchronous>, transform_indices = @transform_5, window_bounds = array<i64: 128, 512>}, {pipeline_mode = #tpu.pipeline_mode<synchronous>, transform_indices = @transform_6, window_bounds = array<i64: 1, 512>}, {pipeline_mode = #tpu.pipeline_mode<synchronous>, transform_indices = @transform_7, window_bounds = array<i64: 128, 128>}, {pipeline_mode = #tpu.pipeline_mode<synchronous>, transform_indices = @transform_8, window_bounds = array<i64: 1, 128>}, {pipeline_mode = #tpu.pipeline_mode<synchronous>, transform_indices = @transform_9, window_bounds = array<i64: 1, 128>}, {pipeline_mode = #tpu.pipeline_mode<synchronous>, transform_indices = @transform_10, window_bounds = array<i64: 1, 128>}, {pipeline_mode = #tpu.pipeline_mode<synchronous>, transform_indices = @transform_11, window_bounds = array<i64: 128, 128>}, {pipeline_mode = #tpu.pipeline_mode<synchronous>, transform_indices = @transform_12, window_bounds = array<i64: 1, 128>}, {pipeline_mode = #tpu.pipeline_mode<synchronous>, transform_indices = @transform_13, window_bounds = array<i64: 16, 128>}]} {
    %c0 = arith.constant 0 : index
    %c0_0 = arith.constant 0 : index
    %0 = vector.load %arg1[%c0, %c0_0] : memref<128x128xbf16, #tpu.memory_space<vmem>>, vector<128x128xbf16>
    %c0_1 = arith.constant 0 : index
    %c0_2 = arith.constant 0 : index
    %1 = vector.load %arg2[%c0_1, %c0_2] : memref<128x512xbf16, #tpu.memory_space<vmem>>, vector<128x512xbf16>
    %cst = arith.constant dense<0.000000e+00> : vector<128x512xf32>
    %2 = tpu.matmul %0, %1, %cst {dimension_numbers = #tpu.dot_dimension_numbers<[1], [0], [0], [1], [0, 0, 1, 1], [], []>} : vector<128x128xbf16>, vector<128x512xbf16>, vector<128x512xf32> -> vector<128x512xf32>
    %c0_3 = arith.constant 0 : index
    %c0_4 = arith.constant 0 : index
    %3 = vector.load %arg4[%c0_3, %c0_4] : memref<1x512xf32, #tpu.memory_space<vmem>>, vector<1x512xf32>
    %4 = vector.broadcast %3 : vector<1x512xf32> to vector<128x512xf32>
    %5 = arith.addf %2, %4 : vector<128x512xf32>
    %c0_5 = arith.constant 0 : index
    %c0_6 = arith.constant 0 : index
    %6 = vector.load %arg15[%c0_5, %c0_6] : memref<128x512xf32, #tpu.memory_space<vmem>>, vector<128x512xf32>
    tpu.vector_store %arg15[%c0_5, %c0_6], %5 {strides = array<i32>} : memref<128x512xf32, #tpu.memory_space<vmem>>, vector<128x512xf32>,
    %c0_7 = arith.constant 0 : index
    %c0_8 = arith.constant 0 : index
    %7 = vector.load %arg3[%c0_7, %c0_8] : memref<128x512xbf16, #tpu.memory_space<vmem>>, vector<128x512xbf16>
    %cst_9 = arith.constant 0.000000e+00 : f32
    %8 = vector.broadcast %cst_9 : f32 to vector<16x128xf32>
    %cst_10 = arith.constant 0.000000e+00 : f32
    %9 = vector.broadcast %cst_10 : f32 to vector<16x128xf32>
    %c0_11 = arith.constant 0 : index
    %c0_12 = arith.constant 0 : index
    %10 = vector.load %arg15[%c0_11, %c0_12] : memref<128x512xf32, #tpu.memory_space<vmem>>, vector<16x512xf32>
    %11 = arith.truncf %8 : vector<16x128xf32> to vector<16x128xbf16>
    %cst_13 = arith.constant dense<0.000000e+00> : vector<16x512xf32>
    %12 = tpu.matmul %11, %7, %cst_13 {dimension_numbers = #tpu.dot_dimension_numbers<[1], [0], [0], [1], [0, 0, 1, 1], [], []>} : vector<16x128xbf16>, vector<128x512xbf16>, vector<16x512xf32> -> vector<16x512xf32>
    %13 = arith.addf %10, %12 : vector<16x512xf32>
    %14 = vector.extract_strided_slice %13 {offsets = [0, 0], sizes = [16, 128], strides = [1, 1]} : vector<16x512xf32> to vector<16x128xf32>
    %15 = arith.negf %14 : vector<16x128xf32>
    %16 = math.exp %15 : vector<16x128xf32>
    %cst_14 = arith.constant 1.000000e+00 : f32
    %17 = vector.broadcast %cst_14 : f32 to vector<16x128xf32>
    %18 = arith.addf %17, %16 : vector<16x128xf32>
    %19 = arith.divf %17, %18 : vector<16x128xf32>
    %20 = vector.extract_strided_slice %13 {offsets = [0, 128], sizes = [16, 128], strides = [1, 1]} : vector<16x512xf32> to vector<16x128xf32>
    %21 = arith.negf %20 : vector<16x128xf32>
    %22 = math.exp %21 : vector<16x128xf32>
    %cst_15 = arith.constant 1.000000e+00 : f32
    %23 = vector.broadcast %cst_15 : f32 to vector<16x128xf32>
    %24 = arith.addf %23, %22 : vector<16x128xf32>
    %25 = arith.divf %23, %24 : vector<16x128xf32>
    %26 = vector.extract_strided_slice %13 {offsets = [0, 256], sizes = [16, 128], strides = [1, 1]} : vector<16x512xf32> to vector<16x128xf32>
    %27 = math.tanh %26 : vector<16x128xf32>
    %28 = vector.extract_strided_slice %13 {offsets = [0, 384], sizes = [16, 128], strides = [1, 1]} : vector<16x512xf32> to vector<16x128xf32>
    %29 = arith.negf %28 : vector<16x128xf32>
    %30 = math.exp %29 : vector<16x128xf32>
    %cst_16 = arith.constant 1.000000e+00 : f32
    %31 = vector.broadcast %cst_16 : f32 to vector<16x128xf32>
    %32 = arith.addf %31, %30 : vector<16x128xf32>
    %33 = arith.divf %31, %32 : vector<16x128xf32>
    %34 = arith.mulf %25, %9 : vector<16x128xf32>
    %35 = arith.mulf %19, %27 : vector<16x128xf32>
    %36 = arith.addf %34, %35 : vector<16x128xf32>
    %37 = math.tanh %36 : vector<16x128xf32>
    %38 = arith.mulf %33, %37 : vector<16x128xf32>
    %39 = arith.truncf %38 : vector<16x128xf32> to vector<16x128xbf16>
    %c0_17 = arith.constant 0 : index
    %c0_18 = arith.constant 0 : index
    %40 = vector.load %arg16[%c0_17, %c0_18] : memref<128x128xbf16, #tpu.memory_space<vmem>>, vector<16x128xbf16>
    tpu.vector_store %arg16[%c0_17, %c0_18], %39 {strides = array<i32>} : memref<128x128xbf16, #tpu.memory_space<vmem>>, vector<16x128xbf16>,
    %c16 = arith.constant 16 : index
    %c0_19 = arith.constant 0 : index
    %41 = vector.load %arg15[%c16, %c0_19] : memref<128x512xf32, #tpu.memory_space<vmem>>, vector<16x512xf32>
    %42 = arith.truncf %38 : vector<16x128xf32> to vector<16x128xbf16>
    %cst_20 = arith.constant dense<0.000000e+00> : vector<16x512xf32>
    %43 = tpu.matmul %42, %7, %cst_20 {dimension_numbers = #tpu.dot_dimension_numbers<[1], [0], [0], [1], [0, 0, 1, 1], [], []>} : vector<16x128xbf16>, vector<128x512xbf16>, vector<16x512xf32> -> vector<16x512xf32>
    %44 = arith.addf %41, %43 : vector<16x512xf32>
    %45 = vector.extract_strided_slice %44 {offsets = [0, 0], sizes = [16, 128], strides = [1, 1]} : vector<16x512xf32> to vector<16x128xf32>
    %46 = arith.negf %45 : vector<16x128xf32>
    %47 = math.exp %46 : vector<16x128xf32>
    %cst_21 = arith.constant 1.000000e+00 : f32
    %48 = vector.broadcast %cst_21 : f32 to vector<16x128xf32>
    %49 = arith.addf %48, %47 : vector<16x128xf32>
    %50 = arith.divf %48, %49 : vector<16x128xf32>
    %51 = vector.extract_strided_slice %44 {offsets = [0, 128], sizes = [16, 128], strides = [1, 1]} : vector<16x512xf32> to vector<16x128xf32>
    %52 = arith.negf %51 : vector<16x128xf32>
    %53 = math.exp %52 : vector<16x128xf32>
    %cst_22 = arith.constant 1.000000e+00 : f32
    %54 = vector.broadcast %cst_22 : f32 to vector<16x128xf32>
    %55 = arith.addf %54, %53 : vector<16x128xf32>
    %56 = arith.divf %54, %55 : vector<16x128xf32>
    %57 = vector.extract_strided_slice %44 {offsets = [0, 256], sizes = [16, 128], strides = [1, 1]} : vector<16x512xf32> to vector<16x128xf32>
    %58 = math.tanh %57 : vector<16x128xf32>
    %59 = vector.extract_strided_slice %44 {offsets = [0, 384], sizes = [16, 128], strides = [1, 1]} : vector<16x512xf32> to vector<16x128xf32>
    %60 = arith.negf %59 : vector<16x128xf32>
    %61 = math.exp %60 : vector<16x128xf32>
    %cst_23 = arith.constant 1.000000e+00 : f32
    %62 = vector.broadcast %cst_23 : f32 to vector<16x128xf32>
    %63 = arith.addf %62, %61 : vector<16x128xf32>
    %64 = arith.divf %62, %63 : vector<16x128xf32>
    %65 = arith.mulf %56, %36 : vector<16x128xf32>
    %66 = arith.mulf %50, %58 : vector<16x128xf32>
    %67 = arith.addf %65, %66 : vector<16x128xf32>
    %68 = math.tanh %67 : vector<16x128xf32>
    %69 = arith.mulf %64, %68 : vector<16x128xf32>
    %70 = arith.truncf %69 : vector<16x128xf32> to vector<16x128xbf16>
    %c16_24 = arith.constant 16 : index
    %c0_25 = arith.constant 0 : index
    %71 = vector.load %arg16[%c16_24, %c0_25] : memref<128x128xbf16, #tpu.memory_space<vmem>>, vector<16x128xbf16>
    tpu.vector_store %arg16[%c16_24, %c0_25], %70 {strides = array<i32>} : memref<128x128xbf16, #tpu.memory_space<vmem>>, vector<16x128xbf16>,
    %c32 = arith.constant 32 : index
    %c0_26 = arith.constant 0 : index
    %72 = vector.load %arg15[%c32, %c0_26] : memref<128x512xf32, #tpu.memory_space<vmem>>, vector<16x512xf32>
    %73 = arith.truncf %69 : vector<16x128xf32> to vector<16x128xbf16>
    %cst_27 = arith.constant dense<0.000000e+00> : vector<16x512xf32>
    %74 = tpu.matmul %73, %7, %cst_27 {dimension_numbers = #tpu.dot_dimension_numbers<[1], [0], [0], [1], [0, 0, 1, 1], [], []>} : vector<16x128xbf16>, vector<128x512xbf16>, vector<16x512xf32> -> vector<16x512xf32>
    %75 = arith.addf %72, %74 : vector<16x512xf32>
    %76 = vector.extract_strided_slice %75 {offsets = [0, 0], sizes = [16, 128], strides = [1, 1]} : vector<16x512xf32> to vector<16x128xf32>
    %77 = arith.negf %76 : vector<16x128xf32>
    %78 = math.exp %77 : vector<16x128xf32>
    %cst_28 = arith.constant 1.000000e+00 : f32
    %79 = vector.broadcast %cst_28 : f32 to vector<16x128xf32>
    %80 = arith.addf %79, %78 : vector<16x128xf32>
    %81 = arith.divf %79, %80 : vector<16x128xf32>
    %82 = vector.extract_strided_slice %75 {offsets = [0, 128], sizes = [16, 128], strides = [1, 1]} : vector<16x512xf32> to vector<16x128xf32>
    %83 = arith.negf %82 : vector<16x128xf32>
    %84 = math.exp %83 : vector<16x128xf32>
    %cst_29 = arith.constant 1.000000e+00 : f32
    %85 = vector.broadcast %cst_29 : f32 to vector<16x128xf32>
    %86 = arith.addf %85, %84 : vector<16x128xf32>
    %87 = arith.divf %85, %86 : vector<16x128xf32>
    %88 = vector.extract_strided_slice %75 {offsets = [0, 256], sizes = [16, 128], strides = [1, 1]} : vector<16x512xf32> to vector<16x128xf32>
    %89 = math.tanh %88 : vector<16x128xf32>
    %90 = vector.extract_strided_slice %75 {offsets = [0, 384], sizes = [16, 128], strides = [1, 1]} : vector<16x512xf32> to vector<16x128xf32>
    %91 = arith.negf %90 : vector<16x128xf32>
    %92 = math.exp %91 : vector<16x128xf32>
    %cst_30 = arith.constant 1.000000e+00 : f32
    %93 = vector.broadcast %cst_30 : f32 to vector<16x128xf32>
    %94 = arith.addf %93, %92 : vector<16x128xf32>
    %95 = arith.divf %93, %94 : vector<16x128xf32>
    %96 = arith.mulf %87, %67 : vector<16x128xf32>
    %97 = arith.mulf %81, %89 : vector<16x128xf32>
    %98 = arith.addf %96, %97 : vector<16x128xf32>
    %99 = math.tanh %98 : vector<16x128xf32>
    %100 = arith.mulf %95, %99 : vector<16x128xf32>
    %101 = arith.truncf %100 : vector<16x128xf32> to vector<16x128xbf16>
    %c32_31 = arith.constant 32 : index
    %c0_32 = arith.constant 0 : index
    %102 = vector.load %arg16[%c32_31, %c0_32] : memref<128x128xbf16, #tpu.memory_space<vmem>>, vector<16x128xbf16>
    tpu.vector_store %arg16[%c32_31, %c0_32], %101 {strides = array<i32>} : memref<128x128xbf16, #tpu.memory_space<vmem>>, vector<16x128xbf16>,
    %c48 = arith.constant 48 : index
    %c0_33 = arith.constant 0 : index
    %103 = vector.load %arg15[%c48, %c0_33] : memref<128x512xf32, #tpu.memory_space<vmem>>, vector<16x512xf32>
    %104 = arith.truncf %100 : vector<16x128xf32> to vector<16x128xbf16>
    %cst_34 = arith.constant dense<0.000000e+00> : vector<16x512xf32>
    %105 = tpu.matmul %104, %7, %cst_34 {dimension_numbers = #tpu.dot_dimension_numbers<[1], [0], [0], [1], [0, 0, 1, 1], [], []>} : vector<16x128xbf16>, vector<128x512xbf16>, vector<16x512xf32> -> vector<16x512xf32>
    %106 = arith.addf %103, %105 : vector<16x512xf32>
    %107 = vector.extract_strided_slice %106 {offsets = [0, 0], sizes = [16, 128], strides = [1, 1]} : vector<16x512xf32> to vector<16x128xf32>
    %108 = arith.negf %107 : vector<16x128xf32>
    %109 = math.exp %108 : vector<16x128xf32>
    %cst_35 = arith.constant 1.000000e+00 : f32
    %110 = vector.broadcast %cst_35 : f32 to vector<16x128xf32>
    %111 = arith.addf %110, %109 : vector<16x128xf32>
    %112 = arith.divf %110, %111 : vector<16x128xf32>
    %113 = vector.extract_strided_slice %106 {offsets = [0, 128], sizes = [16, 128], strides = [1, 1]} : vector<16x512xf32> to vector<16x128xf32>
    %114 = arith.negf %113 : vector<16x128xf32>
    %115 = math.exp %114 : vector<16x128xf32>
    %cst_36 = arith.constant 1.000000e+00 : f32
    %116 = vector.broadcast %cst_36 : f32 to vector<16x128xf32>
    %117 = arith.addf %116, %115 : vector<16x128xf32>
    %118 = arith.divf %116, %117 : vector<16x128xf32>
    %119 = vector.extract_strided_slice %106 {offsets = [0, 256], sizes = [16, 128], strides = [1, 1]} : vector<16x512xf32> to vector<16x128xf32>
    %120 = math.tanh %119 : vector<16x128xf32>
    %121 = vector.extract_strided_slice %106 {offsets = [0, 384], sizes = [16, 128], strides = [1, 1]} : vector<16x512xf32> to vector<16x128xf32>
    %122 = arith.negf %121 : vector<16x128xf32>
    %123 = math.exp %122 : vector<16x128xf32>
    %cst_37 = arith.constant 1.000000e+00 : f32
    %124 = vector.broadcast %cst_37 : f32 to vector<16x128xf32>
    %125 = arith.addf %124, %123 : vector<16x128xf32>
    %126 = arith.divf %124, %125 : vector<16x128xf32>
    %127 = arith.mulf %118, %98 : vector<16x128xf32>
    %128 = arith.mulf %112, %120 : vector<16x128xf32>
    %129 = arith.addf %127, %128 : vector<16x128xf32>
    %130 = math.tanh %129 : vector<16x128xf32>
    %131 = arith.mulf %126, %130 : vector<16x128xf32>
    %132 = arith.truncf %131 : vector<16x128xf32> to vector<16x128xbf16>
    %c48_38 = arith.constant 48 : index
    %c0_39 = arith.constant 0 : index
    %133 = vector.load %arg16[%c48_38, %c0_39] : memref<128x128xbf16, #tpu.memory_space<vmem>>, vector<16x128xbf16>
    tpu.vector_store %arg16[%c48_38, %c0_39], %132 {strides = array<i32>} : memref<128x128xbf16, #tpu.memory_space<vmem>>, vector<16x128xbf16>,
    %c64 = arith.constant 64 : index
    %c0_40 = arith.constant 0 : index
    %134 = vector.load %arg15[%c64, %c0_40] : memref<128x512xf32, #tpu.memory_space<vmem>>, vector<16x512xf32>
    %135 = arith.truncf %131 : vector<16x128xf32> to vector<16x128xbf16>
    %cst_41 = arith.constant dense<0.000000e+00> : vector<16x512xf32>
    %136 = tpu.matmul %135, %7, %cst_41 {dimension_numbers = #tpu.dot_dimension_numbers<[1], [0], [0], [1], [0, 0, 1, 1], [], []>} : vector<16x128xbf16>, vector<128x512xbf16>, vector<16x512xf32> -> vector<16x512xf32>
    %137 = arith.addf %134, %136 : vector<16x512xf32>
    %138 = vector.extract_strided_slice %137 {offsets = [0, 0], sizes = [16, 128], strides = [1, 1]} : vector<16x512xf32> to vector<16x128xf32>
    %139 = arith.negf %138 : vector<16x128xf32>
    %140 = math.exp %139 : vector<16x128xf32>
    %cst_42 = arith.constant 1.000000e+00 : f32
    %141 = vector.broadcast %cst_42 : f32 to vector<16x128xf32>
    %142 = arith.addf %141, %140 : vector<16x128xf32>
    %143 = arith.divf %141, %142 : vector<16x128xf32>
    %144 = vector.extract_strided_slice %137 {offsets = [0, 128], sizes = [16, 128], strides = [1, 1]} : vector<16x512xf32> to vector<16x128xf32>
    %145 = arith.negf %144 : vector<16x128xf32>
    %146 = math.exp %145 : vector<16x128xf32>
    %cst_43 = arith.constant 1.000000e+00 : f32
    %147 = vector.broadcast %cst_43 : f32 to vector<16x128xf32>
    %148 = arith.addf %147, %146 : vector<16x128xf32>
    %149 = arith.divf %147, %148 : vector<16x128xf32>
    %150 = vector.extract_strided_slice %137 {offsets = [0, 256], sizes = [16, 128], strides = [1, 1]} : vector<16x512xf32> to vector<16x128xf32>
    %151 = math.tanh %150 : vector<16x128xf32>
    %152 = vector.extract_strided_slice %137 {offsets = [0, 384], sizes = [16, 128], strides = [1, 1]} : vector<16x512xf32> to vector<16x128xf32>
    %153 = arith.negf %152 : vector<16x128xf32>
    %154 = math.exp %153 : vector<16x128xf32>
    %cst_44 = arith.constant 1.000000e+00 : f32
    %155 = vector.broadcast %cst_44 : f32 to vector<16x128xf32>
    %156 = arith.addf %155, %154 : vector<16x128xf32>
    %157 = arith.divf %155, %156 : vector<16x128xf32>
    %158 = arith.mulf %149, %129 : vector<16x128xf32>
    %159 = arith.mulf %143, %151 : vector<16x128xf32>
    %160 = arith.addf %158, %159 : vector<16x128xf32>
    %161 = math.tanh %160 : vector<16x128xf32>
    %162 = arith.mulf %157, %161 : vector<16x128xf32>
    %163 = arith.truncf %162 : vector<16x128xf32> to vector<16x128xbf16>
    %c64_45 = arith.constant 64 : index
    %c0_46 = arith.constant 0 : index
    %164 = vector.load %arg16[%c64_45, %c0_46] : memref<128x128xbf16, #tpu.memory_space<vmem>>, vector<16x128xbf16>
    tpu.vector_store %arg16[%c64_45, %c0_46], %163 {strides = array<i32>} : memref<128x128xbf16, #tpu.memory_space<vmem>>, vector<16x128xbf16>,
    %c80 = arith.constant 80 : index
    %c0_47 = arith.constant 0 : index
    %165 = vector.load %arg15[%c80, %c0_47] : memref<128x512xf32, #tpu.memory_space<vmem>>, vector<16x512xf32>
    %166 = arith.truncf %162 : vector<16x128xf32> to vector<16x128xbf16>
    %cst_48 = arith.constant dense<0.000000e+00> : vector<16x512xf32>
    %167 = tpu.matmul %166, %7, %cst_48 {dimension_numbers = #tpu.dot_dimension_numbers<[1], [0], [0], [1], [0, 0, 1, 1], [], []>} : vector<16x128xbf16>, vector<128x512xbf16>, vector<16x512xf32> -> vector<16x512xf32>
    %168 = arith.addf %165, %167 : vector<16x512xf32>
    %169 = vector.extract_strided_slice %168 {offsets = [0, 0], sizes = [16, 128], strides = [1, 1]} : vector<16x512xf32> to vector<16x128xf32>
    %170 = arith.negf %169 : vector<16x128xf32>
    %171 = math.exp %170 : vector<16x128xf32>
    %cst_49 = arith.constant 1.000000e+00 : f32
    %172 = vector.broadcast %cst_49 : f32 to vector<16x128xf32>
    %173 = arith.addf %172, %171 : vector<16x128xf32>
    %174 = arith.divf %172, %173 : vector<16x128xf32>
    %175 = vector.extract_strided_slice %168 {offsets = [0, 128], sizes = [16, 128], strides = [1, 1]} : vector<16x512xf32> to vector<16x128xf32>
    %176 = arith.negf %175 : vector<16x128xf32>
    %177 = math.exp %176 : vector<16x128xf32>
    %cst_50 = arith.constant 1.000000e+00 : f32
    %178 = vector.broadcast %cst_50 : f32 to vector<16x128xf32>
    %179 = arith.addf %178, %177 : vector<16x128xf32>
    %180 = arith.divf %178, %179 : vector<16x128xf32>
    %181 = vector.extract_strided_slice %168 {offsets = [0, 256], sizes = [16, 128], strides = [1, 1]} : vector<16x512xf32> to vector<16x128xf32>
    %182 = math.tanh %181 : vector<16x128xf32>
    %183 = vector.extract_strided_slice %168 {offsets = [0, 384], sizes = [16, 128], strides = [1, 1]} : vector<16x512xf32> to vector<16x128xf32>
    %184 = arith.negf %183 : vector<16x128xf32>
    %185 = math.exp %184 : vector<16x128xf32>
    %cst_51 = arith.constant 1.000000e+00 : f32
    %186 = vector.broadcast %cst_51 : f32 to vector<16x128xf32>
    %187 = arith.addf %186, %185 : vector<16x128xf32>
    %188 = arith.divf %186, %187 : vector<16x128xf32>
    %189 = arith.mulf %180, %160 : vector<16x128xf32>
    %190 = arith.mulf %174, %182 : vector<16x128xf32>
    %191 = arith.addf %189, %190 : vector<16x128xf32>
    %192 = math.tanh %191 : vector<16x128xf32>
    %193 = arith.mulf %188, %192 : vector<16x128xf32>
    %194 = arith.truncf %193 : vector<16x128xf32> to vector<16x128xbf16>
    %c80_52 = arith.constant 80 : index
    %c0_53 = arith.constant 0 : index
    %195 = vector.load %arg16[%c80_52, %c0_53] : memref<128x128xbf16, #tpu.memory_space<vmem>>, vector<16x128xbf16>
    tpu.vector_store %arg16[%c80_52, %c0_53], %194 {strides = array<i32>} : memref<128x128xbf16, #tpu.memory_space<vmem>>, vector<16x128xbf16>,
    %c96 = arith.constant 96 : index
    %c0_54 = arith.constant 0 : index
    %196 = vector.load %arg15[%c96, %c0_54] : memref<128x512xf32, #tpu.memory_space<vmem>>, vector<16x512xf32>
    %197 = arith.truncf %193 : vector<16x128xf32> to vector<16x128xbf16>
    %cst_55 = arith.constant dense<0.000000e+00> : vector<16x512xf32>
    %198 = tpu.matmul %197, %7, %cst_55 {dimension_numbers = #tpu.dot_dimension_numbers<[1], [0], [0], [1], [0, 0, 1, 1], [], []>} : vector<16x128xbf16>, vector<128x512xbf16>, vector<16x512xf32> -> vector<16x512xf32>
    %199 = arith.addf %196, %198 : vector<16x512xf32>
    %200 = vector.extract_strided_slice %199 {offsets = [0, 0], sizes = [16, 128], strides = [1, 1]} : vector<16x512xf32> to vector<16x128xf32>
    %201 = arith.negf %200 : vector<16x128xf32>
    %202 = math.exp %201 : vector<16x128xf32>
    %cst_56 = arith.constant 1.000000e+00 : f32
    %203 = vector.broadcast %cst_56 : f32 to vector<16x128xf32>
    %204 = arith.addf %203, %202 : vector<16x128xf32>
    %205 = arith.divf %203, %204 : vector<16x128xf32>
    %206 = vector.extract_strided_slice %199 {offsets = [0, 128], sizes = [16, 128], strides = [1, 1]} : vector<16x512xf32> to vector<16x128xf32>
    %207 = arith.negf %206 : vector<16x128xf32>
    %208 = math.exp %207 : vector<16x128xf32>
    %cst_57 = arith.constant 1.000000e+00 : f32
    %209 = vector.broadcast %cst_57 : f32 to vector<16x128xf32>
    %210 = arith.addf %209, %208 : vector<16x128xf32>
    %211 = arith.divf %209, %210 : vector<16x128xf32>
    %212 = vector.extract_strided_slice %199 {offsets = [0, 256], sizes = [16, 128], strides = [1, 1]} : vector<16x512xf32> to vector<16x128xf32>
    %213 = math.tanh %212 : vector<16x128xf32>
    %214 = vector.extract_strided_slice %199 {offsets = [0, 384], sizes = [16, 128], strides = [1, 1]} : vector<16x512xf32> to vector<16x128xf32>
    %215 = arith.negf %214 : vector<16x128xf32>
    %216 = math.exp %215 : vector<16x128xf32>
    %cst_58 = arith.constant 1.000000e+00 : f32
    %217 = vector.broadcast %cst_58 : f32 to vector<16x128xf32>
    %218 = arith.addf %217, %216 : vector<16x128xf32>
    %219 = arith.divf %217, %218 : vector<16x128xf32>
    %220 = arith.mulf %211, %191 : vector<16x128xf32>
    %221 = arith.mulf %205, %213 : vector<16x128xf32>
    %222 = arith.addf %220, %221 : vector<16x128xf32>
    %223 = math.tanh %222 : vector<16x128xf32>
    %224 = arith.mulf %219, %223 : vector<16x128xf32>
    %225 = arith.truncf %224 : vector<16x128xf32> to vector<16x128xbf16>
    %c96_59 = arith.constant 96 : index
    %c0_60 = arith.constant 0 : index
    %226 = vector.load %arg16[%c96_59, %c0_60] : memref<128x128xbf16, #tpu.memory_space<vmem>>, vector<16x128xbf16>
    tpu.vector_store %arg16[%c96_59, %c0_60], %225 {strides = array<i32>} : memref<128x128xbf16, #tpu.memory_space<vmem>>, vector<16x128xbf16>,
    %c112 = arith.constant 112 : index
    %c0_61 = arith.constant 0 : index
    %227 = vector.load %arg15[%c112, %c0_61] : memref<128x512xf32, #tpu.memory_space<vmem>>, vector<16x512xf32>
    %228 = arith.truncf %224 : vector<16x128xf32> to vector<16x128xbf16>
    %cst_62 = arith.constant dense<0.000000e+00> : vector<16x512xf32>
    %229 = tpu.matmul %228, %7, %cst_62 {dimension_numbers = #tpu.dot_dimension_numbers<[1], [0], [0], [1], [0, 0, 1, 1], [], []>} : vector<16x128xbf16>, vector<128x512xbf16>, vector<16x512xf32> -> vector<16x512xf32>
    %230 = arith.addf %227, %229 : vector<16x512xf32>
    %231 = vector.extract_strided_slice %230 {offsets = [0, 0], sizes = [16, 128], strides = [1, 1]} : vector<16x512xf32> to vector<16x128xf32>
    %232 = arith.negf %231 : vector<16x128xf32>
    %233 = math.exp %232 : vector<16x128xf32>
    %cst_63 = arith.constant 1.000000e+00 : f32
    %234 = vector.broadcast %cst_63 : f32 to vector<16x128xf32>
    %235 = arith.addf %234, %233 : vector<16x128xf32>
    %236 = arith.divf %234, %235 : vector<16x128xf32>
    %237 = vector.extract_strided_slice %230 {offsets = [0, 128], sizes = [16, 128], strides = [1, 1]} : vector<16x512xf32> to vector<16x128xf32>
    %238 = arith.negf %237 : vector<16x128xf32>
    %239 = math.exp %238 : vector<16x128xf32>
    %cst_64 = arith.constant 1.000000e+00 : f32
    %240 = vector.broadcast %cst_64 : f32 to vector<16x128xf32>
    %241 = arith.addf %240, %239 : vector<16x128xf32>
    %242 = arith.divf %240, %241 : vector<16x128xf32>
    %243 = vector.extract_strided_slice %230 {offsets = [0, 256], sizes = [16, 128], strides = [1, 1]} : vector<16x512xf32> to vector<16x128xf32>
    %244 = math.tanh %243 : vector<16x128xf32>
    %245 = vector.extract_strided_slice %230 {offsets = [0, 384], sizes = [16, 128], strides = [1, 1]} : vector<16x512xf32> to vector<16x128xf32>
    %246 = arith.negf %245 : vector<16x128xf32>
    %247 = math.exp %246 : vector<16x128xf32>
    %cst_65 = arith.constant 1.000000e+00 : f32
    %248 = vector.broadcast %cst_65 : f32 to vector<16x128xf32>
    %249 = arith.addf %248, %247 : vector<16x128xf32>
    %250 = arith.divf %248, %249 : vector<16x128xf32>
    %251 = arith.mulf %242, %222 : vector<16x128xf32>
    %252 = arith.mulf %236, %244 : vector<16x128xf32>
    %253 = arith.addf %251, %252 : vector<16x128xf32>
    %254 = math.tanh %253 : vector<16x128xf32>
    %255 = arith.mulf %250, %254 : vector<16x128xf32>
    %256 = arith.truncf %255 : vector<16x128xf32> to vector<16x128xbf16>
    %c112_66 = arith.constant 112 : index
    %c0_67 = arith.constant 0 : index
    %257 = vector.load %arg16[%c112_66, %c0_67] : memref<128x128xbf16, #tpu.memory_space<vmem>>, vector<16x128xbf16>
    tpu.vector_store %arg16[%c112_66, %c0_67], %256 {strides = array<i32>} : memref<128x128xbf16, #tpu.memory_space<vmem>>, vector<16x128xbf16>,
    %c0_68 = arith.constant 0 : index
    %c0_69 = arith.constant 0 : index
    %258 = vector.load %arg16[%c0_68, %c0_69] : memref<128x128xbf16, #tpu.memory_space<vmem>>, vector<128x128xbf16>
    %c0_70 = arith.constant 0 : index
    %c0_71 = arith.constant 0 : index
    %259 = vector.load %arg5[%c0_70, %c0_71] : memref<128x512xbf16, #tpu.memory_space<vmem>>, vector<128x512xbf16>
    %cst_72 = arith.constant dense<0.000000e+00> : vector<128x512xf32>
    %260 = tpu.matmul %258, %259, %cst_72 {dimension_numbers = #tpu.dot_dimension_numbers<[1], [0], [0], [1], [0, 0, 1, 1], [], []>} : vector<128x128xbf16>, vector<128x512xbf16>, vector<128x512xf32> -> vector<128x512xf32>
    %c0_73 = arith.constant 0 : index
    %c0_74 = arith.constant 0 : index
    %261 = vector.load %arg7[%c0_73, %c0_74] : memref<1x512xf32, #tpu.memory_space<vmem>>, vector<1x512xf32>
    %262 = vector.broadcast %261 : vector<1x512xf32> to vector<128x512xf32>
    %263 = arith.addf %260, %262 : vector<128x512xf32>
    %c0_75 = arith.constant 0 : index
    %c0_76 = arith.constant 0 : index
    %264 = vector.load %arg15[%c0_75, %c0_76] : memref<128x512xf32, #tpu.memory_space<vmem>>, vector<128x512xf32>
    tpu.vector_store %arg15[%c0_75, %c0_76], %263 {strides = array<i32>} : memref<128x512xf32, #tpu.memory_space<vmem>>, vector<128x512xf32>,
    %c0_77 = arith.constant 0 : index
    %c0_78 = arith.constant 0 : index
    %265 = vector.load %arg6[%c0_77, %c0_78] : memref<128x512xbf16, #tpu.memory_space<vmem>>, vector<128x512xbf16>
    %cst_79 = arith.constant 0.000000e+00 : f32
    %266 = vector.broadcast %cst_79 : f32 to vector<16x128xf32>
    %cst_80 = arith.constant 0.000000e+00 : f32
    %267 = vector.broadcast %cst_80 : f32 to vector<16x128xf32>
    %c0_81 = arith.constant 0 : index
    %c0_82 = arith.constant 0 : index
    %268 = vector.load %arg15[%c0_81, %c0_82] : memref<128x512xf32, #tpu.memory_space<vmem>>, vector<16x512xf32>
    %269 = arith.truncf %266 : vector<16x128xf32> to vector<16x128xbf16>
    %cst_83 = arith.constant dense<0.000000e+00> : vector<16x512xf32>
    %270 = tpu.matmul %269, %265, %cst_83 {dimension_numbers = #tpu.dot_dimension_numbers<[1], [0], [0], [1], [0, 0, 1, 1], [], []>} : vector<16x128xbf16>, vector<128x512xbf16>, vector<16x512xf32> -> vector<16x512xf32>
    %271 = arith.addf %268, %270 : vector<16x512xf32>
    %272 = vector.extract_strided_slice %271 {offsets = [0, 0], sizes = [16, 128], strides = [1, 1]} : vector<16x512xf32> to vector<16x128xf32>
    %273 = arith.negf %272 : vector<16x128xf32>
    %274 = math.exp %273 : vector<16x128xf32>
    %cst_84 = arith.constant 1.000000e+00 : f32
    %275 = vector.broadcast %cst_84 : f32 to vector<16x128xf32>
    %276 = arith.addf %275, %274 : vector<16x128xf32>
    %277 = arith.divf %275, %276 : vector<16x128xf32>
    %278 = vector.extract_strided_slice %271 {offsets = [0, 128], sizes = [16, 128], strides = [1, 1]} : vector<16x512xf32> to vector<16x128xf32>
    %279 = arith.negf %278 : vector<16x128xf32>
    %280 = math.exp %279 : vector<16x128xf32>
    %cst_85 = arith.constant 1.000000e+00 : f32
    %281 = vector.broadcast %cst_85 : f32 to vector<16x128xf32>
    %282 = arith.addf %281, %280 : vector<16x128xf32>
    %283 = arith.divf %281, %282 : vector<16x128xf32>
    %284 = vector.extract_strided_slice %271 {offsets = [0, 256], sizes = [16, 128], strides = [1, 1]} : vector<16x512xf32> to vector<16x128xf32>
    %285 = math.tanh %284 : vector<16x128xf32>
    %286 = vector.extract_strided_slice %271 {offsets = [0, 384], sizes = [16, 128], strides = [1, 1]} : vector<16x512xf32> to vector<16x128xf32>
    %287 = arith.negf %286 : vector<16x128xf32>
    %288 = math.exp %287 : vector<16x128xf32>
    %cst_86 = arith.constant 1.000000e+00 : f32
    %289 = vector.broadcast %cst_86 : f32 to vector<16x128xf32>
    %290 = arith.addf %289, %288 : vector<16x128xf32>
    %291 = arith.divf %289, %290 : vector<16x128xf32>
    %292 = arith.mulf %283, %267 : vector<16x128xf32>
    %293 = arith.mulf %277, %285 : vector<16x128xf32>
    %294 = arith.addf %292, %293 : vector<16x128xf32>
    %295 = math.tanh %294 : vector<16x128xf32>
    %296 = arith.mulf %291, %295 : vector<16x128xf32>
    %c16_87 = arith.constant 16 : index
    %c0_88 = arith.constant 0 : index
    %297 = vector.load %arg15[%c16_87, %c0_88] : memref<128x512xf32, #tpu.memory_space<vmem>>, vector<16x512xf32>
    %298 = arith.truncf %296 : vector<16x128xf32> to vector<16x128xbf16>
    %cst_89 = arith.constant dense<0.000000e+00> : vector<16x512xf32>
    %299 = tpu.matmul %298, %265, %cst_89 {dimension_numbers = #tpu.dot_dimension_numbers<[1], [0], [0], [1], [0, 0, 1, 1], [], []>} : vector<16x128xbf16>, vector<128x512xbf16>, vector<16x512xf32> -> vector<16x512xf32>
    %300 = arith.addf %297, %299 : vector<16x512xf32>
    %301 = vector.extract_strided_slice %300 {offsets = [0, 0], sizes = [16, 128], strides = [1, 1]} : vector<16x512xf32> to vector<16x128xf32>
    %302 = arith.negf %301 : vector<16x128xf32>
    %303 = math.exp %302 : vector<16x128xf32>
    %cst_90 = arith.constant 1.000000e+00 : f32
    %304 = vector.broadcast %cst_90 : f32 to vector<16x128xf32>
    %305 = arith.addf %304, %303 : vector<16x128xf32>
    %306 = arith.divf %304, %305 : vector<16x128xf32>
    %307 = vector.extract_strided_slice %300 {offsets = [0, 128], sizes = [16, 128], strides = [1, 1]} : vector<16x512xf32> to vector<16x128xf32>
    %308 = arith.negf %307 : vector<16x128xf32>
    %309 = math.exp %308 : vector<16x128xf32>
    %cst_91 = arith.constant 1.000000e+00 : f32
    %310 = vector.broadcast %cst_91 : f32 to vector<16x128xf32>
    %311 = arith.addf %310, %309 : vector<16x128xf32>
    %312 = arith.divf %310, %311 : vector<16x128xf32>
    %313 = vector.extract_strided_slice %300 {offsets = [0, 256], sizes = [16, 128], strides = [1, 1]} : vector<16x512xf32> to vector<16x128xf32>
    %314 = math.tanh %313 : vector<16x128xf32>
    %315 = vector.extract_strided_slice %300 {offsets = [0, 384], sizes = [16, 128], strides = [1, 1]} : vector<16x512xf32> to vector<16x128xf32>
    %316 = arith.negf %315 : vector<16x128xf32>
    %317 = math.exp %316 : vector<16x128xf32>
    %cst_92 = arith.constant 1.000000e+00 : f32
    %318 = vector.broadcast %cst_92 : f32 to vector<16x128xf32>
    %319 = arith.addf %318, %317 : vector<16x128xf32>
    %320 = arith.divf %318, %319 : vector<16x128xf32>
    %321 = arith.mulf %312, %294 : vector<16x128xf32>
    %322 = arith.mulf %306, %314 : vector<16x128xf32>
    %323 = arith.addf %321, %322 : vector<16x128xf32>
    %324 = math.tanh %323 : vector<16x128xf32>
    %325 = arith.mulf %320, %324 : vector<16x128xf32>
    %c32_93 = arith.constant 32 : index
    %c0_94 = arith.constant 0 : index
    %326 = vector.load %arg15[%c32_93, %c0_94] : memref<128x512xf32, #tpu.memory_space<vmem>>, vector<16x512xf32>
    %327 = arith.truncf %325 : vector<16x128xf32> to vector<16x128xbf16>
    %cst_95 = arith.constant dense<0.000000e+00> : vector<16x512xf32>
    %328 = tpu.matmul %327, %265, %cst_95 {dimension_numbers = #tpu.dot_dimension_numbers<[1], [0], [0], [1], [0, 0, 1, 1], [], []>} : vector<16x128xbf16>, vector<128x512xbf16>, vector<16x512xf32> -> vector<16x512xf32>
    %329 = arith.addf %326, %328 : vector<16x512xf32>
    %330 = vector.extract_strided_slice %329 {offsets = [0, 0], sizes = [16, 128], strides = [1, 1]} : vector<16x512xf32> to vector<16x128xf32>
    %331 = arith.negf %330 : vector<16x128xf32>
    %332 = math.exp %331 : vector<16x128xf32>
    %cst_96 = arith.constant 1.000000e+00 : f32
    %333 = vector.broadcast %cst_96 : f32 to vector<16x128xf32>
    %334 = arith.addf %333, %332 : vector<16x128xf32>
    %335 = arith.divf %333, %334 : vector<16x128xf32>
    %336 = vector.extract_strided_slice %329 {offsets = [0, 128], sizes = [16, 128], strides = [1, 1]} : vector<16x512xf32> to vector<16x128xf32>
    %337 = arith.negf %336 : vector<16x128xf32>
    %338 = math.exp %337 : vector<16x128xf32>
    %cst_97 = arith.constant 1.000000e+00 : f32
    %339 = vector.broadcast %cst_97 : f32 to vector<16x128xf32>
    %340 = arith.addf %339, %338 : vector<16x128xf32>
    %341 = arith.divf %339, %340 : vector<16x128xf32>
    %342 = vector.extract_strided_slice %329 {offsets = [0, 256], sizes = [16, 128], strides = [1, 1]} : vector<16x512xf32> to vector<16x128xf32>
    %343 = math.tanh %342 : vector<16x128xf32>
    %344 = vector.extract_strided_slice %329 {offsets = [0, 384], sizes = [16, 128], strides = [1, 1]} : vector<16x512xf32> to vector<16x128xf32>
    %345 = arith.negf %344 : vector<16x128xf32>
    %346 = math.exp %345 : vector<16x128xf32>
    %cst_98 = arith.constant 1.000000e+00 : f32
    %347 = vector.broadcast %cst_98 : f32 to vector<16x128xf32>
    %348 = arith.addf %347, %346 : vector<16x128xf32>
    %349 = arith.divf %347, %348 : vector<16x128xf32>
    %350 = arith.mulf %341, %323 : vector<16x128xf32>
    %351 = arith.mulf %335, %343 : vector<16x128xf32>
    %352 = arith.addf %350, %351 : vector<16x128xf32>
    %353 = math.tanh %352 : vector<16x128xf32>
    %354 = arith.mulf %349, %353 : vector<16x128xf32>
    %c48_99 = arith.constant 48 : index
    %c0_100 = arith.constant 0 : index
    %355 = vector.load %arg15[%c48_99, %c0_100] : memref<128x512xf32, #tpu.memory_space<vmem>>, vector<16x512xf32>
    %356 = arith.truncf %354 : vector<16x128xf32> to vector<16x128xbf16>
    %cst_101 = arith.constant dense<0.000000e+00> : vector<16x512xf32>
    %357 = tpu.matmul %356, %265, %cst_101 {dimension_numbers = #tpu.dot_dimension_numbers<[1], [0], [0], [1], [0, 0, 1, 1], [], []>} : vector<16x128xbf16>, vector<128x512xbf16>, vector<16x512xf32> -> vector<16x512xf32>
    %358 = arith.addf %355, %357 : vector<16x512xf32>
    %359 = vector.extract_strided_slice %358 {offsets = [0, 0], sizes = [16, 128], strides = [1, 1]} : vector<16x512xf32> to vector<16x128xf32>
    %360 = arith.negf %359 : vector<16x128xf32>
    %361 = math.exp %360 : vector<16x128xf32>
    %cst_102 = arith.constant 1.000000e+00 : f32
    %362 = vector.broadcast %cst_102 : f32 to vector<16x128xf32>
    %363 = arith.addf %362, %361 : vector<16x128xf32>
    %364 = arith.divf %362, %363 : vector<16x128xf32>
    %365 = vector.extract_strided_slice %358 {offsets = [0, 128], sizes = [16, 128], strides = [1, 1]} : vector<16x512xf32> to vector<16x128xf32>
    %366 = arith.negf %365 : vector<16x128xf32>
    %367 = math.exp %366 : vector<16x128xf32>
    %cst_103 = arith.constant 1.000000e+00 : f32
    %368 = vector.broadcast %cst_103 : f32 to vector<16x128xf32>
    %369 = arith.addf %368, %367 : vector<16x128xf32>
    %370 = arith.divf %368, %369 : vector<16x128xf32>
    %371 = vector.extract_strided_slice %358 {offsets = [0, 256], sizes = [16, 128], strides = [1, 1]} : vector<16x512xf32> to vector<16x128xf32>
    %372 = math.tanh %371 : vector<16x128xf32>
    %373 = vector.extract_strided_slice %358 {offsets = [0, 384], sizes = [16, 128], strides = [1, 1]} : vector<16x512xf32> to vector<16x128xf32>
    %374 = arith.negf %373 : vector<16x128xf32>
    %375 = math.exp %374 : vector<16x128xf32>
    %cst_104 = arith.constant 1.000000e+00 : f32
    %376 = vector.broadcast %cst_104 : f32 to vector<16x128xf32>
    %377 = arith.addf %376, %375 : vector<16x128xf32>
    %378 = arith.divf %376, %377 : vector<16x128xf32>
    %379 = arith.mulf %370, %352 : vector<16x128xf32>
    %380 = arith.mulf %364, %372 : vector<16x128xf32>
    %381 = arith.addf %379, %380 : vector<16x128xf32>
    %382 = math.tanh %381 : vector<16x128xf32>
    %383 = arith.mulf %378, %382 : vector<16x128xf32>
    %c64_105 = arith.constant 64 : index
    %c0_106 = arith.constant 0 : index
    %384 = vector.load %arg15[%c64_105, %c0_106] : memref<128x512xf32, #tpu.memory_space<vmem>>, vector<16x512xf32>
    %385 = arith.truncf %383 : vector<16x128xf32> to vector<16x128xbf16>
    %cst_107 = arith.constant dense<0.000000e+00> : vector<16x512xf32>
    %386 = tpu.matmul %385, %265, %cst_107 {dimension_numbers = #tpu.dot_dimension_numbers<[1], [0], [0], [1], [0, 0, 1, 1], [], []>} : vector<16x128xbf16>, vector<128x512xbf16>, vector<16x512xf32> -> vector<16x512xf32>
    %387 = arith.addf %384, %386 : vector<16x512xf32>
    %388 = vector.extract_strided_slice %387 {offsets = [0, 0], sizes = [16, 128], strides = [1, 1]} : vector<16x512xf32> to vector<16x128xf32>
    %389 = arith.negf %388 : vector<16x128xf32>
    %390 = math.exp %389 : vector<16x128xf32>
    %cst_108 = arith.constant 1.000000e+00 : f32
    %391 = vector.broadcast %cst_108 : f32 to vector<16x128xf32>
    %392 = arith.addf %391, %390 : vector<16x128xf32>
    %393 = arith.divf %391, %392 : vector<16x128xf32>
    %394 = vector.extract_strided_slice %387 {offsets = [0, 128], sizes = [16, 128], strides = [1, 1]} : vector<16x512xf32> to vector<16x128xf32>
    %395 = arith.negf %394 : vector<16x128xf32>
    %396 = math.exp %395 : vector<16x128xf32>
    %cst_109 = arith.constant 1.000000e+00 : f32
    %397 = vector.broadcast %cst_109 : f32 to vector<16x128xf32>
    %398 = arith.addf %397, %396 : vector<16x128xf32>
    %399 = arith.divf %397, %398 : vector<16x128xf32>
    %400 = vector.extract_strided_slice %387 {offsets = [0, 256], sizes = [16, 128], strides = [1, 1]} : vector<16x512xf32> to vector<16x128xf32>
    %401 = math.tanh %400 : vector<16x128xf32>
    %402 = vector.extract_strided_slice %387 {offsets = [0, 384], sizes = [16, 128], strides = [1, 1]} : vector<16x512xf32> to vector<16x128xf32>
    %403 = arith.negf %402 : vector<16x128xf32>
    %404 = math.exp %403 : vector<16x128xf32>
    %cst_110 = arith.constant 1.000000e+00 : f32
    %405 = vector.broadcast %cst_110 : f32 to vector<16x128xf32>
    %406 = arith.addf %405, %404 : vector<16x128xf32>
    %407 = arith.divf %405, %406 : vector<16x128xf32>
    %408 = arith.mulf %399, %381 : vector<16x128xf32>
    %409 = arith.mulf %393, %401 : vector<16x128xf32>
    %410 = arith.addf %408, %409 : vector<16x128xf32>
    %411 = math.tanh %410 : vector<16x128xf32>
    %412 = arith.mulf %407, %411 : vector<16x128xf32>
    %c80_111 = arith.constant 80 : index
    %c0_112 = arith.constant 0 : index
    %413 = vector.load %arg15[%c80_111, %c0_112] : memref<128x512xf32, #tpu.memory_space<vmem>>, vector<16x512xf32>
    %414 = arith.truncf %412 : vector<16x128xf32> to vector<16x128xbf16>
    %cst_113 = arith.constant dense<0.000000e+00> : vector<16x512xf32>
    %415 = tpu.matmul %414, %265, %cst_113 {dimension_numbers = #tpu.dot_dimension_numbers<[1], [0], [0], [1], [0, 0, 1, 1], [], []>} : vector<16x128xbf16>, vector<128x512xbf16>, vector<16x512xf32> -> vector<16x512xf32>
    %416 = arith.addf %413, %415 : vector<16x512xf32>
    %417 = vector.extract_strided_slice %416 {offsets = [0, 0], sizes = [16, 128], strides = [1, 1]} : vector<16x512xf32> to vector<16x128xf32>
    %418 = arith.negf %417 : vector<16x128xf32>
    %419 = math.exp %418 : vector<16x128xf32>
    %cst_114 = arith.constant 1.000000e+00 : f32
    %420 = vector.broadcast %cst_114 : f32 to vector<16x128xf32>
    %421 = arith.addf %420, %419 : vector<16x128xf32>
    %422 = arith.divf %420, %421 : vector<16x128xf32>
    %423 = vector.extract_strided_slice %416 {offsets = [0, 128], sizes = [16, 128], strides = [1, 1]} : vector<16x512xf32> to vector<16x128xf32>
    %424 = arith.negf %423 : vector<16x128xf32>
    %425 = math.exp %424 : vector<16x128xf32>
    %cst_115 = arith.constant 1.000000e+00 : f32
    %426 = vector.broadcast %cst_115 : f32 to vector<16x128xf32>
    %427 = arith.addf %426, %425 : vector<16x128xf32>
    %428 = arith.divf %426, %427 : vector<16x128xf32>
    %429 = vector.extract_strided_slice %416 {offsets = [0, 256], sizes = [16, 128], strides = [1, 1]} : vector<16x512xf32> to vector<16x128xf32>
    %430 = math.tanh %429 : vector<16x128xf32>
    %431 = vector.extract_strided_slice %416 {offsets = [0, 384], sizes = [16, 128], strides = [1, 1]} : vector<16x512xf32> to vector<16x128xf32>
    %432 = arith.negf %431 : vector<16x128xf32>
    %433 = math.exp %432 : vector<16x128xf32>
    %cst_116 = arith.constant 1.000000e+00 : f32
    %434 = vector.broadcast %cst_116 : f32 to vector<16x128xf32>
    %435 = arith.addf %434, %433 : vector<16x128xf32>
    %436 = arith.divf %434, %435 : vector<16x128xf32>
    %437 = arith.mulf %428, %410 : vector<16x128xf32>
    %438 = arith.mulf %422, %430 : vector<16x128xf32>
    %439 = arith.addf %437, %438 : vector<16x128xf32>
    %440 = math.tanh %439 : vector<16x128xf32>
    %441 = arith.mulf %436, %440 : vector<16x128xf32>
    %c96_117 = arith.constant 96 : index
    %c0_118 = arith.constant 0 : index
    %442 = vector.load %arg15[%c96_117, %c0_118] : memref<128x512xf32, #tpu.memory_space<vmem>>, vector<16x512xf32>
    %443 = arith.truncf %441 : vector<16x128xf32> to vector<16x128xbf16>
    %cst_119 = arith.constant dense<0.000000e+00> : vector<16x512xf32>
    %444 = tpu.matmul %443, %265, %cst_119 {dimension_numbers = #tpu.dot_dimension_numbers<[1], [0], [0], [1], [0, 0, 1, 1], [], []>} : vector<16x128xbf16>, vector<128x512xbf16>, vector<16x512xf32> -> vector<16x512xf32>
    %445 = arith.addf %442, %444 : vector<16x512xf32>
    %446 = vector.extract_strided_slice %445 {offsets = [0, 0], sizes = [16, 128], strides = [1, 1]} : vector<16x512xf32> to vector<16x128xf32>
    %447 = arith.negf %446 : vector<16x128xf32>
    %448 = math.exp %447 : vector<16x128xf32>
    %cst_120 = arith.constant 1.000000e+00 : f32
    %449 = vector.broadcast %cst_120 : f32 to vector<16x128xf32>
    %450 = arith.addf %449, %448 : vector<16x128xf32>
    %451 = arith.divf %449, %450 : vector<16x128xf32>
    %452 = vector.extract_strided_slice %445 {offsets = [0, 128], sizes = [16, 128], strides = [1, 1]} : vector<16x512xf32> to vector<16x128xf32>
    %453 = arith.negf %452 : vector<16x128xf32>
    %454 = math.exp %453 : vector<16x128xf32>
    %cst_121 = arith.constant 1.000000e+00 : f32
    %455 = vector.broadcast %cst_121 : f32 to vector<16x128xf32>
    %456 = arith.addf %455, %454 : vector<16x128xf32>
    %457 = arith.divf %455, %456 : vector<16x128xf32>
    %458 = vector.extract_strided_slice %445 {offsets = [0, 256], sizes = [16, 128], strides = [1, 1]} : vector<16x512xf32> to vector<16x128xf32>
    %459 = math.tanh %458 : vector<16x128xf32>
    %460 = vector.extract_strided_slice %445 {offsets = [0, 384], sizes = [16, 128], strides = [1, 1]} : vector<16x512xf32> to vector<16x128xf32>
    %461 = arith.negf %460 : vector<16x128xf32>
    %462 = math.exp %461 : vector<16x128xf32>
    %cst_122 = arith.constant 1.000000e+00 : f32
    %463 = vector.broadcast %cst_122 : f32 to vector<16x128xf32>
    %464 = arith.addf %463, %462 : vector<16x128xf32>
    %465 = arith.divf %463, %464 : vector<16x128xf32>
    %466 = arith.mulf %457, %439 : vector<16x128xf32>
    %467 = arith.mulf %451, %459 : vector<16x128xf32>
    %468 = arith.addf %466, %467 : vector<16x128xf32>
    %469 = math.tanh %468 : vector<16x128xf32>
    %470 = arith.mulf %465, %469 : vector<16x128xf32>
    %c112_123 = arith.constant 112 : index
    %c0_124 = arith.constant 0 : index
    %471 = vector.load %arg15[%c112_123, %c0_124] : memref<128x512xf32, #tpu.memory_space<vmem>>, vector<16x512xf32>
    %472 = arith.truncf %470 : vector<16x128xf32> to vector<16x128xbf16>
    %cst_125 = arith.constant dense<0.000000e+00> : vector<16x512xf32>
    %473 = tpu.matmul %472, %265, %cst_125 {dimension_numbers = #tpu.dot_dimension_numbers<[1], [0], [0], [1], [0, 0, 1, 1], [], []>} : vector<16x128xbf16>, vector<128x512xbf16>, vector<16x512xf32> -> vector<16x512xf32>
    %474 = arith.addf %471, %473 : vector<16x512xf32>
    %475 = vector.extract_strided_slice %474 {offsets = [0, 0], sizes = [16, 128], strides = [1, 1]} : vector<16x512xf32> to vector<16x128xf32>
    %476 = arith.negf %475 : vector<16x128xf32>
    %477 = math.exp %476 : vector<16x128xf32>
    %cst_126 = arith.constant 1.000000e+00 : f32
    %478 = vector.broadcast %cst_126 : f32 to vector<16x128xf32>
    %479 = arith.addf %478, %477 : vector<16x128xf32>
    %480 = arith.divf %478, %479 : vector<16x128xf32>
    %481 = vector.extract_strided_slice %474 {offsets = [0, 128], sizes = [16, 128], strides = [1, 1]} : vector<16x512xf32> to vector<16x128xf32>
    %482 = arith.negf %481 : vector<16x128xf32>
    %483 = math.exp %482 : vector<16x128xf32>
    %cst_127 = arith.constant 1.000000e+00 : f32
    %484 = vector.broadcast %cst_127 : f32 to vector<16x128xf32>
    %485 = arith.addf %484, %483 : vector<16x128xf32>
    %486 = arith.divf %484, %485 : vector<16x128xf32>
    %487 = vector.extract_strided_slice %474 {offsets = [0, 256], sizes = [16, 128], strides = [1, 1]} : vector<16x512xf32> to vector<16x128xf32>
    %488 = math.tanh %487 : vector<16x128xf32>
    %489 = vector.extract_strided_slice %474 {offsets = [0, 384], sizes = [16, 128], strides = [1, 1]} : vector<16x512xf32> to vector<16x128xf32>
    %490 = arith.negf %489 : vector<16x128xf32>
    %491 = math.exp %490 : vector<16x128xf32>
    %cst_128 = arith.constant 1.000000e+00 : f32
    %492 = vector.broadcast %cst_128 : f32 to vector<16x128xf32>
    %493 = arith.addf %492, %491 : vector<16x128xf32>
    %494 = arith.divf %492, %493 : vector<16x128xf32>
    %495 = arith.mulf %486, %468 : vector<16x128xf32>
    %496 = arith.mulf %480, %488 : vector<16x128xf32>
    %497 = arith.addf %495, %496 : vector<16x128xf32>
    %498 = math.tanh %497 : vector<16x128xf32>
    %499 = arith.mulf %494, %498 : vector<16x128xf32>
    %500 = arith.truncf %499 : vector<16x128xf32> to vector<16x128xbf16>
    %c0_129 = arith.constant 0 : index
    %c0_130 = arith.constant 0 : index
    %501 = vector.load %arg8[%c0_129, %c0_130] : memref<128x128xbf16, #tpu.memory_space<vmem>>, vector<128x128xbf16>
    %cst_131 = arith.constant dense<0.000000e+00> : vector<16x128xf32>
    %502 = tpu.matmul %500, %501, %cst_131 {dimension_numbers = #tpu.dot_dimension_numbers<[1], [0], [0], [1], [0, 0, 1, 1], [], []>} : vector<16x128xbf16>, vector<128x128xbf16>, vector<16x128xf32> -> vector<16x128xf32>
    %c0_132 = arith.constant 0 : index
    %c0_133 = arith.constant 0 : index
    %503 = vector.load %arg9[%c0_132, %c0_133] : memref<1x128xf32, #tpu.memory_space<vmem>>, vector<1x128xf32>
    %504 = vector.broadcast %503 : vector<1x128xf32> to vector<16x128xf32>
    %505 = arith.addf %502, %504 : vector<16x128xf32>
    %506 = tpu.iota {dimensions = array<i32: 0>} : vector<16x128xi32>
    %c2_i32 = arith.constant 2 : i32
    %507 = vector.broadcast %c2_i32 : i32 to vector<16x128xi32>
    %508 = arith.cmpi slt, %506, %507 : vector<16x128xi32>
    %cst_134 = arith.constant 0.000000e+00 : f32
    %509 = vector.broadcast %cst_134 : f32 to vector<16x128xf32>
    %510 = arith.select %508, %505, %509 : vector<16x128xi1>, vector<16x128xf32>
    %cst_135 = arith.constant dense<0.000000e+00> : vector<128xf32>
    %511 = vector.multi_reduction <add>, %510, %cst_135 [0] : vector<16x128xf32> to vector<128xf32>
    %512 = vector.shape_cast %511 : vector<128xf32> to vector<1x128xf32>
    %cst_136 = arith.constant 5.000000e-01 : f32
    %513 = vector.broadcast %cst_136 : f32 to vector<1x128xf32>
    %514 = arith.mulf %512, %513 : vector<1x128xf32>
    %515 = vector.broadcast %514 : vector<1x128xf32> to vector<16x128xf32>
    %516 = arith.subf %505, %515 : vector<16x128xf32>
    %cst_137 = arith.constant 0.000000e+00 : f32
    %517 = vector.broadcast %cst_137 : f32 to vector<16x128xf32>
    %518 = arith.select %508, %516, %517 : vector<16x128xi1>, vector<16x128xf32>
    %519 = arith.mulf %518, %518 : vector<16x128xf32>
    %cst_138 = arith.constant dense<0.000000e+00> : vector<128xf32>
    %520 = vector.multi_reduction <add>, %519, %cst_138 [0] : vector<16x128xf32> to vector<128xf32>
    %521 = vector.shape_cast %520 : vector<128xf32> to vector<1x128xf32>
    %cst_139 = arith.constant 5.000000e-01 : f32
    %522 = vector.broadcast %cst_139 : f32 to vector<1x128xf32>
    %523 = arith.mulf %521, %522 : vector<1x128xf32>
    %c0_140 = arith.constant 0 : index
    %c0_141 = arith.constant 0 : index
    %524 = vector.load %arg10[%c0_140, %c0_141] : memref<1x128xf32, #tpu.memory_space<vmem>>, vector<1x128xf32>
    %525 = vector.broadcast %514 : vector<1x128xf32> to vector<16x128xf32>
    %526 = arith.subf %505, %525 : vector<16x128xf32>
    %527 = vector.broadcast %524 : vector<1x128xf32> to vector<16x128xf32>
    %528 = arith.mulf %527, %526 : vector<16x128xf32>
    %cst_142 = arith.constant 9.99999974E-6 : f32
    %529 = vector.broadcast %cst_142 : f32 to vector<1x128xf32>
    %530 = arith.addf %523, %529 : vector<1x128xf32>
    %531 = math.rsqrt %530 : vector<1x128xf32>
    %532 = vector.broadcast %531 : vector<1x128xf32> to vector<16x128xf32>
    %533 = arith.mulf %528, %532 : vector<16x128xf32>
    %c0_143 = arith.constant 0 : index
    %c0_144 = arith.constant 0 : index
    %534 = vector.load %arg11[%c0_143, %c0_144] : memref<1x128xf32, #tpu.memory_space<vmem>>, vector<1x128xf32>
    %535 = vector.broadcast %534 : vector<1x128xf32> to vector<16x128xf32>
    %536 = arith.addf %533, %535 : vector<16x128xf32>
    %cst_145 = arith.constant 0.000000e+00 : f32
    %537 = vector.broadcast %cst_145 : f32 to vector<16x128xf32>
    %538 = arith.maximumf %536, %537 : vector<16x128xf32>
    %539 = arith.truncf %538 : vector<16x128xf32> to vector<16x128xbf16>
    %c0_146 = arith.constant 0 : index
    %c0_147 = arith.constant 0 : index
    %540 = vector.load %arg12[%c0_146, %c0_147] : memref<128x128xbf16, #tpu.memory_space<vmem>>, vector<128x128xbf16>
    %cst_148 = arith.constant dense<0.000000e+00> : vector<16x128xf32>
    %541 = tpu.matmul %539, %540, %cst_148 {dimension_numbers = #tpu.dot_dimension_numbers<[1], [0], [0], [1], [0, 0, 1, 1], [], []>} : vector<16x128xbf16>, vector<128x128xbf16>, vector<16x128xf32> -> vector<16x128xf32>
    %c0_149 = arith.constant 0 : index
    %c0_150 = arith.constant 0 : index
    %542 = vector.load %arg13[%c0_149, %c0_150] : memref<1x128xf32, #tpu.memory_space<vmem>>, vector<1x128xf32>
    %543 = vector.broadcast %542 : vector<1x128xf32> to vector<16x128xf32>
    %544 = arith.addf %541, %543 : vector<16x128xf32>
    %cst_151 = arith.constant dense<0xFF800000> : vector<16xf32>
    %545 = vector.multi_reduction <maximumf>, %544, %cst_151 [1] : vector<16x128xf32> to vector<16xf32>
    %546 = vector.shape_cast %545 : vector<16xf32> to vector<16x1xf32>
    %547 = vector.broadcast %546 : vector<16x1xf32> to vector<16x128xf32>
    %548 = arith.subf %544, %547 : vector<16x128xf32>
    %549 = math.exp %548 : vector<16x128xf32>
    %cst_152 = arith.constant dense<0.000000e+00> : vector<16xf32>
    %550 = vector.multi_reduction <add>, %549, %cst_152 [1] : vector<16x128xf32> to vector<16xf32>
    %551 = vector.shape_cast %550 : vector<16xf32> to vector<16x1xf32>
    %552 = vector.broadcast %551 : vector<16x1xf32> to vector<16x128xf32>
    %553 = arith.divf %549, %552 : vector<16x128xf32>
    %c0_153 = arith.constant 0 : index
    %c0_154 = arith.constant 0 : index
    %554 = vector.load %arg14[%c0_153, %c0_154] : memref<16x128xf32, #tpu.memory_space<vmem>>, vector<16x128xf32>
    tpu.vector_store %arg14[%c0_153, %c0_154], %553 {strides = array<i32>} : memref<16x128xf32, #tpu.memory_space<vmem>>, vector<16x128xf32>,
    return
  }
  func.func @transform_0(%arg0: i32) -> (i32, i32) {
    %c0_i32 = arith.constant 0 : i32
    %c0_i32_0 = arith.constant 0 : i32
    %c0_i32_1 = arith.constant 0 : i32
    return %c0_i32, %c0_i32_0 : i32, i32
  }
  func.func @transform_1(%arg0: i32) -> (i32, i32) {
    %c0_i32 = arith.constant 0 : i32
    %c0_i32_0 = arith.constant 0 : i32
    %c0_i32_1 = arith.constant 0 : i32
    return %c0_i32, %c0_i32_0 : i32, i32
  }
  func.func @transform_2(%arg0: i32) -> (i32, i32) {
    %c0_i32 = arith.constant 0 : i32
    %c0_i32_0 = arith.constant 0 : i32
    %c0_i32_1 = arith.constant 0 : i32
    return %c0_i32, %c0_i32_0 : i32, i32
  }
  func.func @transform_3(%arg0: i32) -> (i32, i32) {
    %c0_i32 = arith.constant 0 : i32
    %c0_i32_0 = arith.constant 0 : i32
    %c0_i32_1 = arith.constant 0 : i32
    return %c0_i32, %c0_i32_0 : i32, i32
  }
  func.func @transform_4(%arg0: i32) -> (i32, i32) {
    %c0_i32 = arith.constant 0 : i32
    %c0_i32_0 = arith.constant 0 : i32
    %c0_i32_1 = arith.constant 0 : i32
    return %c0_i32, %c0_i32_0 : i32, i32
  }
  func.func @transform_5(%arg0: i32) -> (i32, i32) {
    %c0_i32 = arith.constant 0 : i32
    %c0_i32_0 = arith.constant 0 : i32
    %c0_i32_1 = arith.constant 0 : i32
    return %c0_i32, %c0_i32_0 : i32, i32
  }
  func.func @transform_6(%arg0: i32) -> (i32, i32) {
    %c0_i32 = arith.constant 0 : i32
    %c0_i32_0 = arith.constant 0 : i32
    %c0_i32_1 = arith.constant 0 : i32
    return %c0_i32, %c0_i32_0 : i32, i32
  }
  func.func @transform_7(%arg0: i32) -> (i32, i32) {
    %c0_i32 = arith.constant 0 : i32
    %c0_i32_0 = arith.constant 0 : i32
    %c0_i32_1 = arith.constant 0 : i32
    return %c0_i32, %c0_i32_0 : i32, i32
  }
  func.func @transform_8(%arg0: i32) -> (i32, i32) {
    %c0_i32 = arith.constant 0 : i32
    %c0_i32_0 = arith.constant 0 : i32
    %c0_i32_1 = arith.constant 0 : i32
    return %c0_i32, %c0_i32_0 : i32, i32
  }
  func.func @transform_9(%arg0: i32) -> (i32, i32) {
    %c0_i32 = arith.constant 0 : i32
    %c0_i32_0 = arith.constant 0 : i32
    %c0_i32_1 = arith.constant 0 : i32
    return %c0_i32, %c0_i32_0 : i32, i32
  }
  func.func @transform_10(%arg0: i32) -> (i32, i32) {
    %c0_i32 = arith.constant 0 : i32
    %c0_i32_0 = arith.constant 0 : i32
    %c0_i32_1 = arith.constant 0 : i32
    return %c0_i32, %c0_i32_0 : i32, i32
  }
  func.func @transform_11(%arg0: i32) -> (i32, i32) {
    %c0_i32 = arith.constant 0 : i32
    %c0_i32_0 = arith.constant 0 : i32
    %c0_i32_1 = arith.constant 0 : i32
    return %c0_i32, %c0_i32_0 : i32, i32
  }
  func.func @transform_12(%arg0: i32) -> (i32, i32) {
    %c0_i32 = arith.constant 0 : i32
    %c0_i32_0 = arith.constant 0 : i32
    %c0_i32_1 = arith.constant 0 : i32
    return %c0_i32, %c0_i32_0 : i32, i32
  }
  func.func @transform_13(%arg0: i32) -> (i32, i32) {
    %c0_i32 = arith.constant 0 : i32
    %c0_i32_0 = arith.constant 0 : i32
    %c0_i32_1 = arith.constant 0 : i32
    return %c0_i32, %c0_i32_0 : i32, i32
  }
}

</mosaic_0001>

<llo_original>
// kernel: forward.1
$region0: #{forward.1}
  #allocation0 [shape = 'u32[]', space=smem, size = 0x4, offset = 0x4, fixed_abs, tag = 'smem constant byte address 0x4 - core index']
  #allocation1 [shape = 'u32[144,128]{1,0:T(1,128)}', space=vmem, size = 0x12000, scoped, tag = 'internal scratch']
  #allocation2 [shape = 'f32[128,512]{1,0:T(8,128)}', space=vmem, size = 0x40000, scoped, tag = 'scratch operand']
  #allocation3 [shape = 'bf16[128,128]{1,0:T(16,128)(2,1)}', space=vmem, size = 0x8000, scoped, tag = 'scratch operand']
  %s0 = inlined_call_operand.vmem [shape: bf16[128,128], index: 0, kind: input, shape index: {}]
  %s1 = inlined_call_operand.hbm [shape: bf16[128,512], index: 1, kind: input, shape index: {}]
  %s2 = inlined_call_operand.hbm [shape: bf16[128,512], index: 2, kind: input, shape index: {}]
  %s3 = inlined_call_operand.hbm [shape: f32[1,512], index: 3, kind: input, shape index: {}]
  %s4 = inlined_call_operand.hbm [shape: bf16[128,512], index: 4, kind: input, shape index: {}]
  %s5 = inlined_call_operand.hbm [shape: bf16[128,512], index: 5, kind: input, shape index: {}]
  %s6 = inlined_call_operand.hbm [shape: f32[1,512], index: 6, kind: input, shape index: {}]
  %s7 = inlined_call_operand.vmem [shape: bf16[128,128], index: 7, kind: input, shape index: {}]
  %s8 = inlined_call_operand.vmem [shape: f32[1,128], index: 8, kind: input, shape index: {}]
  %s9 = inlined_call_operand.vmem [shape: f32[1,128], index: 9, kind: input, shape index: {}]
  %s10 = inlined_call_operand.hbm [shape: f32[1,128], index: 10, kind: input, shape index: {}]
  %s11 = inlined_call_operand.vmem [shape: bf16[128,128], index: 11, kind: input, shape index: {}]
  %s12 = inlined_call_operand.vmem [shape: f32[1,128], index: 12, kind: input, shape index: {}]
  %s13 = inlined_call_operand.vmem [shape: f32[16,128], index: 13, kind: output, shape index: {}]
  %s14 = sld [smem:[#allocation0]]
  $region90: #{forward.1} parent=0
    _
  %s16 = ssub.s32 1, %s14
  %s17 = scalar_select 0, %s16, %s14
  $region1: #{forward.1} parent=0
    #allocation4 [shape = 'u8[131072]{0}', space=vmem, size = 0x20000, scoped, tag = 'input window, operand 1, single buffered']
    #allocation5 [shape = 's32[1]{0}', space=sflag, size = 0x4, scoped, tag = 'scoped memory for forward.1']
    #allocation6 [shape = 'u8[131072]{0}', space=vmem, size = 0x20000, scoped, tag = 'input window, operand 2, single buffered']
    #allocation7 [shape = 's32[1]{0}', space=sflag, size = 0x4, scoped, tag = 'scoped memory for forward.1']
    #allocation8 [shape = 'u8[2048]{0}', space=vmem, size = 0x800, scoped, tag = 'input window, operand 3, single buffered']
    #allocation9 [shape = 'u8[131072]{0}', space=vmem, size = 0x20000, scoped, tag = 'input window, operand 4, single buffered']
    #allocation10 [shape = 's32[1]{0}', space=sflag, size = 0x4, scoped, tag = 'scoped memory for forward.1']
    #allocation11 [shape = 'u8[131072]{0}', space=vmem, size = 0x20000, scoped, tag = 'input window, operand 5, single buffered']
    #allocation12 [shape = 'u8[2048]{0}', space=vmem, size = 0x800, scoped, tag = 'input window, operand 6, single buffered']
    #allocation13 [shape = 's32[1]{0}', space=sflag, size = 0x4, scoped, tag = 'scoped memory for forward.1']
    #allocation14 [shape = 'u8[512]{0}', space=vmem, size = 0x400, scoped, tag = 'input window, operand 10, single buffered']
    %18 = vsyncpa [#allocation5], 0
    %19 = vsyncpa [#allocation7], 0
    %20 = vsyncpa [#allocation10], 0
    %21 = vsyncpa [#allocation13], 0
    // Predicated region
    $region2: #{forward.1} parent=1 // pred_check
      _
    $region3: #{forward.1} parent=1 // pred_check_branch
      %23 = sbr.rel (0) target = $region5
    $region4: #{forward.1} parent=1 // pred_region
      _
    $region5: #{forward.1} parent=1 // pred_fallthru
      _
    // Predicated region
    $region6: #{forward.1} parent=1 // pred_check
      _
    $region7: #{forward.1} parent=1 // pred_check_branch
      %25 = sbr.rel (0) target = $region9
    $region8: #{forward.1} parent=1 // pred_region
      %s27 = ssub.s32 4096, 4096
      %28 = vsyncadd [#allocation5], %s27
      %s29 = sshll.u32 [#allocation4], 4
      %s30 = int_to_ptr.vmem [resolvable:$true] %s29
      %35 = dma.hbm_to_vmem [thread:$0]  %s1, 4096, %s30, [#allocation5], 256, 256, 16
    $region9: #{forward.1} parent=1 // pred_fallthru
      _
    // Predicated region
    $region10: #{forward.1} parent=1 // pred_check
      _
    $region11: #{forward.1} parent=1 // pred_check_branch
      %37 = sbr.rel (0) target = $region13
    $region12: #{forward.1} parent=1 // pred_region
      %s39 = ssub.s32 4096, 4096
      %40 = vsyncadd [#allocation7], %s39
      %s41 = sshll.u32 [#allocation6], 4
      %s42 = int_to_ptr.vmem [resolvable:$true] %s41
      %47 = dma.hbm_to_vmem [thread:$0]  %s2, 4096, %s42, [#allocation7], 256, 256, 16
    $region13: #{forward.1} parent=1 // pred_fallthru
      _
    // Predicated region
    $region14: #{forward.1} parent=1 // pred_check
      _
    $region15: #{forward.1} parent=1 // pred_check_branch
      %49 = sbr.rel (0) target = $region17
    $region16: #{forward.1} parent=1 // pred_region
      %s51 = ssub.s32 64, 64
      %52 = vsyncadd [#allocation7], %s51
      %s54 = sshll.u32 [#allocation8], 4
      %s55 = int_to_ptr.vmem [resolvable:$true] %s54
      %57 = dma.hbm_to_vmem [thread:$0]  %s3, 64, %s55, [#allocation7]
    $region17: #{forward.1} parent=1 // pred_fallthru
      _
    // Predicated region
    $region18: #{forward.1} parent=1 // pred_check
      _
    $region19: #{forward.1} parent=1 // pred_check_branch
      %59 = sbr.rel (0) target = $region21
    $region20: #{forward.1} parent=1 // pred_region
      %s61 = ssub.s32 4096, 4096
      %62 = vsyncadd [#allocation10], %s61
      %s63 = sshll.u32 [#allocation9], 4
      %s64 = int_to_ptr.vmem [resolvable:$true] %s63
      %69 = dma.hbm_to_vmem [thread:$0]  %s4, 4096, %s64, [#allocation10], 256, 256, 16
    $region21: #{forward.1} parent=1 // pred_fallthru
      _
    // Predicated region
    $region22: #{forward.1} parent=1 // pred_check
      _
    $region23: #{forward.1} parent=1 // pred_check_branch
      %71 = sbr.rel (0) target = $region25
    $region24: #{forward.1} parent=1 // pred_region
      %s73 = ssub.s32 4096, 4096
      %74 = vsyncadd [#allocation10], %s73
      %s75 = sshll.u32 [#allocation11], 4
      %s76 = int_to_ptr.vmem [resolvable:$true] %s75
      %81 = dma.hbm_to_vmem [thread:$0]  %s5, 4096, %s76, [#allocation10], 256, 256, 16
    $region25: #{forward.1} parent=1 // pred_fallthru
      _
    // Predicated region
    $region26: #{forward.1} parent=1 // pred_check
      _
    $region27: #{forward.1} parent=1 // pred_check_branch
      %83 = sbr.rel (0) target = $region29
    $region28: #{forward.1} parent=1 // pred_region
      %s85 = ssub.s32 64, 64
      %86 = vsyncadd [#allocation13], %s85
      %s88 = sshll.u32 [#allocation12], 4
      %s89 = int_to_ptr.vmem [resolvable:$true] %s88
      %91 = dma.hbm_to_vmem [thread:$0]  %s6, 64, %s89, [#allocation13]
    $region29: #{forward.1} parent=1 // pred_fallthru
      _
    // Predicated region
    $region30: #{forward.1} parent=1 // pred_check
      _
    $region31: #{forward.1} parent=1 // pred_check_branch
      %93 = sbr.rel (0) target = $region33
    $region32: #{forward.1} parent=1 // pred_region
      _
    $region33: #{forward.1} parent=1 // pred_fallthru
      _
    // Predicated region
    $region34: #{forward.1} parent=1 // pred_check
      _
    $region35: #{forward.1} parent=1 // pred_check_branch
      %95 = sbr.rel (0) target = $region37
    $region36: #{forward.1} parent=1 // pred_region
      _
    $region37: #{forward.1} parent=1 // pred_fallthru
      _
    // Predicated region
    $region38: #{forward.1} parent=1 // pred_check
      _
    $region39: #{forward.1} parent=1 // pred_check_branch
      %97 = sbr.rel (0) target = $region41
    $region40: #{forward.1} parent=1 // pred_region
      _
    $region41: #{forward.1} parent=1 // pred_fallthru
      _
    // Predicated region
    $region42: #{forward.1} parent=1 // pred_check
      _
    $region43: #{forward.1} parent=1 // pred_check_branch
      %99 = sbr.rel (0) target = $region45
    $region44: #{forward.1} parent=1 // pred_region
      %s101 = ssub.s32 16, 16
      %102 = vsyncadd [#allocation13], %s101
      %s104 = sshll.u32 [#allocation14], 4
      %s105 = int_to_ptr.vmem [resolvable:$true] %s104
      %107 = dma.hbm_to_vmem [thread:$0]  %s10, 16, %s105, [#allocation13]
    $region45: #{forward.1} parent=1 // pred_fallthru
      _
    // Predicated region
    $region46: #{forward.1} parent=1 // pred_check
      _
    $region47: #{forward.1} parent=1 // pred_check_branch
      %109 = sbr.rel (0) target = $region49
    $region48: #{forward.1} parent=1 // pred_region
      _
    $region49: #{forward.1} parent=1 // pred_fallthru
      _
    // Predicated region
    $region50: #{forward.1} parent=1 // pred_check
      _
    $region51: #{forward.1} parent=1 // pred_check_branch
      %111 = sbr.rel (0) target = $region53
    $region52: #{forward.1} parent=1 // pred_region
      _
    $region53: #{forward.1} parent=1 // pred_fallthru
      _
    // Predicated region
    $region54: #{forward.1} parent=1 // pred_check
      _
    $region55: #{forward.1} parent=1 // pred_check_branch
      %113 = sbr.rel (0) target = $region57
    $region56: #{forward.1} parent=1 // pred_region
      %114 = dma.done [#allocation5], 4096
    $region57: #{forward.1} parent=1 // pred_fallthru
      _
    // Predicated region
    $region58: #{forward.1} parent=1 // pred_check
      _
    $region59: #{forward.1} parent=1 // pred_check_branch
      %116 = sbr.rel (0) target = $region61
    $region60: #{forward.1} parent=1 // pred_region
      %117 = dma.done [#allocation7], 4096
    $region61: #{forward.1} parent=1 // pred_fallthru
      _
    // Predicated region
    $region62: #{forward.1} parent=1 // pred_check
      _
    $region63: #{forward.1} parent=1 // pred_check_branch
      %119 = sbr.rel (0) target = $region65
    $region64: #{forward.1} parent=1 // pred_region
      %120 = dma.done [#allocation7], 64
    $region65: #{forward.1} parent=1 // pred_fallthru
      _
    // Predicated region
    $region66: #{forward.1} parent=1 // pred_check
      _
    $region67: #{forward.1} parent=1 // pred_check_branch
      %122 = sbr.rel (0) target = $region69
    $region68: #{forward.1} parent=1 // pred_region
      %123 = dma.done [#allocation10], 4096
    $region69: #{forward.1} parent=1 // pred_fallthru
      _
    // Predicated region
    $region70: #{forward.1} parent=1 // pred_check
      _
    $region71: #{forward.1} parent=1 // pred_check_branch
      %125 = sbr.rel (0) target = $region73
    $region72: #{forward.1} parent=1 // pred_region
      %126 = dma.done [#allocation10], 4096
    $region73: #{forward.1} parent=1 // pred_fallthru
      _
    // Predicated region
    $region74: #{forward.1} parent=1 // pred_check
      _
    $region75: #{forward.1} parent=1 // pred_check_branch
      %128 = sbr.rel (0) target = $region77
    $region76: #{forward.1} parent=1 // pred_region
      %129 = dma.done [#allocation13], 64
    $region77: #{forward.1} parent=1 // pred_fallthru
      _
    // Predicated region
    $region78: #{forward.1} parent=1 // pred_check
      _
    $region79: #{forward.1} parent=1 // pred_check_branch
      %131 = sbr.rel (0) target = $region81
    $region80: #{forward.1} parent=1 // pred_region
      %132 = dma.done [#allocation13], 16
    $region81: #{forward.1} parent=1 // pred_fallthru
      _
    %v134 = vld [vmem:[%s0] sm:$0xf]
    %v135 = vld [vmem:[%s0 + $0x4] sm:$0xf]
    %v136 = vld [vmem:[%s0 + $0x8] sm:$0xf]
    %v137 = vld [vmem:[%s0 + $0xc] sm:$0xf]
    %v138 = vld [vmem:[%s0 + $0x10] sm:$0xf]
    %v139 = vld [vmem:[%s0 + $0x14] sm:$0xf]
    %v140 = vld [vmem:[%s0 + $0x18] sm:$0xf]
    %v141 = vld [vmem:[%s0 + $0x1c] sm:$0xf]
    %v142 = vld [vmem:[%s0 + $0x20] sm:$0xf]
    %v143 = vld [vmem:[%s0 + $0x24] sm:$0xf]
    %v144 = vld [vmem:[%s0 + $0x28] sm:$0xf]
    %v145 = vld [vmem:[%s0 + $0x2c] sm:$0xf]
    %v146 = vld [vmem:[%s0 + $0x30] sm:$0xf]
    %v147 = vld [vmem:[%s0 + $0x34] sm:$0xf]
    %v148 = vld [vmem:[%s0 + $0x38] sm:$0xf]
    %v149 = vld [vmem:[%s0 + $0x3c] sm:$0xf]
    %v150 = vld [vmem:[#allocation4] sm:$0xff]
    %v151 = vld [vmem:[#allocation4 + $0x8] sm:$0xff]
    %v152 = vld [vmem:[#allocation4 + $0x10] sm:$0xff]
    %v153 = vld [vmem:[#allocation4 + $0x18] sm:$0xff]
    %v154 = vld [vmem:[#allocation4 + $0x20] sm:$0xff]
    %v155 = vld [vmem:[#allocation4 + $0x28] sm:$0xff]
    %v156 = vld [vmem:[#allocation4 + $0x30] sm:$0xff]
    %v157 = vld [vmem:[#allocation4 + $0x38] sm:$0xff]
    %v158 = vld [vmem:[#allocation4 + $0x40] sm:$0xff]
    %v159 = vld [vmem:[#allocation4 + $0x48] sm:$0xff]
    %v160 = vld [vmem:[#allocation4 + $0x50] sm:$0xff]
    %v161 = vld [vmem:[#allocation4 + $0x58] sm:$0xff]
    %v162 = vld [vmem:[#allocation4 + $0x60] sm:$0xff]
    %v163 = vld [vmem:[#allocation4 + $0x68] sm:$0xff]
    %v164 = vld [vmem:[#allocation4 + $0x70] sm:$0xff]
    %v165 = vld [vmem:[#allocation4 + $0x78] sm:$0xff]
    %v166 = vld [vmem:[#allocation4 + $0x80] sm:$0xff]
    %v167 = vld [vmem:[#allocation4 + $0x88] sm:$0xff]
    %v168 = vld [vmem:[#allocation4 + $0x90] sm:$0xff]
    %v169 = vld [vmem:[#allocation4 + $0x98] sm:$0xff]
    %v170 = vld [vmem:[#allocation4 + $0xa0] sm:$0xff]
    %v171 = vld [vmem:[#allocation4 + $0xa8] sm:$0xff]
    %v172 = vld [vmem:[#allocation4 + $0xb0] sm:$0xff]
    %v173 = vld [vmem:[#allocation4 + $0xb8] sm:$0xff]
    %v174 = vld [vmem:[#allocation4 + $0xc0] sm:$0xff]
    %v175 = vld [vmem:[#allocation4 + $0xc8] sm:$0xff]
    %v176 = vld [vmem:[#allocation4 + $0xd0] sm:$0xff]
    %v177 = vld [vmem:[#allocation4 + $0xd8] sm:$0xff]
    %v178 = vld [vmem:[#allocation4 + $0xe0] sm:$0xff]
    %v179 = vld [vmem:[#allocation4 + $0xe8] sm:$0xff]
    %v180 = vld [vmem:[#allocation4 + $0xf0] sm:$0xff]
    %v181 = vld [vmem:[#allocation4 + $0xf8] sm:$0xff]
    %v182 = vld [vmem:[#allocation8] sm:$0xf]
    %v184 = vlaneseq
    %v185 = vshrl.u32 %v184, 7
    %v186 = vsub.s32 0, %v185
    %v187 = vrot.slane %v182, %v186
    %v188 = vlaneseq
    %v189 = vshrl.u32 %v188, 7
    %v190 = vsub.s32 1, %v189
    %v191 = vrot.slane %v182, %v190
    %v192 = vlaneseq
    %v193 = vshrl.u32 %v192, 7
    %v194 = vsub.s32 2, %v193
    %v195 = vrot.slane %v182, %v194
    %v196 = vlaneseq
    %v197 = vshrl.u32 %v196, 7
    %v198 = vsub.s32 3, %v197
    %v199 = vrot.slane %v182, %v198
    %v220 = vunpack.c.l.b16 %v134
    %v221 = vunpack.c.l.b16 %v135
    %v222 = vunpack.c.l.b16 %v136
    %v223 = vunpack.c.l.b16 %v137
    %v224 = vunpack.c.l.b16 %v138
    %v225 = vunpack.c.l.b16 %v139
    %v226 = vunpack.c.l.b16 %v140
    %v227 = vunpack.c.l.b16 %v141
    %v228 = vunpack.c.l.b16 %v142
    %v229 = vunpack.c.l.b16 %v143
    %v230 = vunpack.c.l.b16 %v144
    %v231 = vunpack.c.l.b16 %v145
    %v232 = vunpack.c.l.b16 %v146
    %v233 = vunpack.c.l.b16 %v147
    %v234 = vunpack.c.l.b16 %v148
    %v235 = vunpack.c.l.b16 %v149
    %v236 = vpack.c.b16 %v221, %v220
    %v237 = vpack.c.b16 %v223, %v222
    %v238 = vpack.c.b16 %v225, %v224
    %v239 = vpack.c.b16 %v227, %v226
    %v240 = vpack.c.b16 %v229, %v228
    %v241 = vpack.c.b16 %v231, %v230
    %v242 = vpack.c.b16 %v233, %v232
    %v243 = vpack.c.b16 %v235, %v234
    %v284 = vunpack.c.l.b16 %v150
    %v285 = vunpack.c.h.b16 %v150
    %v286 = vunpack.c.l.b16 %v151
    %v287 = vunpack.c.h.b16 %v151
    %v288 = vunpack.c.l.b16 %v152
    %v289 = vunpack.c.h.b16 %v152
    %v290 = vunpack.c.l.b16 %v153
    %v291 = vunpack.c.h.b16 %v153
    %v292 = vunpack.c.l.b16 %v154
    %v293 = vunpack.c.h.b16 %v154
    %v294 = vunpack.c.l.b16 %v155
    %v295 = vunpack.c.h.b16 %v155
    %v296 = vunpack.c.l.b16 %v156
    %v297 = vunpack.c.h.b16 %v156
    %v298 = vunpack.c.l.b16 %v157
    %v299 = vunpack.c.h.b16 %v157
    %v300 = vunpack.c.l.b16 %v158
    %v301 = vunpack.c.h.b16 %v158
    %v302 = vunpack.c.l.b16 %v159
    %v303 = vunpack.c.h.b16 %v159
    %v304 = vunpack.c.l.b16 %v160
    %v305 = vunpack.c.h.b16 %v160
    %v306 = vunpack.c.l.b16 %v161
    %v307 = vunpack.c.h.b16 %v161
    %v308 = vunpack.c.l.b16 %v162
    %v309 = vunpack.c.h.b16 %v162
    %v310 = vunpack.c.l.b16 %v163
    %v311 = vunpack.c.h.b16 %v163
    %v312 = vunpack.c.l.b16 %v164
    %v313 = vunpack.c.h.b16 %v164
    %v314 = vunpack.c.l.b16 %v165
    %v315 = vunpack.c.h.b16 %v165
    %v316 = vunpack.c.l.b16 %v166
    %v317 = vunpack.c.h.b16 %v166
    %v318 = vunpack.c.l.b16 %v167
    %v319 = vunpack.c.h.b16 %v167
    %v320 = vunpack.c.l.b16 %v168
    %v321 = vunpack.c.h.b16 %v168
    %v322 = vunpack.c.l.b16 %v169
    %v323 = vunpack.c.h.b16 %v169
    %v324 = vunpack.c.l.b16 %v170
    %v325 = vunpack.c.h.b16 %v170
    %v326 = vunpack.c.l.b16 %v171
    %v327 = vunpack.c.h.b16 %v171
    %v328 = vunpack.c.l.b16 %v172
    %v329 = vunpack.c.h.b16 %v172
    %v330 = vunpack.c.l.b16 %v173
    %v331 = vunpack.c.h.b16 %v173
    %v332 = vunpack.c.l.b16 %v174
    %v333 = vunpack.c.h.b16 %v174
    %v334 = vunpack.c.l.b16 %v175
    %v335 = vunpack.c.h.b16 %v175
    %v336 = vunpack.c.l.b16 %v176
    %v337 = vunpack.c.h.b16 %v176
    %v338 = vunpack.c.l.b16 %v177
    %v339 = vunpack.c.h.b16 %v177
    %v340 = vunpack.c.l.b16 %v178
    %v341 = vunpack.c.h.b16 %v178
    %v342 = vunpack.c.l.b16 %v179
    %v343 = vunpack.c.h.b16 %v179
    %v344 = vunpack.c.l.b16 %v180
    %v345 = vunpack.c.h.b16 %v180
    %v346 = vunpack.c.l.b16 %v181
    %v347 = vunpack.c.h.b16 %v181
    %v348 = vpack.c.b16 %v288, %v284
    %v349 = vpack.c.b16 %v289, %v285
    %v350 = vpack.c.b16 %v290, %v286
    %v351 = vpack.c.b16 %v291, %v287
    %v352 = vpack.c.b16 %v296, %v292
    %v353 = vpack.c.b16 %v297, %v293
    %v354 = vpack.c.b16 %v298, %v294
    %v355 = vpack.c.b16 %v299, %v295
    %v356 = vpack.c.b16 %v304, %v300
    %v357 = vpack.c.b16 %v305, %v301
    %v358 = vpack.c.b16 %v306, %v302
    %v359 = vpack.c.b16 %v307, %v303
    %v360 = vpack.c.b16 %v312, %v308
    %v361 = vpack.c.b16 %v313, %v309
    %v362 = vpack.c.b16 %v314, %v310
    %v363 = vpack.c.b16 %v315, %v311
    %v364 = vpack.c.b16 %v320, %v316
    %v365 = vpack.c.b16 %v321, %v317
    %v366 = vpack.c.b16 %v322, %v318
    %v367 = vpack.c.b16 %v323, %v319
    %v368 = vpack.c.b16 %v328, %v324
    %v369 = vpack.c.b16 %v329, %v325
    %v370 = vpack.c.b16 %v330, %v326
    %v371 = vpack.c.b16 %v331, %v327
    %v372 = vpack.c.b16 %v336, %v332
    %v373 = vpack.c.b16 %v337, %v333
    %v374 = vpack.c.b16 %v338, %v334
    %v375 = vpack.c.b16 %v339, %v335
    %v376 = vpack.c.b16 %v344, %v340
    %v377 = vpack.c.b16 %v345, %v341
    %v378 = vpack.c.b16 %v346, %v342
    %v379 = vpack.c.b16 %v347, %v343
    %412 = vmatprep.subr.bf16.mxu0 %v349
    %413 = vmatpush1.bf16.msra.mxu0 %v348
    %414 = vmatprep.subr.bf16.mxu0 %v353
    %415 = vmatpush1.bf16.msra.mxu0 %v352
    %416 = vmatprep.subr.bf16.mxu0 %v357
    %417 = vmatpush1.bf16.msra.mxu0 %v356
    %418 = vmatprep.subr.bf16.mxu0 %v361
    %419 = vmatpush1.bf16.msra.mxu0 %v360
    %420 = vmatprep.subr.bf16.mxu0 %v365
    %421 = vmatpush1.bf16.msra.mxu0 %v364
    %422 = vmatprep.subr.bf16.mxu0 %v369
    %423 = vmatpush1.bf16.msra.mxu0 %v368
    %424 = vmatprep.subr.bf16.mxu0 %v373
    %425 = vmatpush1.bf16.msra.mxu0 %v372
    %426 = vmatprep.subr.bf16.mxu0 %v377
    %427 = vmatpush1.bf16.msra.mxu0 %v376
    %428 = vmatprep.subr.bf16.mxu0 0
    %429 = vmatpush1.bf16.msra.mxu0 0
    %430 = vmatprep.subr.bf16.mxu0 0
    %431 = vmatpush1.bf16.msra.mxu0 0
    %432 = vmatprep.subr.bf16.mxu0 0
    %433 = vmatpush1.bf16.msra.mxu0 0
    %434 = vmatprep.subr.bf16.mxu0 0
    %435 = vmatpush1.bf16.msra.mxu0 0
    %436 = vmatprep.subr.bf16.mxu0 0
    %437 = vmatpush1.bf16.msra.mxu0 0
    %438 = vmatprep.subr.bf16.mxu0 0
    %439 = vmatpush1.bf16.msra.mxu0 0
    %440 = vmatprep.subr.bf16.mxu0 0
    %441 = vmatpush1.bf16.msra.mxu0 0
    %442 = vmatprep.subr.bf16.mxu0 0
    %443 = vmatpush1.bf16.msra.mxu0 0
    %444 = vmatprep.mubr.bf16.mxu0 0
    %445 = vmatmul.mubr.bf16.gmra.mrb[0].mxu0 %v236
    %v446 = vpop.f32.mrb[0].mxu0
    %v447 = vadd.f32 %v187, %v446
    %v448 = vpop.f32.mrb[0].mxu0
    %v449 = vadd.f32 %v191, %v448
    %v450 = vpop.f32.mrb[0].mxu0
    %v451 = vadd.f32 %v187, %v450
    %v452 = vpop.f32.mrb[0].mxu0
    %v453 = vadd.f32 %v191, %v452
    %454 = vmatprep.mubr.bf16.mxu0 0
    %455 = vmatmul.mubr.bf16.gmra.mrb[0].mxu0 %v237
    %v456 = vpop.f32.mrb[0].mxu0
    %v457 = vadd.f32 %v187, %v456
    %v458 = vpop.f32.mrb[0].mxu0
    %v459 = vadd.f32 %v191, %v458
    %v460 = vpop.f32.mrb[0].mxu0
    %v461 = vadd.f32 %v187, %v460
    %v462 = vpop.f32.mrb[0].mxu0
    %v463 = vadd.f32 %v191, %v462
    %464 = vmatprep.mubr.bf16.mxu0 0
    %465 = vmatmul.mubr.bf16.gmra.mrb[0].mxu0 %v238
    %v466 = vpop.f32.mrb[0].mxu0
    %v467 = vadd.f32 %v187, %v466
    %v468 = vpop.f32.mrb[0].mxu0
    %v469 = vadd.f32 %v191, %v468
    %v470 = vpop.f32.mrb[0].mxu0
    %v471 = vadd.f32 %v187, %v470
    %v472 = vpop.f32.mrb[0].mxu0
    %v473 = vadd.f32 %v191, %v472
    %474 = vmatprep.mubr.bf16.mxu0 0
    %475 = vmatmul.mubr.bf16.gmra.mrb[0].mxu0 %v239
    %v476 = vpop.f32.mrb[0].mxu0
    %v477 = vadd.f32 %v187, %v476
    %v478 = vpop.f32.mrb[0].mxu0
    %v479 = vadd.f32 %v191, %v478
    %v480 = vpop.f32.mrb[0].mxu0
    %v481 = vadd.f32 %v187, %v480
    %v482 = vpop.f32.mrb[0].mxu0
    %v483 = vadd.f32 %v191, %v482
    %484 = vmatprep.mubr.bf16.mxu0 0
    %485 = vmatmul.mubr.bf16.gmra.mrb[0].mxu0 %v240
    %v486 = vpop.f32.mrb[0].mxu0
    %v487 = vadd.f32 %v187, %v486
    %v488 = vpop.f32.mrb[0].mxu0
    %v489 = vadd.f32 %v191, %v488
    %v490 = vpop.f32.mrb[0].mxu0
    %v491 = vadd.f32 %v187, %v490
    %v492 = vpop.f32.mrb[0].mxu0
    %v493 = vadd.f32 %v191, %v492
    %494 = vmatprep.mubr.bf16.mxu0 0
    %495 = vmatmul.mubr.bf16.gmra.mrb[0].mxu0 %v241
    %v496 = vpop.f32.mrb[0].mxu0
    %v497 = vadd.f32 %v187, %v496
    %v498 = vpop.f32.mrb[0].mxu0
    %v499 = vadd.f32 %v191, %v498
    %v500 = vpop.f32.mrb[0].mxu0
    %v501 = vadd.f32 %v187, %v500
    %v502 = vpop.f32.mrb[0].mxu0
    %v503 = vadd.f32 %v191, %v502
    %504 = vmatprep.mubr.bf16.mxu0 0
    %505 = vmatmul.mubr.bf16.gmra.mrb[0].mxu0 %v242
    %v506 = vpop.f32.mrb[0].mxu0
    %v507 = vadd.f32 %v187, %v506
    %v508 = vpop.f32.mrb[0].mxu0
    %v509 = vadd.f32 %v191, %v508
    %v510 = vpop.f32.mrb[0].mxu0
    %v511 = vadd.f32 %v187, %v510
    %v512 = vpop.f32.mrb[0].mxu0
    %v513 = vadd.f32 %v191, %v512
    %514 = vmatprep.mubr.bf16.mxu0 0
    %515 = vmatmul.mubr.bf16.gmra.mrb[0].mxu0 %v243
    %v516 = vpop.f32.mrb[0].mxu0
    %v517 = vadd.f32 %v187, %v516
    %v518 = vpop.f32.mrb[0].mxu0
    %v519 = vadd.f32 %v191, %v518
    %v520 = vpop.f32.mrb[0].mxu0
    %v521 = vadd.f32 %v187, %v520
    %v522 = vpop.f32.mrb[0].mxu0
    %v523 = vadd.f32 %v191, %v522
    %524 = vdwg.mxu0
    %525 = vmatprep.subr.bf16.mxu0 %v351
    %526 = vmatpush1.bf16.msra.mxu0 %v350
    %527 = vmatprep.subr.bf16.mxu0 %v355
    %528 = vmatpush1.bf16.msra.mxu0 %v354
    %529 = vmatprep.subr.bf16.mxu0 %v359
    %530 = vmatpush1.bf16.msra.mxu0 %v358
    %531 = vmatprep.subr.bf16.mxu0 %v363
    %532 = vmatpush1.bf16.msra.mxu0 %v362
    %533 = vmatprep.subr.bf16.mxu0 %v367
    %534 = vmatpush1.bf16.msra.mxu0 %v366
    %535 = vmatprep.subr.bf16.mxu0 %v371
    %536 = vmatpush1.bf16.msra.mxu0 %v370
    %537 = vmatprep.subr.bf16.mxu0 %v375
    %538 = vmatpush1.bf16.msra.mxu0 %v374
    %539 = vmatprep.subr.bf16.mxu0 %v379
    %540 = vmatpush1.bf16.msra.mxu0 %v378
    %541 = vmatprep.subr.bf16.mxu0 0
    %542 = vmatpush1.bf16.msra.mxu0 0
    %543 = vmatprep.subr.bf16.mxu0 0
    %544 = vmatpush1.bf16.msra.mxu0 0
    %545 = vmatprep.subr.bf16.mxu0 0
    %546 = vmatpush1.bf16.msra.mxu0 0
    %547 = vmatprep.subr.bf16.mxu0 0
    %548 = vmatpush1.bf16.msra.mxu0 0
    %549 = vmatprep.subr.bf16.mxu0 0
    %550 = vmatpush1.bf16.msra.mxu0 0
    %551 = vmatprep.subr.bf16.mxu0 0
    %552 = vmatpush1.bf16.msra.mxu0 0
    %553 = vmatprep.subr.bf16.mxu0 0
    %554 = vmatpush1.bf16.msra.mxu0 0
    %555 = vmatprep.subr.bf16.mxu0 0
    %556 = vmatpush1.bf16.msra.mxu0 0
    %557 = vmatprep.mubr.bf16.mxu0 0
    %558 = vmatmul.mubr.bf16.gmra.mrb[0].mxu0 %v236
    %v559 = vpop.f32.mrb[0].mxu0
    %v560 = vadd.f32 %v195, %v559
    %v561 = vpop.f32.mrb[0].mxu0
    %v562 = vadd.f32 %v199, %v561
    %v563 = vpop.f32.mrb[0].mxu0
    %v564 = vadd.f32 %v195, %v563
    %v565 = vpop.f32.mrb[0].mxu0
    %v566 = vadd.f32 %v199, %v565
    %567 = vmatprep.mubr.bf16.mxu0 0
    %568 = vmatmul.mubr.bf16.gmra.mrb[0].mxu0 %v237
    %v569 = vpop.f32.mrb[0].mxu0
    %v570 = vadd.f32 %v195, %v569
    %v571 = vpop.f32.mrb[0].mxu0
    %v572 = vadd.f32 %v199, %v571
    %v573 = vpop.f32.mrb[0].mxu0
    %v574 = vadd.f32 %v195, %v573
    %v575 = vpop.f32.mrb[0].mxu0
    %v576 = vadd.f32 %v199, %v575
    %577 = vmatprep.mubr.bf16.mxu0 0
    %578 = vmatmul.mubr.bf16.gmra.mrb[0].mxu0 %v238
    %v579 = vpop.f32.mrb[0].mxu0
    %v580 = vadd.f32 %v195, %v579
    %v581 = vpop.f32.mrb[0].mxu0
    %v582 = vadd.f32 %v199, %v581
    %v583 = vpop.f32.mrb[0].mxu0
    %v584 = vadd.f32 %v195, %v583
    %v585 = vpop.f32.mrb[0].mxu0
    %v586 = vadd.f32 %v199, %v585
    %587 = vmatprep.mubr.bf16.mxu0 0
    %588 = vmatmul.mubr.bf16.gmra.mrb[0].mxu0 %v239
    %v589 = vpop.f32.mrb[0].mxu0
    %v590 = vadd.f32 %v195, %v589
    %v591 = vpop.f32.mrb[0].mxu0
    %v592 = vadd.f32 %v199, %v591
    %v593 = vpop.f32.mrb[0].mxu0
    %v594 = vadd.f32 %v195, %v593
    %v595 = vpop.f32.mrb[0].mxu0
    %v596 = vadd.f32 %v199, %v595
    %597 = vmatprep.mubr.bf16.mxu0 0
    %598 = vmatmul.mubr.bf16.gmra.mrb[0].mxu0 %v240
    %v599 = vpop.f32.mrb[0].mxu0
    %v600 = vadd.f32 %v195, %v599
    %v601 = vpop.f32.mrb[0].mxu0
    %v602 = vadd.f32 %v199, %v601
    %v603 = vpop.f32.mrb[0].mxu0
    %v604 = vadd.f32 %v195, %v603
    %v605 = vpop.f32.mrb[0].mxu0
    %v606 = vadd.f32 %v199, %v605
    %607 = vmatprep.mubr.bf16.mxu0 0
    %608 = vmatmul.mubr.bf16.gmra.mrb[0].mxu0 %v241
    %v609 = vpop.f32.mrb[0].mxu0
    %v610 = vadd.f32 %v195, %v609
    %v611 = vpop.f32.mrb[0].mxu0
    %v612 = vadd.f32 %v199, %v611
    %v613 = vpop.f32.mrb[0].mxu0
    %v614 = vadd.f32 %v195, %v613
    %v615 = vpop.f32.mrb[0].mxu0
    %v616 = vadd.f32 %v199, %v615
    %617 = vmatprep.mubr.bf16.mxu0 0
    %618 = vmatmul.mubr.bf16.gmra.mrb[0].mxu0 %v242
    %v619 = vpop.f32.mrb[0].mxu0
    %v620 = vadd.f32 %v195, %v619
    %v621 = vpop.f32.mrb[0].mxu0
    %v622 = vadd.f32 %v199, %v621
    %v623 = vpop.f32.mrb[0].mxu0
    %v624 = vadd.f32 %v195, %v623
    %v625 = vpop.f32.mrb[0].mxu0
    %v626 = vadd.f32 %v199, %v625
    %627 = vmatprep.mubr.bf16.mxu0 0
    %628 = vmatmul.mubr.bf16.gmra.mrb[0].mxu0 %v243
    %v629 = vpop.f32.mrb[0].mxu0
    %v630 = vadd.f32 %v195, %v629
    %v631 = vpop.f32.mrb[0].mxu0
    %v632 = vadd.f32 %v199, %v631
    %v633 = vpop.f32.mrb[0].mxu0
    %v634 = vadd.f32 %v195, %v633
    %v635 = vpop.f32.mrb[0].mxu0
    %v636 = vadd.f32 %v199, %v635
    %637 = vdwg.mxu0
    %638 = vst [vmem:[#allocation2] sm:$0xff] %v447
    %639 = vst [vmem:[#allocation2 + $0x8] sm:$0xff] %v449
    %640 = vst [vmem:[#allocation2 + $0x10] sm:$0xff] %v560
    %641 = vst [vmem:[#allocation2 + $0x18] sm:$0xff] %v562
    %642 = vst [vmem:[#allocation2 + $0x20] sm:$0xff] %v451
    %643 = vst [vmem:[#allocation2 + $0x28] sm:$0xff] %v453
    %644 = vst [vmem:[#allocation2 + $0x30] sm:$0xff] %v564
    %645 = vst [vmem:[#allocation2 + $0x38] sm:$0xff] %v566
    %646 = vst [vmem:[#allocation2 + $0x40] sm:$0xff] %v457
    %647 = vst [vmem:[#allocation2 + $0x48] sm:$0xff] %v459
    %648 = vst [vmem:[#allocation2 + $0x50] sm:$0xff] %v570
    %649 = vst [vmem:[#allocation2 + $0x58] sm:$0xff] %v572
    %650 = vst [vmem:[#allocation2 + $0x60] sm:$0xff] %v461
    %651 = vst [vmem:[#allocation2 + $0x68] sm:$0xff] %v463
    %652 = vst [vmem:[#allocation2 + $0x70] sm:$0xff] %v574
    %653 = vst [vmem:[#allocation2 + $0x78] sm:$0xff] %v576
    %654 = vst [vmem:[#allocation2 + $0x80] sm:$0xff] %v467
    %655 = vst [vmem:[#allocation2 + $0x88] sm:$0xff] %v469
    %656 = vst [vmem:[#allocation2 + $0x90] sm:$0xff] %v580
    %657 = vst [vmem:[#allocation2 + $0x98] sm:$0xff] %v582
    %658 = vst [vmem:[#allocation2 + $0xa0] sm:$0xff] %v471
    %659 = vst [vmem:[#allocation2 + $0xa8] sm:$0xff] %v473
    %660 = vst [vmem:[#allocation2 + $0xb0] sm:$0xff] %v584
    %661 = vst [vmem:[#allocation2 + $0xb8] sm:$0xff] %v586
    %662 = vst [vmem:[#allocation2 + $0xc0] sm:$0xff] %v477
    %663 = vst [vmem:[#allocation2 + $0xc8] sm:$0xff] %v479
    %664 = vst [vmem:[#allocation2 + $0xd0] sm:$0xff] %v590
    %665 = vst [vmem:[#allocation2 + $0xd8] sm:$0xff] %v592
    %666 = vst [vmem:[#allocation2 + $0xe0] sm:$0xff] %v481
    %667 = vst [vmem:[#allocation2 + $0xe8] sm:$0xff] %v483
    %668 = vst [vmem:[#allocation2 + $0xf0] sm:$0xff] %v594
    %669 = vst [vmem:[#allocation2 + $0xf8] sm:$0xff] %v596
    %670 = vst [vmem:[#allocation2 + $0x100] sm:$0xff] %v487
    %671 = vst [vmem:[#allocation2 + $0x108] sm:$0xff] %v489
    %672 = vst [vmem:[#allocation2 + $0x110] sm:$0xff] %v600
    %673 = vst [vmem:[#allocation2 + $0x118] sm:$0xff] %v602
    %674 = vst [vmem:[#allocation2 + $0x120] sm:$0xff] %v491
    %675 = vst [vmem:[#allocation2 + $0x128] sm:$0xff] %v493
    %676 = vst [vmem:[#allocation2 + $0x130] sm:$0xff] %v604
    %677 = vst [vmem:[#allocation2 + $0x138] sm:$0xff] %v606
    %678 = vst [vmem:[#allocation2 + $0x140] sm:$0xff] %v497
    %679 = vst [vmem:[#allocation2 + $0x148] sm:$0xff] %v499
    %680 = vst [vmem:[#allocation2 + $0x150] sm:$0xff] %v610
    %681 = vst [vmem:[#allocation2 + $0x158] sm:$0xff] %v612
    %682 = vst [vmem:[#allocation2 + $0x160] sm:$0xff] %v501
    %683 = vst [vmem:[#allocation2 + $0x168] sm:$0xff] %v503
    %684 = vst [vmem:[#allocation2 + $0x170] sm:$0xff] %v614
    %685 = vst [vmem:[#allocation2 + $0x178] sm:$0xff] %v616
    %686 = vst [vmem:[#allocation2 + $0x180] sm:$0xff] %v507
    %687 = vst [vmem:[#allocation2 + $0x188] sm:$0xff] %v509
    %688 = vst [vmem:[#allocation2 + $0x190] sm:$0xff] %v620
    %689 = vst [vmem:[#allocation2 + $0x198] sm:$0xff] %v622
    %690 = vst [vmem:[#allocation2 + $0x1a0] sm:$0xff] %v511
    %691 = vst [vmem:[#allocation2 + $0x1a8] sm:$0xff] %v513
    %692 = vst [vmem:[#allocation2 + $0x1b0] sm:$0xff] %v624
    %693 = vst [vmem:[#allocation2 + $0x1b8] sm:$0xff] %v626
    %694 = vst [vmem:[#allocation2 + $0x1c0] sm:$0xff] %v517
    %695 = vst [vmem:[#allocation2 + $0x1c8] sm:$0xff] %v519
    %696 = vst [vmem:[#allocation2 + $0x1d0] sm:$0xff] %v630
    %697 = vst [vmem:[#allocation2 + $0x1d8] sm:$0xff] %v632
    %698 = vst [vmem:[#allocation2 + $0x1e0] sm:$0xff] %v521
    %699 = vst [vmem:[#allocation2 + $0x1e8] sm:$0xff] %v523
    %700 = vst [vmem:[#allocation2 + $0x1f0] sm:$0xff] %v634
    %701 = vst [vmem:[#allocation2 + $0x1f8] sm:$0xff] %v636
    %v702 = vld [vmem:[#allocation6] sm:$0xff]
    %v703 = vld [vmem:[#allocation6 + $0x8] sm:$0xff]
    %v704 = vld [vmem:[#allocation6 + $0x10] sm:$0xff]
    %v705 = vld [vmem:[#allocation6 + $0x18] sm:$0xff]
    %v706 = vld [vmem:[#allocation6 + $0x20] sm:$0xff]
    %v707 = vld [vmem:[#allocation6 + $0x28] sm:$0xff]
    %v708 = vld [vmem:[#allocation6 + $0x30] sm:$0xff]
    %v709 = vld [vmem:[#allocation6 + $0x38] sm:$0xff]
    %v710 = vld [vmem:[#allocation6 + $0x40] sm:$0xff]
    %v711 = vld [vmem:[#allocation6 + $0x48] sm:$0xff]
    %v712 = vld [vmem:[#allocation6 + $0x50] sm:$0xff]
    %v713 = vld [vmem:[#allocation6 + $0x58] sm:$0xff]
    %v714 = vld [vmem:[#allocation6 + $0x60] sm:$0xff]
    %v715 = vld [vmem:[#allocation6 + $0x68] sm:$0xff]
    %v716 = vld [vmem:[#allocation6 + $0x70] sm:$0xff]
    %v717 = vld [vmem:[#allocation6 + $0x78] sm:$0xff]
    %v718 = vld [vmem:[#allocation6 + $0x80] sm:$0xff]
    %v719 = vld [vmem:[#allocation6 + $0x88] sm:$0xff]
    %v720 = vld [vmem:[#allocation6 + $0x90] sm:$0xff]
    %v721 = vld [vmem:[#allocation6 + $0x98] sm:$0xff]
    %v722 = vld [vmem:[#allocation6 + $0xa0] sm:$0xff]
    %v723 = vld [vmem:[#allocation6 + $0xa8] sm:$0xff]
    %v724 = vld [vmem:[#allocation6 + $0xb0] sm:$0xff]
    %v725 = vld [vmem:[#allocation6 + $0xb8] sm:$0xff]
    %v726 = vld [vmem:[#allocation6 + $0xc0] sm:$0xff]
    %v727 = vld [vmem:[#allocation6 + $0xc8] sm:$0xff]
    %v728 = vld [vmem:[#allocation6 + $0xd0] sm:$0xff]
    %v729 = vld [vmem:[#allocation6 + $0xd8] sm:$0xff]
    %v730 = vld [vmem:[#allocation6 + $0xe0] sm:$0xff]
    %v731 = vld [vmem:[#allocation6 + $0xe8] sm:$0xff]
    %v732 = vld [vmem:[#allocation6 + $0xf0] sm:$0xff]
    %v733 = vld [vmem:[#allocation6 + $0xf8] sm:$0xff]
    %v734 = vld [vmem:[#allocation2] sm:$0xff]
    %v735 = vld [vmem:[#allocation2 + $0x8] sm:$0xff]
    %v736 = vld [vmem:[#allocation2 + $0x10] sm:$0xff]
    %v737 = vld [vmem:[#allocation2 + $0x18] sm:$0xff]
    %v738 = vld [vmem:[#allocation2 + $0x20] sm:$0xff]
    %v739 = vld [vmem:[#allocation2 + $0x28] sm:$0xff]
    %v740 = vld [vmem:[#allocation2 + $0x30] sm:$0xff]
    %v741 = vld [vmem:[#allocation2 + $0x38] sm:$0xff]
    %v774 = vunpack.c.l.b16 %v702
    %v775 = vunpack.c.h.b16 %v702
    %v776 = vunpack.c.l.b16 %v703
    %v777 = vunpack.c.h.b16 %v703
    %v778 = vunpack.c.l.b16 %v704
    %v779 = vunpack.c.h.b16 %v704
    %v780 = vunpack.c.l.b16 %v705
    %v781 = vunpack.c.h.b16 %v705
    %v782 = vunpack.c.l.b16 %v706
    %v783 = vunpack.c.h.b16 %v706
    %v784 = vunpack.c.l.b16 %v707
    %v785 = vunpack.c.h.b16 %v707
    %v786 = vunpack.c.l.b16 %v708
    %v787 = vunpack.c.h.b16 %v708
    %v788 = vunpack.c.l.b16 %v709
    %v789 = vunpack.c.h.b16 %v709
    %v790 = vunpack.c.l.b16 %v710
    %v791 = vunpack.c.h.b16 %v710
    %v792 = vunpack.c.l.b16 %v711
    %v793 = vunpack.c.h.b16 %v711
    %v794 = vunpack.c.l.b16 %v712
    %v795 = vunpack.c.h.b16 %v712
    %v796 = vunpack.c.l.b16 %v713
    %v797 = vunpack.c.h.b16 %v713
    %v798 = vunpack.c.l.b16 %v714
    %v799 = vunpack.c.h.b16 %v714
    %v800 = vunpack.c.l.b16 %v715
    %v801 = vunpack.c.h.b16 %v715
    %v802 = vunpack.c.l.b16 %v716
    %v803 = vunpack.c.h.b16 %v716
    %v804 = vunpack.c.l.b16 %v717
    %v805 = vunpack.c.h.b16 %v717
    %v806 = vunpack.c.l.b16 %v718
    %v807 = vunpack.c.h.b16 %v718
    %v808 = vunpack.c.l.b16 %v719
    %v809 = vunpack.c.h.b16 %v719
    %v810 = vunpack.c.l.b16 %v720
    %v811 = vunpack.c.h.b16 %v720
    %v812 = vunpack.c.l.b16 %v721
    %v813 = vunpack.c.h.b16 %v721
    %v814 = vunpack.c.l.b16 %v722
    %v815 = vunpack.c.h.b16 %v722
    %v816 = vunpack.c.l.b16 %v723
    %v817 = vunpack.c.h.b16 %v723
    %v818 = vunpack.c.l.b16 %v724
    %v819 = vunpack.c.h.b16 %v724
    %v820 = vunpack.c.l.b16 %v725
    %v821 = vunpack.c.h.b16 %v725
    %v822 = vunpack.c.l.b16 %v726
    %v823 = vunpack.c.h.b16 %v726
    %v824 = vunpack.c.l.b16 %v727
    %v825 = vunpack.c.h.b16 %v727
    %v826 = vunpack.c.l.b16 %v728
    %v827 = vunpack.c.h.b16 %v728
    %v828 = vunpack.c.l.b16 %v729
    %v829 = vunpack.c.h.b16 %v729
    %v830 = vunpack.c.l.b16 %v730
    %v831 = vunpack.c.h.b16 %v730
    %v832 = vunpack.c.l.b16 %v731
    %v833 = vunpack.c.h.b16 %v731
    %v834 = vunpack.c.l.b16 %v732
    %v835 = vunpack.c.h.b16 %v732
    %v836 = vunpack.c.l.b16 %v733
    %v837 = vunpack.c.h.b16 %v733
    %v838 = vpack.c.b16 %v778, %v774
    %v839 = vpack.c.b16 %v779, %v775
    %v840 = vpack.c.b16 %v780, %v776
    %v841 = vpack.c.b16 %v781, %v777
    %v842 = vpack.c.b16 %v786, %v782
    %v843 = vpack.c.b16 %v787, %v783
    %v844 = vpack.c.b16 %v788, %v784
    %v845 = vpack.c.b16 %v789, %v785
    %v846 = vpack.c.b16 %v794, %v790
    %v847 = vpack.c.b16 %v795, %v791
    %v848 = vpack.c.b16 %v796, %v792
    %v849 = vpack.c.b16 %v797, %v793
    %v850 = vpack.c.b16 %v802, %v798
    %v851 = vpack.c.b16 %v803, %v799
    %v852 = vpack.c.b16 %v804, %v800
    %v853 = vpack.c.b16 %v805, %v801
    %v854 = vpack.c.b16 %v810, %v806
    %v855 = vpack.c.b16 %v811, %v807
    %v856 = vpack.c.b16 %v812, %v808
    %v857 = vpack.c.b16 %v813, %v809
    %v858 = vpack.c.b16 %v818, %v814
    %v859 = vpack.c.b16 %v819, %v815
    %v860 = vpack.c.b16 %v820, %v816
    %v861 = vpack.c.b16 %v821, %v817
    %v862 = vpack.c.b16 %v826, %v822
    %v863 = vpack.c.b16 %v827, %v823
    %v864 = vpack.c.b16 %v828, %v824
    %v865 = vpack.c.b16 %v829, %v825
    %v866 = vpack.c.b16 %v834, %v830
    %v867 = vpack.c.b16 %v835, %v831
    %v868 = vpack.c.b16 %v836, %v832
    %v869 = vpack.c.b16 %v837, %v833
    %902 = vmatprep.subr.bf16.mxu0 %v839
    %903 = vmatpush1.bf16.msra.mxu0 %v838
    %904 = vmatprep.subr.bf16.mxu0 %v843
    %905 = vmatpush1.bf16.msra.mxu0 %v842
    %906 = vmatprep.subr.bf16.mxu0 %v847
    %907 = vmatpush1.bf16.msra.mxu0 %v846
    %908 = vmatprep.subr.bf16.mxu0 %v851
    %909 = vmatpush1.bf16.msra.mxu0 %v850
    %910 = vmatprep.subr.bf16.mxu0 %v855
    %911 = vmatpush1.bf16.msra.mxu0 %v854
    %912 = vmatprep.subr.bf16.mxu0 %v859
    %913 = vmatpush1.bf16.msra.mxu0 %v858
    %914 = vmatprep.subr.bf16.mxu0 %v863
    %915 = vmatpush1.bf16.msra.mxu0 %v862
    %916 = vmatprep.subr.bf16.mxu0 %v867
    %917 = vmatpush1.bf16.msra.mxu0 %v866
    %918 = vmatprep.subr.bf16.mxu0 0
    %919 = vmatpush1.bf16.msra.mxu0 0
    %920 = vmatprep.subr.bf16.mxu0 0
    %921 = vmatpush1.bf16.msra.mxu0 0
    %922 = vmatprep.subr.bf16.mxu0 0
    %923 = vmatpush1.bf16.msra.mxu0 0
    %924 = vmatprep.subr.bf16.mxu0 0
    %925 = vmatpush1.bf16.msra.mxu0 0
    %926 = vmatprep.subr.bf16.mxu0 0
    %927 = vmatpush1.bf16.msra.mxu0 0
    %928 = vmatprep.subr.bf16.mxu0 0
    %929 = vmatpush1.bf16.msra.mxu0 0
    %930 = vmatprep.subr.bf16.mxu0 0
    %931 = vmatpush1.bf16.msra.mxu0 0
    %932 = vmatprep.subr.bf16.mxu0 0
    %933 = vmatpush1.bf16.msra.mxu0 0
    %934 = vmatprep.mubr.bf16.mxu0 0
    %935 = vmatmul.mubr.bf16.gmra.mrb[0].mxu0 0
    %v936 = vpop.f32.mrb[0].mxu0
    %v937 = vadd.f32 0.0, %v936
    %v938 = vpop.f32.mrb[0].mxu0
    %v939 = vadd.f32 0.0, %v938
    %v940 = vpop.f32.mrb[0].mxu0
    %v941 = vadd.f32 0.0, %v940
    %v942 = vpop.f32.mrb[0].mxu0
    %v943 = vadd.f32 0.0, %v942
    %944 = vdwg.mxu0
    %945 = vmatprep.subr.bf16.mxu0 %v841
    %946 = vmatpush1.bf16.msra.mxu0 %v840
    %947 = vmatprep.subr.bf16.mxu0 %v845
    %948 = vmatpush1.bf16.msra.mxu0 %v844
    %949 = vmatprep.subr.bf16.mxu0 %v849
    %950 = vmatpush1.bf16.msra.mxu0 %v848
    %951 = vmatprep.subr.bf16.mxu0 %v853
    %952 = vmatpush1.bf16.msra.mxu0 %v852
    %953 = vmatprep.subr.bf16.mxu0 %v857
    %954 = vmatpush1.bf16.msra.mxu0 %v856
    %955 = vmatprep.subr.bf16.mxu0 %v861
    %956 = vmatpush1.bf16.msra.mxu0 %v860
    %957 = vmatprep.subr.bf16.mxu0 %v865
    %958 = vmatpush1.bf16.msra.mxu0 %v864
    %959 = vmatprep.subr.bf16.mxu0 %v869
    %960 = vmatpush1.bf16.msra.mxu0 %v868
    %961 = vmatprep.subr.bf16.mxu0 0
    %962 = vmatpush1.bf16.msra.mxu0 0
    %963 = vmatprep.subr.bf16.mxu0 0
    %964 = vmatpush1.bf16.msra.mxu0 0
    %965 = vmatprep.subr.bf16.mxu0 0
    %966 = vmatpush1.bf16.msra.mxu0 0
    %967 = vmatprep.subr.bf16.mxu0 0
    %968 = vmatpush1.bf16.msra.mxu0 0
    %969 = vmatprep.subr.bf16.mxu0 0
    %970 = vmatpush1.bf16.msra.mxu0 0
    %971 = vmatprep.subr.bf16.mxu0 0
    %972 = vmatpush1.bf16.msra.mxu0 0
    %973 = vmatprep.subr.bf16.mxu0 0
    %974 = vmatpush1.bf16.msra.mxu0 0
    %975 = vmatprep.subr.bf16.mxu0 0
    %976 = vmatpush1.bf16.msra.mxu0 0
    %977 = vmatprep.mubr.bf16.mxu0 0
    %978 = vmatmul.mubr.bf16.gmra.mrb[0].mxu0 0
    %v979 = vpop.f32.mrb[0].mxu0
    %v980 = vadd.f32 0.0, %v979
    %v981 = vpop.f32.mrb[0].mxu0
    %v982 = vadd.f32 0.0, %v981
    %v983 = vpop.f32.mrb[0].mxu0
    %v984 = vadd.f32 0.0, %v983
    %v985 = vpop.f32.mrb[0].mxu0
    %v986 = vadd.f32 0.0, %v985
    %987 = vdwg.mxu0
    %v988 = vadd.f32 %v734, %v937
    %v989 = vadd.f32 %v735, %v939
    %v990 = vadd.f32 %v736, %v980
    %v991 = vadd.f32 %v737, %v982
    %v992 = vadd.f32 %v738, %v941
    %v993 = vadd.f32 %v739, %v943
    %v994 = vadd.f32 %v740, %v984
    %v995 = vadd.f32 %v741, %v986
    %v996 = vxor.u32 %v988, 2147483648
    %v997 = vxor.u32 %v992, 2147483648
    %v998 = vmul.f32 %v996, 1.442695
    %v999 = vpow.pop %v998
    %v1000 = vmul.f32 %v997, 1.442695
    %v1001 = vpow.pop %v1000
    %v1002 = vadd.f32 %v999, 1.0
    %v1003 = vadd.f32 %v1001, 1.0
    %v1004 = vrcp.pop %v1002
    %v1005 = vmul.f32 1.0, %v1004
    %v1006 = vrcp.pop %v1003
    %v1007 = vmul.f32 1.0, %v1006
    %v1008 = vxor.u32 %v989, 2147483648
    %v1009 = vxor.u32 %v993, 2147483648
    %v1010 = vmul.f32 %v1008, 1.442695
    %v1011 = vpow.pop %v1010
    %v1012 = vmul.f32 %v1009, 1.442695
    %v1013 = vpow.pop %v1012
    %v1014 = vadd.f32 %v1011, 1.0
    %v1015 = vadd.f32 %v1013, 1.0
    %v1016 = vrcp.pop %v1014
    %v1017 = vmul.f32 1.0, %v1016
    %v1018 = vrcp.pop %v1015
    %v1019 = vmul.f32 1.0, %v1018
    %v1020 = vtanh.pop %v990
    %v1021 = vtanh.pop %v994
    %v1022 = vxor.u32 %v991, 2147483648
    %v1023 = vxor.u32 %v995, 2147483648
    %v1024 = vmul.f32 %v1022, 1.442695
    %v1025 = vpow.pop %v1024
    %v1026 = vmul.f32 %v1023, 1.442695
    %v1027 = vpow.pop %v1026
    %v1028 = vadd.f32 %v1025, 1.0
    %v1029 = vadd.f32 %v1027, 1.0
    %v1030 = vrcp.pop %v1028
    %v1031 = vmul.f32 1.0, %v1030
    %v1032 = vrcp.pop %v1029
    %v1033 = vmul.f32 1.0, %v1032
    %v1034 = vmul.f32 %v1017, 0.0
    %v1035 = vmul.f32 %v1019, 0.0
    %v1036 = vmul.f32 %v1005, %v1020
    %v1037 = vmul.f32 %v1007, %v1021
    %v1038 = vadd.f32 %v1034, %v1036
    %v1039 = vadd.f32 %v1035, %v1037
    %v1040 = vtanh.pop %v1038
    %v1041 = vtanh.pop %v1039
    %v1042 = vmul.f32 %v1031, %v1040
    %v1043 = vmul.f32 %v1033, %v1041
    %v1044 = vpack.c.bf16 %v1043, %v1042
    %1045 = vst [vmem:[#allocation3] sm:$0xff] %v1044
    %v1046 = vld [vmem:[#allocation2 + $0x40] sm:$0xff]
    %v1047 = vld [vmem:[#allocation2 + $0x48] sm:$0xff]
    %v1048 = vld [vmem:[#allocation2 + $0x50] sm:$0xff]
    %v1049 = vld [vmem:[#allocation2 + $0x58] sm:$0xff]
    %v1050 = vld [vmem:[#allocation2 + $0x60] sm:$0xff]
    %v1051 = vld [vmem:[#allocation2 + $0x68] sm:$0xff]
    %v1052 = vld [vmem:[#allocation2 + $0x70] sm:$0xff]
    %v1053 = vld [vmem:[#allocation2 + $0x78] sm:$0xff]
    %1054 = vmatprep.subr.bf16.mxu0 %v839
    %1055 = vmatpush1.bf16.msra.mxu0 %v838
    %1056 = vmatprep.subr.bf16.mxu0 %v843
    %1057 = vmatpush1.bf16.msra.mxu0 %v842
    %1058 = vmatprep.subr.bf16.mxu0 %v847
    %1059 = vmatpush1.bf16.msra.mxu0 %v846
    %1060 = vmatprep.subr.bf16.mxu0 %v851
    %1061 = vmatpush1.bf16.msra.mxu0 %v850
    %1062 = vmatprep.subr.bf16.mxu0 %v855
    %1063 = vmatpush1.bf16.msra.mxu0 %v854
    %1064 = vmatprep.subr.bf16.mxu0 %v859
    %1065 = vmatpush1.bf16.msra.mxu0 %v858
    %1066 = vmatprep.subr.bf16.mxu0 %v863
    %1067 = vmatpush1.bf16.msra.mxu0 %v862
    %1068 = vmatprep.subr.bf16.mxu0 %v867
    %1069 = vmatpush1.bf16.msra.mxu0 %v866
    %1070 = vmatprep.subr.bf16.mxu0 0
    %1071 = vmatpush1.bf16.msra.mxu0 0
    %1072 = vmatprep.subr.bf16.mxu0 0
    %1073 = vmatpush1.bf16.msra.mxu0 0
    %1074 = vmatprep.subr.bf16.mxu0 0
    %1075 = vmatpush1.bf16.msra.mxu0 0
    %1076 = vmatprep.subr.bf16.mxu0 0
    %1077 = vmatpush1.bf16.msra.mxu0 0
    %1078 = vmatprep.subr.bf16.mxu0 0
    %1079 = vmatpush1.bf16.msra.mxu0 0
    %1080 = vmatprep.subr.bf16.mxu0 0
    %1081 = vmatpush1.bf16.msra.mxu0 0
    %1082 = vmatprep.subr.bf16.mxu0 0
    %1083 = vmatpush1.bf16.msra.mxu0 0
    %1084 = vmatprep.subr.bf16.mxu0 0
    %1085 = vmatpush1.bf16.msra.mxu0 0
    %1086 = vmatprep.mubr.bf16.mxu0 0
    %1087 = vmatmul.mubr.bf16.gmra.mrb[0].mxu0 %v1044
    %v1088 = vpop.f32.mrb[0].mxu0
    %v1089 = vadd.f32 0.0, %v1088
    %v1090 = vpop.f32.mrb[0].mxu0
    %v1091 = vadd.f32 0.0, %v1090
    %v1092 = vpop.f32.mrb[0].mxu0
    %v1093 = vadd.f32 0.0, %v1092
    %v1094 = vpop.f32.mrb[0].mxu0
    %v1095 = vadd.f32 0.0, %v1094
    %1096 = vdwg.mxu0
    %1097 = vmatprep.subr.bf16.mxu0 %v841
    %1098 = vmatpush1.bf16.msra.mxu0 %v840
    %1099 = vmatprep.subr.bf16.mxu0 %v845
    %1100 = vmatpush1.bf16.msra.mxu0 %v844
    %1101 = vmatprep.subr.bf16.mxu0 %v849
    %1102 = vmatpush1.bf16.msra.mxu0 %v848
    %1103 = vmatprep.subr.bf16.mxu0 %v853
    %1104 = vmatpush1.bf16.msra.mxu0 %v852
    %1105 = vmatprep.subr.bf16.mxu0 %v857
    %1106 = vmatpush1.bf16.msra.mxu0 %v856
    %1107 = vmatprep.subr.bf16.mxu0 %v861
    %1108 = vmatpush1.bf16.msra.mxu0 %v860
    %1109 = vmatprep.subr.bf16.mxu0 %v865
    %1110 = vmatpush1.bf16.msra.mxu0 %v864
    %1111 = vmatprep.subr.bf16.mxu0 %v869
    %1112 = vmatpush1.bf16.msra.mxu0 %v868
    %1113 = vmatprep.subr.bf16.mxu0 0
    %1114 = vmatpush1.bf16.msra.mxu0 0
    %1115 = vmatprep.subr.bf16.mxu0 0
    %1116 = vmatpush1.bf16.msra.mxu0 0
    %1117 = vmatprep.subr.bf16.mxu0 0
    %1118 = vmatpush1.bf16.msra.mxu0 0
    %1119 = vmatprep.subr.bf16.mxu0 0
    %1120 = vmatpush1.bf16.msra.mxu0 0
    %1121 = vmatprep.subr.bf16.mxu0 0
    %1122 = vmatpush1.bf16.msra.mxu0 0
    %1123 = vmatprep.subr.bf16.mxu0 0
    %1124 = vmatpush1.bf16.msra.mxu0 0
    %1125 = vmatprep.subr.bf16.mxu0 0
    %1126 = vmatpush1.bf16.msra.mxu0 0
    %1127 = vmatprep.subr.bf16.mxu0 0
    %1128 = vmatpush1.bf16.msra.mxu0 0
    %1129 = vmatprep.mubr.bf16.mxu0 0
    %1130 = vmatmul.mubr.bf16.gmra.mrb[0].mxu0 %v1044
    %v1131 = vpop.f32.mrb[0].mxu0
    %v1132 = vadd.f32 0.0, %v1131
    %v1133 = vpop.f32.mrb[0].mxu0
    %v1134 = vadd.f32 0.0, %v1133
    %v1135 = vpop.f32.mrb[0].mxu0
    %v1136 = vadd.f32 0.0, %v1135
    %v1137 = vpop.f32.mrb[0].mxu0
    %v1138 = vadd.f32 0.0, %v1137
    %1139 = vdwg.mxu0
    %v1140 = vadd.f32 %v1046, %v1089
    %v1141 = vadd.f32 %v1047, %v1091
    %v1142 = vadd.f32 %v1048, %v1132
    %v1143 = vadd.f32 %v1049, %v1134
    %v1144 = vadd.f32 %v1050, %v1093
    %v1145 = vadd.f32 %v1051, %v1095
    %v1146 = vadd.f32 %v1052, %v1136
    %v1147 = vadd.f32 %v1053, %v1138
    %v1148 = vxor.u32 %v1140, 2147483648
    %v1149 = vxor.u32 %v1144, 2147483648
    %v1150 = vmul.f32 %v1148, 1.442695
    %v1151 = vpow.pop %v1150
    %v1152 = vmul.f32 %v1149, 1.442695
    %v1153 = vpow.pop %v1152
    %v1154 = vadd.f32 %v1151, 1.0
    %v1155 = vadd.f32 %v1153, 1.0
    %v1156 = vrcp.pop %v1154
    %v1157 = vmul.f32 1.0, %v1156
    %v1158 = vrcp.pop %v1155
    %v1159 = vmul.f32 1.0, %v1158
    %v1160 = vxor.u32 %v1141, 2147483648
    %v1161 = vxor.u32 %v1145, 2147483648
    %v1162 = vmul.f32 %v1160, 1.442695
    %v1163 = vpow.pop %v1162
    %v1164 = vmul.f32 %v1161, 1.442695
    %v1165 = vpow.pop %v1164
    %v1166 = vadd.f32 %v1163, 1.0
    %v1167 = vadd.f32 %v1165, 1.0
    %v1168 = vrcp.pop %v1166
    %v1169 = vmul.f32 1.0, %v1168
    %v1170 = vrcp.pop %v1167
    %v1171 = vmul.f32 1.0, %v1170
    %v1172 = vtanh.pop %v1142
    %v1173 = vtanh.pop %v1146
    %v1174 = vxor.u32 %v1143, 2147483648
    %v1175 = vxor.u32 %v1147, 2147483648
    %v1176 = vmul.f32 %v1174, 1.442695
    %v1177 = vpow.pop %v1176
    %v1178 = vmul.f32 %v1175, 1.442695
    %v1179 = vpow.pop %v1178
    %v1180 = vadd.f32 %v1177, 1.0
    %v1181 = vadd.f32 %v1179, 1.0
    %v1182 = vrcp.pop %v1180
    %v1183 = vmul.f32 1.0, %v1182
    %v1184 = vrcp.pop %v1181
    %v1185 = vmul.f32 1.0, %v1184
    %v1186 = vmul.f32 %v1169, %v1038
    %v1187 = vmul.f32 %v1171, %v1039
    %v1188 = vmul.f32 %v1157, %v1172
    %v1189 = vmul.f32 %v1159, %v1173
    %v1190 = vadd.f32 %v1186, %v1188
    %v1191 = vadd.f32 %v1187, %v1189
    %v1192 = vtanh.pop %v1190
    %v1193 = vtanh.pop %v1191
    %v1194 = vmul.f32 %v1183, %v1192
    %v1195 = vmul.f32 %v1185, %v1193
    %v1196 = vpack.c.bf16 %v1195, %v1194
    %1197 = vst [vmem:[#allocation3 + $0x8] sm:$0xff] %v1196
    %v1198 = vld [vmem:[#allocation2 + $0x80] sm:$0xff]
    %v1199 = vld [vmem:[#allocation2 + $0x88] sm:$0xff]
    %v1200 = vld [vmem:[#allocation2 + $0x90] sm:$0xff]
    %v1201 = vld [vmem:[#allocation2 + $0x98] sm:$0xff]
    %v1202 = vld [vmem:[#allocation2 + $0xa0] sm:$0xff]
    %v1203 = vld [vmem:[#allocation2 + $0xa8] sm:$0xff]
    %v1204 = vld [vmem:[#allocation2 + $0xb0] sm:$0xff]
    %v1205 = vld [vmem:[#allocation2 + $0xb8] sm:$0xff]
    %1206 = vmatprep.subr.bf16.mxu0 %v839
    %1207 = vmatpush1.bf16.msra.mxu0 %v838
    %1208 = vmatprep.subr.bf16.mxu0 %v843
    %1209 = vmatpush1.bf16.msra.mxu0 %v842
    %1210 = vmatprep.subr.bf16.mxu0 %v847
    %1211 = vmatpush1.bf16.msra.mxu0 %v846
    %1212 = vmatprep.subr.bf16.mxu0 %v851
    %1213 = vmatpush1.bf16.msra.mxu0 %v850
    %1214 = vmatprep.subr.bf16.mxu0 %v855
    %1215 = vmatpush1.bf16.msra.mxu0 %v854
    %1216 = vmatprep.subr.bf16.mxu0 %v859
    %1217 = vmatpush1.bf16.msra.mxu0 %v858
    %1218 = vmatprep.subr.bf16.mxu0 %v863
    %1219 = vmatpush1.bf16.msra.mxu0 %v862
    %1220 = vmatprep.subr.bf16.mxu0 %v867
    %1221 = vmatpush1.bf16.msra.mxu0 %v866
    %1222 = vmatprep.subr.bf16.mxu0 0
    %1223 = vmatpush1.bf16.msra.mxu0 0
    %1224 = vmatprep.subr.bf16.mxu0 0
    %1225 = vmatpush1.bf16.msra.mxu0 0
    %1226 = vmatprep.subr.bf16.mxu0 0
    %1227 = vmatpush1.bf16.msra.mxu0 0
    %1228 = vmatprep.subr.bf16.mxu0 0
    %1229 = vmatpush1.bf16.msra.mxu0 0
    %1230 = vmatprep.subr.bf16.mxu0 0
    %1231 = vmatpush1.bf16.msra.mxu0 0
    %1232 = vmatprep.subr.bf16.mxu0 0
    %1233 = vmatpush1.bf16.msra.mxu0 0
    %1234 = vmatprep.subr.bf16.mxu0 0
    %1235 = vmatpush1.bf16.msra.mxu0 0
    %1236 = vmatprep.subr.bf16.mxu0 0
    %1237 = vmatpush1.bf16.msra.mxu0 0
    %1238 = vmatprep.mubr.bf16.mxu0 0
    %1239 = vmatmul.mubr.bf16.gmra.mrb[0].mxu0 %v1196
    %v1240 = vpop.f32.mrb[0].mxu0
    %v1241 = vadd.f32 0.0, %v1240
    %v1242 = vpop.f32.mrb[0].mxu0
    %v1243 = vadd.f32 0.0, %v1242
    %v1244 = vpop.f32.mrb[0].mxu0
    %v1245 = vadd.f32 0.0, %v1244
    %v1246 = vpop.f32.mrb[0].mxu0
    %v1247 = vadd.f32 0.0, %v1246
    %1248 = vdwg.mxu0
    %1249 = vmatprep.subr.bf16.mxu0 %v841
    %1250 = vmatpush1.bf16.msra.mxu0 %v840
    %1251 = vmatprep.subr.bf16.mxu0 %v845
    %1252 = vmatpush1.bf16.msra.mxu0 %v844
    %1253 = vmatprep.subr.bf16.mxu0 %v849
    %1254 = vmatpush1.bf16.msra.mxu0 %v848
    %1255 = vmatprep.subr.bf16.mxu0 %v853
    %1256 = vmatpush1.bf16.msra.mxu0 %v852
    %1257 = vmatprep.subr.bf16.mxu0 %v857
    %1258 = vmatpush1.bf16.msra.mxu0 %v856
    %1259 = vmatprep.subr.bf16.mxu0 %v861
    %1260 = vmatpush1.bf16.msra.mxu0 %v860
    %1261 = vmatprep.subr.bf16.mxu0 %v865
    %1262 = vmatpush1.bf16.msra.mxu0 %v864
    %1263 = vmatprep.subr.bf16.mxu0 %v869
    %1264 = vmatpush1.bf16.msra.mxu0 %v868
    %1265 = vmatprep.subr.bf16.mxu0 0
    %1266 = vmatpush1.bf16.msra.mxu0 0
    %1267 = vmatprep.subr.bf16.mxu0 0
    %1268 = vmatpush1.bf16.msra.mxu0 0
    %1269 = vmatprep.subr.bf16.mxu0 0
    %1270 = vmatpush1.bf16.msra.mxu0 0
    %1271 = vmatprep.subr.bf16.mxu0 0
    %1272 = vmatpush1.bf16.msra.mxu0 0
    %1273 = vmatprep.subr.bf16.mxu0 0
    %1274 = vmatpush1.bf16.msra.mxu0 0
    %1275 = vmatprep.subr.bf16.mxu0 0
    %1276 = vmatpush1.bf16.msra.mxu0 0
    %1277 = vmatprep.subr.bf16.mxu0 0
    %1278 = vmatpush1.bf16.msra.mxu0 0
    %1279 = vmatprep.subr.bf16.mxu0 0
    %1280 = vmatpush1.bf16.msra.mxu0 0
    %1281 = vmatprep.mubr.bf16.mxu0 0
    %1282 = vmatmul.mubr.bf16.gmra.mrb[0].mxu0 %v1196
    %v1283 = vpop.f32.mrb[0].mxu0
    %v1284 = vadd.f32 0.0, %v1283
    %v1285 = vpop.f32.mrb[0].mxu0
    %v1286 = vadd.f32 0.0, %v1285
    %v1287 = vpop.f32.mrb[0].mxu0
    %v1288 = vadd.f32 0.0, %v1287
    %v1289 = vpop.f32.mrb[0].mxu0
    %v1290 = vadd.f32 0.0, %v1289
    %1291 = vdwg.mxu0
    %v1292 = vadd.f32 %v1198, %v1241
    %v1293 = vadd.f32 %v1199, %v1243
    %v1294 = vadd.f32 %v1200, %v1284
    %v1295 = vadd.f32 %v1201, %v1286
    %v1296 = vadd.f32 %v1202, %v1245
    %v1297 = vadd.f32 %v1203, %v1247
    %v1298 = vadd.f32 %v1204, %v1288
    %v1299 = vadd.f32 %v1205, %v1290
    %v1300 = vxor.u32 %v1292, 2147483648
    %v1301 = vxor.u32 %v1296, 2147483648
    %v1302 = vmul.f32 %v1300, 1.442695
    %v1303 = vpow.pop %v1302
    %v1304 = vmul.f32 %v1301, 1.442695
    %v1305 = vpow.pop %v1304
    %v1306 = vadd.f32 %v1303, 1.0
    %v1307 = vadd.f32 %v1305, 1.0
    %v1308 = vrcp.pop %v1306
    %v1309 = vmul.f32 1.0, %v1308
    %v1310 = vrcp.pop %v1307
    %v1311 = vmul.f32 1.0, %v1310
    %v1312 = vxor.u32 %v1293, 2147483648
    %v1313 = vxor.u32 %v1297, 2147483648
    %v1314 = vmul.f32 %v1312, 1.442695
    %v1315 = vpow.pop %v1314
    %v1316 = vmul.f32 %v1313, 1.442695
    %v1317 = vpow.pop %v1316
    %v1318 = vadd.f32 %v1315, 1.0
    %v1319 = vadd.f32 %v1317, 1.0
    %v1320 = vrcp.pop %v1318
    %v1321 = vmul.f32 1.0, %v1320
    %v1322 = vrcp.pop %v1319
    %v1323 = vmul.f32 1.0, %v1322
    %v1324 = vtanh.pop %v1294
    %v1325 = vtanh.pop %v1298
    %v1326 = vxor.u32 %v1295, 2147483648
    %v1327 = vxor.u32 %v1299, 2147483648
    %v1328 = vmul.f32 %v1326, 1.442695
    %v1329 = vpow.pop %v1328
    %v1330 = vmul.f32 %v1327, 1.442695
    %v1331 = vpow.pop %v1330
    %v1332 = vadd.f32 %v1329, 1.0
    %v1333 = vadd.f32 %v1331, 1.0
    %v1334 = vrcp.pop %v1332
    %v1335 = vmul.f32 1.0, %v1334
    %v1336 = vrcp.pop %v1333
    %v1337 = vmul.f32 1.0, %v1336
    %v1338 = vmul.f32 %v1321, %v1190
    %v1339 = vmul.f32 %v1323, %v1191
    %v1340 = vmul.f32 %v1309, %v1324
    %v1341 = vmul.f32 %v1311, %v1325
    %v1342 = vadd.f32 %v1338, %v1340
    %v1343 = vadd.f32 %v1339, %v1341
    %v1344 = vtanh.pop %v1342
    %v1345 = vtanh.pop %v1343
    %v1346 = vmul.f32 %v1335, %v1344
    %v1347 = vmul.f32 %v1337, %v1345
    %v1348 = vpack.c.bf16 %v1347, %v1346
    %1349 = vst [vmem:[#allocation3 + $0x10] sm:$0xff] %v1348
    %v1350 = vld [vmem:[#allocation2 + $0xc0] sm:$0xff]
    %v1351 = vld [vmem:[#allocation2 + $0xc8] sm:$0xff]
    %v1352 = vld [vmem:[#allocation2 + $0xd0] sm:$0xff]
    %v1353 = vld [vmem:[#allocation2 + $0xd8] sm:$0xff]
    %v1354 = vld [vmem:[#allocation2 + $0xe0] sm:$0xff]
    %v1355 = vld [vmem:[#allocation2 + $0xe8] sm:$0xff]
    %v1356 = vld [vmem:[#allocation2 + $0xf0] sm:$0xff]
    %v1357 = vld [vmem:[#allocation2 + $0xf8] sm:$0xff]
    %1358 = vmatprep.subr.bf16.mxu0 %v839
    %1359 = vmatpush1.bf16.msra.mxu0 %v838
    %1360 = vmatprep.subr.bf16.mxu0 %v843
    %1361 = vmatpush1.bf16.msra.mxu0 %v842
    %1362 = vmatprep.subr.bf16.mxu0 %v847
    %1363 = vmatpush1.bf16.msra.mxu0 %v846
    %1364 = vmatprep.subr.bf16.mxu0 %v851
    %1365 = vmatpush1.bf16.msra.mxu0 %v850
    %1366 = vmatprep.subr.bf16.mxu0 %v855
    %1367 = vmatpush1.bf16.msra.mxu0 %v854
    %1368 = vmatprep.subr.bf16.mxu0 %v859
    %1369 = vmatpush1.bf16.msra.mxu0 %v858
    %1370 = vmatprep.subr.bf16.mxu0 %v863
    %1371 = vmatpush1.bf16.msra.mxu0 %v862
    %1372 = vmatprep.subr.bf16.mxu0 %v867
    %1373 = vmatpush1.bf16.msra.mxu0 %v866
    %1374 = vmatprep.subr.bf16.mxu0 0
    %1375 = vmatpush1.bf16.msra.mxu0 0
    %1376 = vmatprep.subr.bf16.mxu0 0
    %1377 = vmatpush1.bf16.msra.mxu0 0
    %1378 = vmatprep.subr.bf16.mxu0 0
    %1379 = vmatpush1.bf16.msra.mxu0 0
    %1380 = vmatprep.subr.bf16.mxu0 0
    %1381 = vmatpush1.bf16.msra.mxu0 0
    %1382 = vmatprep.subr.bf16.mxu0 0
    %1383 = vmatpush1.bf16.msra.mxu0 0
    %1384 = vmatprep.subr.bf16.mxu0 0
    %1385 = vmatpush1.bf16.msra.mxu0 0
    %1386 = vmatprep.subr.bf16.mxu0 0
    %1387 = vmatpush1.bf16.msra.mxu0 0
    %1388 = vmatprep.subr.bf16.mxu0 0
    %1389 = vmatpush1.bf16.msra.mxu0 0
    %1390 = vmatprep.mubr.bf16.mxu0 0
    %1391 = vmatmul.mubr.bf16.gmra.mrb[0].mxu0 %v1348
    %v1392 = vpop.f32.mrb[0].mxu0
    %v1393 = vadd.f32 0.0, %v1392
    %v1394 = vpop.f32.mrb[0].mxu0
    %v1395 = vadd.f32 0.0, %v1394
    %v1396 = vpop.f32.mrb[0].mxu0
    %v1397 = vadd.f32 0.0, %v1396
    %v1398 = vpop.f32.mrb[0].mxu0
    %v1399 = vadd.f32 0.0, %v1398
    %1400 = vdwg.mxu0
    %1401 = vmatprep.subr.bf16.mxu0 %v841
    %1402 = vmatpush1.bf16.msra.mxu0 %v840
    %1403 = vmatprep.subr.bf16.mxu0 %v845
    %1404 = vmatpush1.bf16.msra.mxu0 %v844
    %1405 = vmatprep.subr.bf16.mxu0 %v849
    %1406 = vmatpush1.bf16.msra.mxu0 %v848
    %1407 = vmatprep.subr.bf16.mxu0 %v853
    %1408 = vmatpush1.bf16.msra.mxu0 %v852
    %1409 = vmatprep.subr.bf16.mxu0 %v857
    %1410 = vmatpush1.bf16.msra.mxu0 %v856
    %1411 = vmatprep.subr.bf16.mxu0 %v861
    %1412 = vmatpush1.bf16.msra.mxu0 %v860
    %1413 = vmatprep.subr.bf16.mxu0 %v865
    %1414 = vmatpush1.bf16.msra.mxu0 %v864
    %1415 = vmatprep.subr.bf16.mxu0 %v869
    %1416 = vmatpush1.bf16.msra.mxu0 %v868
    %1417 = vmatprep.subr.bf16.mxu0 0
    %1418 = vmatpush1.bf16.msra.mxu0 0
    %1419 = vmatprep.subr.bf16.mxu0 0
    %1420 = vmatpush1.bf16.msra.mxu0 0
    %1421 = vmatprep.subr.bf16.mxu0 0
    %1422 = vmatpush1.bf16.msra.mxu0 0
    %1423 = vmatprep.subr.bf16.mxu0 0
    %1424 = vmatpush1.bf16.msra.mxu0 0
    %1425 = vmatprep.subr.bf16.mxu0 0
    %1426 = vmatpush1.bf16.msra.mxu0 0
    %1427 = vmatprep.subr.bf16.mxu0 0
    %1428 = vmatpush1.bf16.msra.mxu0 0
    %1429 = vmatprep.subr.bf16.mxu0 0
    %1430 = vmatpush1.bf16.msra.mxu0 0
    %1431 = vmatprep.subr.bf16.mxu0 0
    %1432 = vmatpush1.bf16.msra.mxu0 0
    %1433 = vmatprep.mubr.bf16.mxu0 0
    %1434 = vmatmul.mubr.bf16.gmra.mrb[0].mxu0 %v1348
    %v1435 = vpop.f32.mrb[0].mxu0
    %v1436 = vadd.f32 0.0, %v1435
    %v1437 = vpop.f32.mrb[0].mxu0
    %v1438 = vadd.f32 0.0, %v1437
    %v1439 = vpop.f32.mrb[0].mxu0
    %v1440 = vadd.f32 0.0, %v1439
    %v1441 = vpop.f32.mrb[0].mxu0
    %v1442 = vadd.f32 0.0, %v1441
    %1443 = vdwg.mxu0
    %v1444 = vadd.f32 %v1350, %v1393
    %v1445 = vadd.f32 %v1351, %v1395
    %v1446 = vadd.f32 %v1352, %v1436
    %v1447 = vadd.f32 %v1353, %v1438
    %v1448 = vadd.f32 %v1354, %v1397
    %v1449 = vadd.f32 %v1355, %v1399
    %v1450 = vadd.f32 %v1356, %v1440
    %v1451 = vadd.f32 %v1357, %v1442
    %v1452 = vxor.u32 %v1444, 2147483648
    %v1453 = vxor.u32 %v1448, 2147483648
    %v1454 = vmul.f32 %v1452, 1.442695
    %v1455 = vpow.pop %v1454
    %v1456 = vmul.f32 %v1453, 1.442695
    %v1457 = vpow.pop %v1456
    %v1458 = vadd.f32 %v1455, 1.0
    %v1459 = vadd.f32 %v1457, 1.0
    %v1460 = vrcp.pop %v1458
    %v1461 = vmul.f32 1.0, %v1460
    %v1462 = vrcp.pop %v1459
    %v1463 = vmul.f32 1.0, %v1462
    %v1464 = vxor.u32 %v1445, 2147483648
    %v1465 = vxor.u32 %v1449, 2147483648
    %v1466 = vmul.f32 %v1464, 1.442695
    %v1467 = vpow.pop %v1466
    %v1468 = vmul.f32 %v1465, 1.442695
    %v1469 = vpow.pop %v1468
    %v1470 = vadd.f32 %v1467, 1.0
    %v1471 = vadd.f32 %v1469, 1.0
    %v1472 = vrcp.pop %v1470
    %v1473 = vmul.f32 1.0, %v1472
    %v1474 = vrcp.pop %v1471
    %v1475 = vmul.f32 1.0, %v1474
    %v1476 = vtanh.pop %v1446
    %v1477 = vtanh.pop %v1450
    %v1478 = vxor.u32 %v1447, 2147483648
    %v1479 = vxor.u32 %v1451, 2147483648
    %v1480 = vmul.f32 %v1478, 1.442695
    %v1481 = vpow.pop %v1480
    %v1482 = vmul.f32 %v1479, 1.442695
    %v1483 = vpow.pop %v1482
    %v1484 = vadd.f32 %v1481, 1.0
    %v1485 = vadd.f32 %v1483, 1.0
    %v1486 = vrcp.pop %v1484
    %v1487 = vmul.f32 1.0, %v1486
    %v1488 = vrcp.pop %v1485
    %v1489 = vmul.f32 1.0, %v1488
    %v1490 = vmul.f32 %v1473, %v1342
    %v1491 = vmul.f32 %v1475, %v1343
    %v1492 = vmul.f32 %v1461, %v1476
    %v1493 = vmul.f32 %v1463, %v1477
    %v1494 = vadd.f32 %v1490, %v1492
    %v1495 = vadd.f32 %v1491, %v1493
    %v1496 = vtanh.pop %v1494
    %v1497 = vtanh.pop %v1495
    %v1498 = vmul.f32 %v1487, %v1496
    %v1499 = vmul.f32 %v1489, %v1497
    %v1500 = vpack.c.bf16 %v1499, %v1498
    %1501 = vst [vmem:[#allocation3 + $0x18] sm:$0xff] %v1500
    %v1502 = vld [vmem:[#allocation2 + $0x100] sm:$0xff]
    %v1503 = vld [vmem:[#allocation2 + $0x108] sm:$0xff]
    %v1504 = vld [vmem:[#allocation2 + $0x110] sm:$0xff]
    %v1505 = vld [vmem:[#allocation2 + $0x118] sm:$0xff]
    %v1506 = vld [vmem:[#allocation2 + $0x120] sm:$0xff]
    %v1507 = vld [vmem:[#allocation2 + $0x128] sm:$0xff]
    %v1508 = vld [vmem:[#allocation2 + $0x130] sm:$0xff]
    %v1509 = vld [vmem:[#allocation2 + $0x138] sm:$0xff]
    %1510 = vmatprep.subr.bf16.mxu0 %v839
    %1511 = vmatpush1.bf16.msra.mxu0 %v838
    %1512 = vmatprep.subr.bf16.mxu0 %v843
    %1513 = vmatpush1.bf16.msra.mxu0 %v842
    %1514 = vmatprep.subr.bf16.mxu0 %v847
    %1515 = vmatpush1.bf16.msra.mxu0 %v846
    %1516 = vmatprep.subr.bf16.mxu0 %v851
    %1517 = vmatpush1.bf16.msra.mxu0 %v850
    %1518 = vmatprep.subr.bf16.mxu0 %v855
    %1519 = vmatpush1.bf16.msra.mxu0 %v854
    %1520 = vmatprep.subr.bf16.mxu0 %v859
    %1521 = vmatpush1.bf16.msra.mxu0 %v858
    %1522 = vmatprep.subr.bf16.mxu0 %v863
    %1523 = vmatpush1.bf16.msra.mxu0 %v862
    %1524 = vmatprep.subr.bf16.mxu0 %v867
    %1525 = vmatpush1.bf16.msra.mxu0 %v866
    %1526 = vmatprep.subr.bf16.mxu0 0
    %1527 = vmatpush1.bf16.msra.mxu0 0
    %1528 = vmatprep.subr.bf16.mxu0 0
    %1529 = vmatpush1.bf16.msra.mxu0 0
    %1530 = vmatprep.subr.bf16.mxu0 0
    %1531 = vmatpush1.bf16.msra.mxu0 0
    %1532 = vmatprep.subr.bf16.mxu0 0
    %1533 = vmatpush1.bf16.msra.mxu0 0
    %1534 = vmatprep.subr.bf16.mxu0 0
    %1535 = vmatpush1.bf16.msra.mxu0 0
    %1536 = vmatprep.subr.bf16.mxu0 0
    %1537 = vmatpush1.bf16.msra.mxu0 0
    %1538 = vmatprep.subr.bf16.mxu0 0
    %1539 = vmatpush1.bf16.msra.mxu0 0
    %1540 = vmatprep.subr.bf16.mxu0 0
    %1541 = vmatpush1.bf16.msra.mxu0 0
    %1542 = vmatprep.mubr.bf16.mxu0 0
    %1543 = vmatmul.mubr.bf16.gmra.mrb[0].mxu0 %v1500
    %v1544 = vpop.f32.mrb[0].mxu0
    %v1545 = vadd.f32 0.0, %v1544
    %v1546 = vpop.f32.mrb[0].mxu0
    %v1547 = vadd.f32 0.0, %v1546
    %v1548 = vpop.f32.mrb[0].mxu0
    %v1549 = vadd.f32 0.0, %v1548
    %v1550 = vpop.f32.mrb[0].mxu0
    %v1551 = vadd.f32 0.0, %v1550
    %1552 = vdwg.mxu0
    %1553 = vmatprep.subr.bf16.mxu0 %v841
    %1554 = vmatpush1.bf16.msra.mxu0 %v840
    %1555 = vmatprep.subr.bf16.mxu0 %v845
    %1556 = vmatpush1.bf16.msra.mxu0 %v844
    %1557 = vmatprep.subr.bf16.mxu0 %v849
    %1558 = vmatpush1.bf16.msra.mxu0 %v848
    %1559 = vmatprep.subr.bf16.mxu0 %v853
    %1560 = vmatpush1.bf16.msra.mxu0 %v852
    %1561 = vmatprep.subr.bf16.mxu0 %v857
    %1562 = vmatpush1.bf16.msra.mxu0 %v856
    %1563 = vmatprep.subr.bf16.mxu0 %v861
    %1564 = vmatpush1.bf16.msra.mxu0 %v860
    %1565 = vmatprep.subr.bf16.mxu0 %v865
    %1566 = vmatpush1.bf16.msra.mxu0 %v864
    %1567 = vmatprep.subr.bf16.mxu0 %v869
    %1568 = vmatpush1.bf16.msra.mxu0 %v868
    %1569 = vmatprep.subr.bf16.mxu0 0
    %1570 = vmatpush1.bf16.msra.mxu0 0
    %1571 = vmatprep.subr.bf16.mxu0 0
    %1572 = vmatpush1.bf16.msra.mxu0 0
    %1573 = vmatprep.subr.bf16.mxu0 0
    %1574 = vmatpush1.bf16.msra.mxu0 0
    %1575 = vmatprep.subr.bf16.mxu0 0
    %1576 = vmatpush1.bf16.msra.mxu0 0
    %1577 = vmatprep.subr.bf16.mxu0 0
    %1578 = vmatpush1.bf16.msra.mxu0 0
    %1579 = vmatprep.subr.bf16.mxu0 0
    %1580 = vmatpush1.bf16.msra.mxu0 0
    %1581 = vmatprep.subr.bf16.mxu0 0
    %1582 = vmatpush1.bf16.msra.mxu0 0
    %1583 = vmatprep.subr.bf16.mxu0 0
    %1584 = vmatpush1.bf16.msra.mxu0 0
    %1585 = vmatprep.mubr.bf16.mxu0 0
    %1586 = vmatmul.mubr.bf16.gmra.mrb[0].mxu0 %v1500
    %v1587 = vpop.f32.mrb[0].mxu0
    %v1588 = vadd.f32 0.0, %v1587
    %v1589 = vpop.f32.mrb[0].mxu0
    %v1590 = vadd.f32 0.0, %v1589
    %v1591 = vpop.f32.mrb[0].mxu0
    %v1592 = vadd.f32 0.0, %v1591
    %v1593 = vpop.f32.mrb[0].mxu0
    %v1594 = vadd.f32 0.0, %v1593
    %1595 = vdwg.mxu0
    %v1596 = vadd.f32 %v1502, %v1545
    %v1597 = vadd.f32 %v1503, %v1547
    %v1598 = vadd.f32 %v1504, %v1588
    %v1599 = vadd.f32 %v1505, %v1590
    %v1600 = vadd.f32 %v1506, %v1549
    %v1601 = vadd.f32 %v1507, %v1551
    %v1602 = vadd.f32 %v1508, %v1592
    %v1603 = vadd.f32 %v1509, %v1594
    %v1604 = vxor.u32 %v1596, 2147483648
    %v1605 = vxor.u32 %v1600, 2147483648
    %v1606 = vmul.f32 %v1604, 1.442695
    %v1607 = vpow.pop %v1606
    %v1608 = vmul.f32 %v1605, 1.442695
    %v1609 = vpow.pop %v1608
    %v1610 = vadd.f32 %v1607, 1.0
    %v1611 = vadd.f32 %v1609, 1.0
    %v1612 = vrcp.pop %v1610
    %v1613 = vmul.f32 1.0, %v1612
    %v1614 = vrcp.pop %v1611
    %v1615 = vmul.f32 1.0, %v1614
    %v1616 = vxor.u32 %v1597, 2147483648
    %v1617 = vxor.u32 %v1601, 2147483648
    %v1618 = vmul.f32 %v1616, 1.442695
    %v1619 = vpow.pop %v1618
    %v1620 = vmul.f32 %v1617, 1.442695
    %v1621 = vpow.pop %v1620
    %v1622 = vadd.f32 %v1619, 1.0
    %v1623 = vadd.f32 %v1621, 1.0
    %v1624 = vrcp.pop %v1622
    %v1625 = vmul.f32 1.0, %v1624
    %v1626 = vrcp.pop %v1623
    %v1627 = vmul.f32 1.0, %v1626
    %v1628 = vtanh.pop %v1598
    %v1629 = vtanh.pop %v1602
    %v1630 = vxor.u32 %v1599, 2147483648
    %v1631 = vxor.u32 %v1603, 2147483648
    %v1632 = vmul.f32 %v1630, 1.442695
    %v1633 = vpow.pop %v1632
    %v1634 = vmul.f32 %v1631, 1.442695
    %v1635 = vpow.pop %v1634
    %v1636 = vadd.f32 %v1633, 1.0
    %v1637 = vadd.f32 %v1635, 1.0
    %v1638 = vrcp.pop %v1636
    %v1639 = vmul.f32 1.0, %v1638
    %v1640 = vrcp.pop %v1637
    %v1641 = vmul.f32 1.0, %v1640
    %v1642 = vmul.f32 %v1625, %v1494
    %v1643 = vmul.f32 %v1627, %v1495
    %v1644 = vmul.f32 %v1613, %v1628
    %v1645 = vmul.f32 %v1615, %v1629
    %v1646 = vadd.f32 %v1642, %v1644
    %v1647 = vadd.f32 %v1643, %v1645
    %v1648 = vtanh.pop %v1646
    %v1649 = vtanh.pop %v1647
    %v1650 = vmul.f32 %v1639, %v1648
    %v1651 = vmul.f32 %v1641, %v1649
    %v1652 = vpack.c.bf16 %v1651, %v1650
    %1653 = vst [vmem:[#allocation3 + $0x20] sm:$0xff] %v1652
    %v1654 = vld [vmem:[#allocation2 + $0x140] sm:$0xff]
    %v1655 = vld [vmem:[#allocation2 + $0x148] sm:$0xff]
    %v1656 = vld [vmem:[#allocation2 + $0x150] sm:$0xff]
    %v1657 = vld [vmem:[#allocation2 + $0x158] sm:$0xff]
    %v1658 = vld [vmem:[#allocation2 + $0x160] sm:$0xff]
    %v1659 = vld [vmem:[#allocation2 + $0x168] sm:$0xff]
    %v1660 = vld [vmem:[#allocation2 + $0x170] sm:$0xff]
    %v1661 = vld [vmem:[#allocation2 + $0x178] sm:$0xff]
    %1662 = vmatprep.subr.bf16.mxu0 %v839
    %1663 = vmatpush1.bf16.msra.mxu0 %v838
    %1664 = vmatprep.subr.bf16.mxu0 %v843
    %1665 = vmatpush1.bf16.msra.mxu0 %v842
    %1666 = vmatprep.subr.bf16.mxu0 %v847
    %1667 = vmatpush1.bf16.msra.mxu0 %v846
    %1668 = vmatprep.subr.bf16.mxu0 %v851
    %1669 = vmatpush1.bf16.msra.mxu0 %v850
    %1670 = vmatprep.subr.bf16.mxu0 %v855
    %1671 = vmatpush1.bf16.msra.mxu0 %v854
    %1672 = vmatprep.subr.bf16.mxu0 %v859
    %1673 = vmatpush1.bf16.msra.mxu0 %v858
    %1674 = vmatprep.subr.bf16.mxu0 %v863
    %1675 = vmatpush1.bf16.msra.mxu0 %v862
    %1676 = vmatprep.subr.bf16.mxu0 %v867
    %1677 = vmatpush1.bf16.msra.mxu0 %v866
    %1678 = vmatprep.subr.bf16.mxu0 0
    %1679 = vmatpush1.bf16.msra.mxu0 0
    %1680 = vmatprep.subr.bf16.mxu0 0
    %1681 = vmatpush1.bf16.msra.mxu0 0
    %1682 = vmatprep.subr.bf16.mxu0 0
    %1683 = vmatpush1.bf16.msra.mxu0 0
    %1684 = vmatprep.subr.bf16.mxu0 0
    %1685 = vmatpush1.bf16.msra.mxu0 0
    %1686 = vmatprep.subr.bf16.mxu0 0
    %1687 = vmatpush1.bf16.msra.mxu0 0
    %1688 = vmatprep.subr.bf16.mxu0 0
    %1689 = vmatpush1.bf16.msra.mxu0 0
    %1690 = vmatprep.subr.bf16.mxu0 0
    %1691 = vmatpush1.bf16.msra.mxu0 0
    %1692 = vmatprep.subr.bf16.mxu0 0
    %1693 = vmatpush1.bf16.msra.mxu0 0
    %1694 = vmatprep.mubr.bf16.mxu0 0
    %1695 = vmatmul.mubr.bf16.gmra.mrb[0].mxu0 %v1652
    %v1696 = vpop.f32.mrb[0].mxu0
    %v1697 = vadd.f32 0.0, %v1696
    %v1698 = vpop.f32.mrb[0].mxu0
    %v1699 = vadd.f32 0.0, %v1698
    %v1700 = vpop.f32.mrb[0].mxu0
    %v1701 = vadd.f32 0.0, %v1700
    %v1702 = vpop.f32.mrb[0].mxu0
    %v1703 = vadd.f32 0.0, %v1702
    %1704 = vdwg.mxu0
    %1705 = vmatprep.subr.bf16.mxu0 %v841
    %1706 = vmatpush1.bf16.msra.mxu0 %v840
    %1707 = vmatprep.subr.bf16.mxu0 %v845
    %1708 = vmatpush1.bf16.msra.mxu0 %v844
    %1709 = vmatprep.subr.bf16.mxu0 %v849
    %1710 = vmatpush1.bf16.msra.mxu0 %v848
    %1711 = vmatprep.subr.bf16.mxu0 %v853
    %1712 = vmatpush1.bf16.msra.mxu0 %v852
    %1713 = vmatprep.subr.bf16.mxu0 %v857
    %1714 = vmatpush1.bf16.msra.mxu0 %v856
    %1715 = vmatprep.subr.bf16.mxu0 %v861
    %1716 = vmatpush1.bf16.msra.mxu0 %v860
    %1717 = vmatprep.subr.bf16.mxu0 %v865
    %1718 = vmatpush1.bf16.msra.mxu0 %v864
    %1719 = vmatprep.subr.bf16.mxu0 %v869
    %1720 = vmatpush1.bf16.msra.mxu0 %v868
    %1721 = vmatprep.subr.bf16.mxu0 0
    %1722 = vmatpush1.bf16.msra.mxu0 0
    %1723 = vmatprep.subr.bf16.mxu0 0
    %1724 = vmatpush1.bf16.msra.mxu0 0
    %1725 = vmatprep.subr.bf16.mxu0 0
    %1726 = vmatpush1.bf16.msra.mxu0 0
    %1727 = vmatprep.subr.bf16.mxu0 0
    %1728 = vmatpush1.bf16.msra.mxu0 0
    %1729 = vmatprep.subr.bf16.mxu0 0
    %1730 = vmatpush1.bf16.msra.mxu0 0
    %1731 = vmatprep.subr.bf16.mxu0 0
    %1732 = vmatpush1.bf16.msra.mxu0 0
    %1733 = vmatprep.subr.bf16.mxu0 0
    %1734 = vmatpush1.bf16.msra.mxu0 0
    %1735 = vmatprep.subr.bf16.mxu0 0
    %1736 = vmatpush1.bf16.msra.mxu0 0
    %1737 = vmatprep.mubr.bf16.mxu0 0
    %1738 = vmatmul.mubr.bf16.gmra.mrb[0].mxu0 %v1652
    %v1739 = vpop.f32.mrb[0].mxu0
    %v1740 = vadd.f32 0.0, %v1739
    %v1741 = vpop.f32.mrb[0].mxu0
    %v1742 = vadd.f32 0.0, %v1741
    %v1743 = vpop.f32.mrb[0].mxu0
    %v1744 = vadd.f32 0.0, %v1743
    %v1745 = vpop.f32.mrb[0].mxu0
    %v1746 = vadd.f32 0.0, %v1745
    %1747 = vdwg.mxu0
    %v1748 = vadd.f32 %v1654, %v1697
    %v1749 = vadd.f32 %v1655, %v1699
    %v1750 = vadd.f32 %v1656, %v1740
    %v1751 = vadd.f32 %v1657, %v1742
    %v1752 = vadd.f32 %v1658, %v1701
    %v1753 = vadd.f32 %v1659, %v1703
    %v1754 = vadd.f32 %v1660, %v1744
    %v1755 = vadd.f32 %v1661, %v1746
    %v1756 = vxor.u32 %v1748, 2147483648
    %v1757 = vxor.u32 %v1752, 2147483648
    %v1758 = vmul.f32 %v1756, 1.442695
    %v1759 = vpow.pop %v1758
    %v1760 = vmul.f32 %v1757, 1.442695
    %v1761 = vpow.pop %v1760
    %v1762 = vadd.f32 %v1759, 1.0
    %v1763 = vadd.f32 %v1761, 1.0
    %v1764 = vrcp.pop %v1762
    %v1765 = vmul.f32 1.0, %v1764
    %v1766 = vrcp.pop %v1763
    %v1767 = vmul.f32 1.0, %v1766
    %v1768 = vxor.u32 %v1749, 2147483648
    %v1769 = vxor.u32 %v1753, 2147483648
    %v1770 = vmul.f32 %v1768, 1.442695
    %v1771 = vpow.pop %v1770
    %v1772 = vmul.f32 %v1769, 1.442695
    %v1773 = vpow.pop %v1772
    %v1774 = vadd.f32 %v1771, 1.0
    %v1775 = vadd.f32 %v1773, 1.0
    %v1776 = vrcp.pop %v1774
    %v1777 = vmul.f32 1.0, %v1776
    %v1778 = vrcp.pop %v1775
    %v1779 = vmul.f32 1.0, %v1778
    %v1780 = vtanh.pop %v1750
    %v1781 = vtanh.pop %v1754
    %v1782 = vxor.u32 %v1751, 2147483648
    %v1783 = vxor.u32 %v1755, 2147483648
    %v1784 = vmul.f32 %v1782, 1.442695
    %v1785 = vpow.pop %v1784
    %v1786 = vmul.f32 %v1783, 1.442695
    %v1787 = vpow.pop %v1786
    %v1788 = vadd.f32 %v1785, 1.0
    %v1789 = vadd.f32 %v1787, 1.0
    %v1790 = vrcp.pop %v1788
    %v1791 = vmul.f32 1.0, %v1790
    %v1792 = vrcp.pop %v1789
    %v1793 = vmul.f32 1.0, %v1792
    %v1794 = vmul.f32 %v1777, %v1646
    %v1795 = vmul.f32 %v1779, %v1647
    %v1796 = vmul.f32 %v1765, %v1780
    %v1797 = vmul.f32 %v1767, %v1781
    %v1798 = vadd.f32 %v1794, %v1796
    %v1799 = vadd.f32 %v1795, %v1797
    %v1800 = vtanh.pop %v1798
    %v1801 = vtanh.pop %v1799
    %v1802 = vmul.f32 %v1791, %v1800
    %v1803 = vmul.f32 %v1793, %v1801
    %v1804 = vpack.c.bf16 %v1803, %v1802
    %1805 = vst [vmem:[#allocation3 + $0x28] sm:$0xff] %v1804
    %v1806 = vld [vmem:[#allocation2 + $0x180] sm:$0xff]
    %v1807 = vld [vmem:[#allocation2 + $0x188] sm:$0xff]
    %v1808 = vld [vmem:[#allocation2 + $0x190] sm:$0xff]
    %v1809 = vld [vmem:[#allocation2 + $0x198] sm:$0xff]
    %v1810 = vld [vmem:[#allocation2 + $0x1a0] sm:$0xff]
    %v1811 = vld [vmem:[#allocation2 + $0x1a8] sm:$0xff]
    %v1812 = vld [vmem:[#allocation2 + $0x1b0] sm:$0xff]
    %v1813 = vld [vmem:[#allocation2 + $0x1b8] sm:$0xff]
    %1814 = vmatprep.subr.bf16.mxu0 %v839
    %1815 = vmatpush1.bf16.msra.mxu0 %v838
    %1816 = vmatprep.subr.bf16.mxu0 %v843
    %1817 = vmatpush1.bf16.msra.mxu0 %v842
    %1818 = vmatprep.subr.bf16.mxu0 %v847
    %1819 = vmatpush1.bf16.msra.mxu0 %v846
    %1820 = vmatprep.subr.bf16.mxu0 %v851
    %1821 = vmatpush1.bf16.msra.mxu0 %v850
    %1822 = vmatprep.subr.bf16.mxu0 %v855
    %1823 = vmatpush1.bf16.msra.mxu0 %v854
    %1824 = vmatprep.subr.bf16.mxu0 %v859
    %1825 = vmatpush1.bf16.msra.mxu0 %v858
    %1826 = vmatprep.subr.bf16.mxu0 %v863
    %1827 = vmatpush1.bf16.msra.mxu0 %v862
    %1828 = vmatprep.subr.bf16.mxu0 %v867
    %1829 = vmatpush1.bf16.msra.mxu0 %v866
    %1830 = vmatprep.subr.bf16.mxu0 0
    %1831 = vmatpush1.bf16.msra.mxu0 0
    %1832 = vmatprep.subr.bf16.mxu0 0
    %1833 = vmatpush1.bf16.msra.mxu0 0
    %1834 = vmatprep.subr.bf16.mxu0 0
    %1835 = vmatpush1.bf16.msra.mxu0 0
    %1836 = vmatprep.subr.bf16.mxu0 0
    %1837 = vmatpush1.bf16.msra.mxu0 0
    %1838 = vmatprep.subr.bf16.mxu0 0
    %1839 = vmatpush1.bf16.msra.mxu0 0
    %1840 = vmatprep.subr.bf16.mxu0 0
    %1841 = vmatpush1.bf16.msra.mxu0 0
    %1842 = vmatprep.subr.bf16.mxu0 0
    %1843 = vmatpush1.bf16.msra.mxu0 0
    %1844 = vmatprep.subr.bf16.mxu0 0
    %1845 = vmatpush1.bf16.msra.mxu0 0
    %1846 = vmatprep.mubr.bf16.mxu0 0
    %1847 = vmatmul.mubr.bf16.gmra.mrb[0].mxu0 %v1804
    %v1848 = vpop.f32.mrb[0].mxu0
    %v1849 = vadd.f32 0.0, %v1848
    %v1850 = vpop.f32.mrb[0].mxu0
    %v1851 = vadd.f32 0.0, %v1850
    %v1852 = vpop.f32.mrb[0].mxu0
    %v1853 = vadd.f32 0.0, %v1852
    %v1854 = vpop.f32.mrb[0].mxu0
    %v1855 = vadd.f32 0.0, %v1854
    %1856 = vdwg.mxu0
    %1857 = vmatprep.subr.bf16.mxu0 %v841
    %1858 = vmatpush1.bf16.msra.mxu0 %v840
    %1859 = vmatprep.subr.bf16.mxu0 %v845
    %1860 = vmatpush1.bf16.msra.mxu0 %v844
    %1861 = vmatprep.subr.bf16.mxu0 %v849
    %1862 = vmatpush1.bf16.msra.mxu0 %v848
    %1863 = vmatprep.subr.bf16.mxu0 %v853
    %1864 = vmatpush1.bf16.msra.mxu0 %v852
    %1865 = vmatprep.subr.bf16.mxu0 %v857
    %1866 = vmatpush1.bf16.msra.mxu0 %v856
    %1867 = vmatprep.subr.bf16.mxu0 %v861
    %1868 = vmatpush1.bf16.msra.mxu0 %v860
    %1869 = vmatprep.subr.bf16.mxu0 %v865
    %1870 = vmatpush1.bf16.msra.mxu0 %v864
    %1871 = vmatprep.subr.bf16.mxu0 %v869
    %1872 = vmatpush1.bf16.msra.mxu0 %v868
    %1873 = vmatprep.subr.bf16.mxu0 0
    %1874 = vmatpush1.bf16.msra.mxu0 0
    %1875 = vmatprep.subr.bf16.mxu0 0
    %1876 = vmatpush1.bf16.msra.mxu0 0
    %1877 = vmatprep.subr.bf16.mxu0 0
    %1878 = vmatpush1.bf16.msra.mxu0 0
    %1879 = vmatprep.subr.bf16.mxu0 0
    %1880 = vmatpush1.bf16.msra.mxu0 0
    %1881 = vmatprep.subr.bf16.mxu0 0
    %1882 = vmatpush1.bf16.msra.mxu0 0
    %1883 = vmatprep.subr.bf16.mxu0 0
    %1884 = vmatpush1.bf16.msra.mxu0 0
    %1885 = vmatprep.subr.bf16.mxu0 0
    %1886 = vmatpush1.bf16.msra.mxu0 0
    %1887 = vmatprep.subr.bf16.mxu0 0
    %1888 = vmatpush1.bf16.msra.mxu0 0
    %1889 = vmatprep.mubr.bf16.mxu0 0
    %1890 = vmatmul.mubr.bf16.gmra.mrb[0].mxu0 %v1804
    %v1891 = vpop.f32.mrb[0].mxu0
    %v1892 = vadd.f32 0.0, %v1891
    %v1893 = vpop.f32.mrb[0].mxu0
    %v1894 = vadd.f32 0.0, %v1893
    %v1895 = vpop.f32.mrb[0].mxu0
    %v1896 = vadd.f32 0.0, %v1895
    %v1897 = vpop.f32.mrb[0].mxu0
    %v1898 = vadd.f32 0.0, %v1897
    %1899 = vdwg.mxu0
    %v1900 = vadd.f32 %v1806, %v1849
    %v1901 = vadd.f32 %v1807, %v1851
    %v1902 = vadd.f32 %v1808, %v1892
    %v1903 = vadd.f32 %v1809, %v1894
    %v1904 = vadd.f32 %v1810, %v1853
    %v1905 = vadd.f32 %v1811, %v1855
    %v1906 = vadd.f32 %v1812, %v1896
    %v1907 = vadd.f32 %v1813, %v1898
    %v1908 = vxor.u32 %v1900, 2147483648
    %v1909 = vxor.u32 %v1904, 2147483648
    %v1910 = vmul.f32 %v1908, 1.442695
    %v1911 = vpow.pop %v1910
    %v1912 = vmul.f32 %v1909, 1.442695
    %v1913 = vpow.pop %v1912
    %v1914 = vadd.f32 %v1911, 1.0
    %v1915 = vadd.f32 %v1913, 1.0
    %v1916 = vrcp.pop %v1914
    %v1917 = vmul.f32 1.0, %v1916
    %v1918 = vrcp.pop %v1915
    %v1919 = vmul.f32 1.0, %v1918
    %v1920 = vxor.u32 %v1901, 2147483648
    %v1921 = vxor.u32 %v1905, 2147483648
    %v1922 = vmul.f32 %v1920, 1.442695
    %v1923 = vpow.pop %v1922
    %v1924 = vmul.f32 %v1921, 1.442695
    %v1925 = vpow.pop %v1924
    %v1926 = vadd.f32 %v1923, 1.0
    %v1927 = vadd.f32 %v1925, 1.0
    %v1928 = vrcp.pop %v1926
    %v1929 = vmul.f32 1.0, %v1928
    %v1930 = vrcp.pop %v1927
    %v1931 = vmul.f32 1.0, %v1930
    %v1932 = vtanh.pop %v1902
    %v1933 = vtanh.pop %v1906
    %v1934 = vxor.u32 %v1903, 2147483648
    %v1935 = vxor.u32 %v1907, 2147483648
    %v1936 = vmul.f32 %v1934, 1.442695
    %v1937 = vpow.pop %v1936
    %v1938 = vmul.f32 %v1935, 1.442695
    %v1939 = vpow.pop %v1938
    %v1940 = vadd.f32 %v1937, 1.0
    %v1941 = vadd.f32 %v1939, 1.0
    %v1942 = vrcp.pop %v1940
    %v1943 = vmul.f32 1.0, %v1942
    %v1944 = vrcp.pop %v1941
    %v1945 = vmul.f32 1.0, %v1944
    %v1946 = vmul.f32 %v1929, %v1798
    %v1947 = vmul.f32 %v1931, %v1799
    %v1948 = vmul.f32 %v1917, %v1932
    %v1949 = vmul.f32 %v1919, %v1933
    %v1950 = vadd.f32 %v1946, %v1948
    %v1951 = vadd.f32 %v1947, %v1949
    %v1952 = vtanh.pop %v1950
    %v1953 = vtanh.pop %v1951
    %v1954 = vmul.f32 %v1943, %v1952
    %v1955 = vmul.f32 %v1945, %v1953
    %v1956 = vpack.c.bf16 %v1955, %v1954
    %1957 = vst [vmem:[#allocation3 + $0x30] sm:$0xff] %v1956
    %v1958 = vld [vmem:[#allocation2 + $0x1c0] sm:$0xff]
    %v1959 = vld [vmem:[#allocation2 + $0x1c8] sm:$0xff]
    %v1960 = vld [vmem:[#allocation2 + $0x1d0] sm:$0xff]
    %v1961 = vld [vmem:[#allocation2 + $0x1d8] sm:$0xff]
    %v1962 = vld [vmem:[#allocation2 + $0x1e0] sm:$0xff]
    %v1963 = vld [vmem:[#allocation2 + $0x1e8] sm:$0xff]
    %v1964 = vld [vmem:[#allocation2 + $0x1f0] sm:$0xff]
    %v1965 = vld [vmem:[#allocation2 + $0x1f8] sm:$0xff]
    %1966 = vmatprep.subr.bf16.mxu0 %v839
    %1967 = vmatpush1.bf16.msra.mxu0 %v838
    %1968 = vmatprep.subr.bf16.mxu0 %v843
    %1969 = vmatpush1.bf16.msra.mxu0 %v842
    %1970 = vmatprep.subr.bf16.mxu0 %v847
    %1971 = vmatpush1.bf16.msra.mxu0 %v846
    %1972 = vmatprep.subr.bf16.mxu0 %v851
    %1973 = vmatpush1.bf16.msra.mxu0 %v850
    %1974 = vmatprep.subr.bf16.mxu0 %v855
    %1975 = vmatpush1.bf16.msra.mxu0 %v854
    %1976 = vmatprep.subr.bf16.mxu0 %v859
    %1977 = vmatpush1.bf16.msra.mxu0 %v858
    %1978 = vmatprep.subr.bf16.mxu0 %v863
    %1979 = vmatpush1.bf16.msra.mxu0 %v862
    %1980 = vmatprep.subr.bf16.mxu0 %v867
    %1981 = vmatpush1.bf16.msra.mxu0 %v866
    %1982 = vmatprep.subr.bf16.mxu0 0
    %1983 = vmatpush1.bf16.msra.mxu0 0
    %1984 = vmatprep.subr.bf16.mxu0 0
    %1985 = vmatpush1.bf16.msra.mxu0 0
    %1986 = vmatprep.subr.bf16.mxu0 0
    %1987 = vmatpush1.bf16.msra.mxu0 0
    %1988 = vmatprep.subr.bf16.mxu0 0
    %1989 = vmatpush1.bf16.msra.mxu0 0
    %1990 = vmatprep.subr.bf16.mxu0 0
    %1991 = vmatpush1.bf16.msra.mxu0 0
    %1992 = vmatprep.subr.bf16.mxu0 0
    %1993 = vmatpush1.bf16.msra.mxu0 0
    %1994 = vmatprep.subr.bf16.mxu0 0
    %1995 = vmatpush1.bf16.msra.mxu0 0
    %1996 = vmatprep.subr.bf16.mxu0 0
    %1997 = vmatpush1.bf16.msra.mxu0 0
    %1998 = vmatprep.mubr.bf16.mxu0 0
    %1999 = vmatmul.mubr.bf16.gmra.mrb[0].mxu0 %v1956
    %v2000 = vpop.f32.mrb[0].mxu0
    %v2001 = vadd.f32 0.0, %v2000
    %v2002 = vpop.f32.mrb[0].mxu0
    %v2003 = vadd.f32 0.0, %v2002
    %v2004 = vpop.f32.mrb[0].mxu0
    %v2005 = vadd.f32 0.0, %v2004
    %v2006 = vpop.f32.mrb[0].mxu0
    %v2007 = vadd.f32 0.0, %v2006
    %2008 = vdwg.mxu0
    %2009 = vmatprep.subr.bf16.mxu0 %v841
    %2010 = vmatpush1.bf16.msra.mxu0 %v840
    %2011 = vmatprep.subr.bf16.mxu0 %v845
    %2012 = vmatpush1.bf16.msra.mxu0 %v844
    %2013 = vmatprep.subr.bf16.mxu0 %v849
    %2014 = vmatpush1.bf16.msra.mxu0 %v848
    %2015 = vmatprep.subr.bf16.mxu0 %v853
    %2016 = vmatpush1.bf16.msra.mxu0 %v852
    %2017 = vmatprep.subr.bf16.mxu0 %v857
    %2018 = vmatpush1.bf16.msra.mxu0 %v856
    %2019 = vmatprep.subr.bf16.mxu0 %v861
    %2020 = vmatpush1.bf16.msra.mxu0 %v860
    %2021 = vmatprep.subr.bf16.mxu0 %v865
    %2022 = vmatpush1.bf16.msra.mxu0 %v864
    %2023 = vmatprep.subr.bf16.mxu0 %v869
    %2024 = vmatpush1.bf16.msra.mxu0 %v868
    %2025 = vmatprep.subr.bf16.mxu0 0
    %2026 = vmatpush1.bf16.msra.mxu0 0
    %2027 = vmatprep.subr.bf16.mxu0 0
    %2028 = vmatpush1.bf16.msra.mxu0 0
    %2029 = vmatprep.subr.bf16.mxu0 0
    %2030 = vmatpush1.bf16.msra.mxu0 0
    %2031 = vmatprep.subr.bf16.mxu0 0
    %2032 = vmatpush1.bf16.msra.mxu0 0
    %2033 = vmatprep.subr.bf16.mxu0 0
    %2034 = vmatpush1.bf16.msra.mxu0 0
    %2035 = vmatprep.subr.bf16.mxu0 0
    %2036 = vmatpush1.bf16.msra.mxu0 0
    %2037 = vmatprep.subr.bf16.mxu0 0
    %2038 = vmatpush1.bf16.msra.mxu0 0
    %2039 = vmatprep.subr.bf16.mxu0 0
    %2040 = vmatpush1.bf16.msra.mxu0 0
    %2041 = vmatprep.mubr.bf16.mxu0 0
    %2042 = vmatmul.mubr.bf16.gmra.mrb[0].mxu0 %v1956
    %v2043 = vpop.f32.mrb[0].mxu0
    %v2044 = vadd.f32 0.0, %v2043
    %v2045 = vpop.f32.mrb[0].mxu0
    %v2046 = vadd.f32 0.0, %v2045
    %v2047 = vpop.f32.mrb[0].mxu0
    %v2048 = vadd.f32 0.0, %v2047
    %v2049 = vpop.f32.mrb[0].mxu0
    %v2050 = vadd.f32 0.0, %v2049
    %2051 = vdwg.mxu0
    %v2052 = vadd.f32 %v1958, %v2001
    %v2053 = vadd.f32 %v1959, %v2003
    %v2054 = vadd.f32 %v1960, %v2044
    %v2055 = vadd.f32 %v1961, %v2046
    %v2056 = vadd.f32 %v1962, %v2005
    %v2057 = vadd.f32 %v1963, %v2007
    %v2058 = vadd.f32 %v1964, %v2048
    %v2059 = vadd.f32 %v1965, %v2050
    %v2060 = vxor.u32 %v2052, 2147483648
    %v2061 = vxor.u32 %v2056, 2147483648
    %v2062 = vmul.f32 %v2060, 1.442695
    %v2063 = vpow.pop %v2062
    %v2064 = vmul.f32 %v2061, 1.442695
    %v2065 = vpow.pop %v2064
    %v2066 = vadd.f32 %v2063, 1.0
    %v2067 = vadd.f32 %v2065, 1.0
    %v2068 = vrcp.pop %v2066
    %v2069 = vmul.f32 1.0, %v2068
    %v2070 = vrcp.pop %v2067
    %v2071 = vmul.f32 1.0, %v2070
    %v2072 = vxor.u32 %v2053, 2147483648
    %v2073 = vxor.u32 %v2057, 2147483648
    %v2074 = vmul.f32 %v2072, 1.442695
    %v2075 = vpow.pop %v2074
    %v2076 = vmul.f32 %v2073, 1.442695
    %v2077 = vpow.pop %v2076
    %v2078 = vadd.f32 %v2075, 1.0
    %v2079 = vadd.f32 %v2077, 1.0
    %v2080 = vrcp.pop %v2078
    %v2081 = vmul.f32 1.0, %v2080
    %v2082 = vrcp.pop %v2079
    %v2083 = vmul.f32 1.0, %v2082
    %v2084 = vtanh.pop %v2054
    %v2085 = vtanh.pop %v2058
    %v2086 = vxor.u32 %v2055, 2147483648
    %v2087 = vxor.u32 %v2059, 2147483648
    %v2088 = vmul.f32 %v2086, 1.442695
    %v2089 = vpow.pop %v2088
    %v2090 = vmul.f32 %v2087, 1.442695
    %v2091 = vpow.pop %v2090
    %v2092 = vadd.f32 %v2089, 1.0
    %v2093 = vadd.f32 %v2091, 1.0
    %v2094 = vrcp.pop %v2092
    %v2095 = vmul.f32 1.0, %v2094
    %v2096 = vrcp.pop %v2093
    %v2097 = vmul.f32 1.0, %v2096
    %v2098 = vmul.f32 %v2081, %v1950
    %v2099 = vmul.f32 %v2083, %v1951
    %v2100 = vmul.f32 %v2069, %v2084
    %v2101 = vmul.f32 %v2071, %v2085
    %v2102 = vadd.f32 %v2098, %v2100
    %v2103 = vadd.f32 %v2099, %v2101
    %v2104 = vtanh.pop %v2102
    %v2105 = vtanh.pop %v2103
    %v2106 = vmul.f32 %v2095, %v2104
    %v2107 = vmul.f32 %v2097, %v2105
    %v2108 = vpack.c.bf16 %v2107, %v2106
    %2109 = vst [vmem:[#allocation3 + $0x38] sm:$0xff] %v2108
    %v2110 = vld [vmem:[#allocation3] sm:$0xff]
    %v2111 = vld [vmem:[#allocation3 + $0x8] sm:$0xff]
    %v2112 = vld [vmem:[#allocation3 + $0x10] sm:$0xff]
    %v2113 = vld [vmem:[#allocation3 + $0x18] sm:$0xff]
    %v2114 = vld [vmem:[#allocation3 + $0x20] sm:$0xff]
    %v2115 = vld [vmem:[#allocation3 + $0x28] sm:$0xff]
    %v2116 = vld [vmem:[#allocation3 + $0x30] sm:$0xff]
    %v2117 = vld [vmem:[#allocation3 + $0x38] sm:$0xff]
    %v2118 = vld [vmem:[#allocation9] sm:$0xff]
    %v2119 = vld [vmem:[#allocation9 + $0x8] sm:$0xff]
    %v2120 = vld [vmem:[#allocation9 + $0x10] sm:$0xff]
    %v2121 = vld [vmem:[#allocation9 + $0x18] sm:$0xff]
    %v2122 = vld [vmem:[#allocation9 + $0x20] sm:$0xff]
    %v2123 = vld [vmem:[#allocation9 + $0x28] sm:$0xff]
    %v2124 = vld [vmem:[#allocation9 + $0x30] sm:$0xff]
    %v2125 = vld [vmem:[#allocation9 + $0x38] sm:$0xff]
    %v2126 = vld [vmem:[#allocation9 + $0x40] sm:$0xff]
    %v2127 = vld [vmem:[#allocation9 + $0x48] sm:$0xff]
    %v2128 = vld [vmem:[#allocation9 + $0x50] sm:$0xff]
    %v2129 = vld [vmem:[#allocation9 + $0x58] sm:$0xff]
    %v2130 = vld [vmem:[#allocation9 + $0x60] sm:$0xff]
    %v2131 = vld [vmem:[#allocation9 + $0x68] sm:$0xff]
    %v2132 = vld [vmem:[#allocation9 + $0x70] sm:$0xff]
    %v2133 = vld [vmem:[#allocation9 + $0x78] sm:$0xff]
    %v2134 = vld [vmem:[#allocation9 + $0x80] sm:$0xff]
    %v2135 = vld [vmem:[#allocation9 + $0x88] sm:$0xff]
    %v2136 = vld [vmem:[#allocation9 + $0x90] sm:$0xff]
    %v2137 = vld [vmem:[#allocation9 + $0x98] sm:$0xff]
    %v2138 = vld [vmem:[#allocation9 + $0xa0] sm:$0xff]
    %v2139 = vld [vmem:[#allocation9 + $0xa8] sm:$0xff]
    %v2140 = vld [vmem:[#allocation9 + $0xb0] sm:$0xff]
    %v2141 = vld [vmem:[#allocation9 + $0xb8] sm:$0xff]
    %v2142 = vld [vmem:[#allocation9 + $0xc0] sm:$0xff]
    %v2143 = vld [vmem:[#allocation9 + $0xc8] sm:$0xff]
    %v2144 = vld [vmem:[#allocation9 + $0xd0] sm:$0xff]
    %v2145 = vld [vmem:[#allocation9 + $0xd8] sm:$0xff]
    %v2146 = vld [vmem:[#allocation9 + $0xe0] sm:$0xff]
    %v2147 = vld [vmem:[#allocation9 + $0xe8] sm:$0xff]
    %v2148 = vld [vmem:[#allocation9 + $0xf0] sm:$0xff]
    %v2149 = vld [vmem:[#allocation9 + $0xf8] sm:$0xff]
    %v2150 = vld [vmem:[#allocation12] sm:$0xf]
    %v2152 = vlaneseq
    %v2153 = vshrl.u32 %v2152, 7
    %v2154 = vsub.s32 0, %v2153
    %v2155 = vrot.slane %v2150, %v2154
    %v2156 = vlaneseq
    %v2157 = vshrl.u32 %v2156, 7
    %v2158 = vsub.s32 1, %v2157
    %v2159 = vrot.slane %v2150, %v2158
    %v2160 = vlaneseq
    %v2161 = vshrl.u32 %v2160, 7
    %v2162 = vsub.s32 2, %v2161
    %v2163 = vrot.slane %v2150, %v2162
    %v2164 = vlaneseq
    %v2165 = vshrl.u32 %v2164, 7
    %v2166 = vsub.s32 3, %v2165
    %v2167 = vrot.slane %v2150, %v2166
    %v2204 = vunpack.c.l.b16 %v2118
    %v2205 = vunpack.c.h.b16 %v2118
    %v2206 = vunpack.c.l.b16 %v2119
    %v2207 = vunpack.c.h.b16 %v2119
    %v2208 = vunpack.c.l.b16 %v2120
    %v2209 = vunpack.c.h.b16 %v2120
    %v2210 = vunpack.c.l.b16 %v2121
    %v2211 = vunpack.c.h.b16 %v2121
    %v2212 = vunpack.c.l.b16 %v2122
    %v2213 = vunpack.c.h.b16 %v2122
    %v2214 = vunpack.c.l.b16 %v2123
    %v2215 = vunpack.c.h.b16 %v2123
    %v2216 = vunpack.c.l.b16 %v2124
    %v2217 = vunpack.c.h.b16 %v2124
    %v2218 = vunpack.c.l.b16 %v2125
    %v2219 = vunpack.c.h.b16 %v2125
    %v2220 = vunpack.c.l.b16 %v2126
    %v2221 = vunpack.c.h.b16 %v2126
    %v2222 = vunpack.c.l.b16 %v2127
    %v2223 = vunpack.c.h.b16 %v2127
    %v2224 = vunpack.c.l.b16 %v2128
    %v2225 = vunpack.c.h.b16 %v2128
    %v2226 = vunpack.c.l.b16 %v2129
    %v2227 = vunpack.c.h.b16 %v2129
    %v2228 = vunpack.c.l.b16 %v2130
    %v2229 = vunpack.c.h.b16 %v2130
    %v2230 = vunpack.c.l.b16 %v2131
    %v2231 = vunpack.c.h.b16 %v2131
    %v2232 = vunpack.c.l.b16 %v2132
    %v2233 = vunpack.c.h.b16 %v2132
    %v2234 = vunpack.c.l.b16 %v2133
    %v2235 = vunpack.c.h.b16 %v2133
    %v2236 = vunpack.c.l.b16 %v2134
    %v2237 = vunpack.c.h.b16 %v2134
    %v2238 = vunpack.c.l.b16 %v2135
    %v2239 = vunpack.c.h.b16 %v2135
    %v2240 = vunpack.c.l.b16 %v2136
    %v2241 = vunpack.c.h.b16 %v2136
    %v2242 = vunpack.c.l.b16 %v2137
    %v2243 = vunpack.c.h.b16 %v2137
    %v2244 = vunpack.c.l.b16 %v2138
    %v2245 = vunpack.c.h.b16 %v2138
    %v2246 = vunpack.c.l.b16 %v2139
    %v2247 = vunpack.c.h.b16 %v2139
    %v2248 = vunpack.c.l.b16 %v2140
    %v2249 = vunpack.c.h.b16 %v2140
    %v2250 = vunpack.c.l.b16 %v2141
    %v2251 = vunpack.c.h.b16 %v2141
    %v2252 = vunpack.c.l.b16 %v2142
    %v2253 = vunpack.c.h.b16 %v2142
    %v2254 = vunpack.c.l.b16 %v2143
    %v2255 = vunpack.c.h.b16 %v2143
    %v2256 = vunpack.c.l.b16 %v2144
    %v2257 = vunpack.c.h.b16 %v2144
    %v2258 = vunpack.c.l.b16 %v2145
    %v2259 = vunpack.c.h.b16 %v2145
    %v2260 = vunpack.c.l.b16 %v2146
    %v2261 = vunpack.c.h.b16 %v2146
    %v2262 = vunpack.c.l.b16 %v2147
    %v2263 = vunpack.c.h.b16 %v2147
    %v2264 = vunpack.c.l.b16 %v2148
    %v2265 = vunpack.c.h.b16 %v2148
    %v2266 = vunpack.c.l.b16 %v2149
    %v2267 = vunpack.c.h.b16 %v2149
    %v2268 = vpack.c.b16 %v2208, %v2204
    %v2269 = vpack.c.b16 %v2209, %v2205
    %v2270 = vpack.c.b16 %v2210, %v2206
    %v2271 = vpack.c.b16 %v2211, %v2207
    %v2272 = vpack.c.b16 %v2216, %v2212
    %v2273 = vpack.c.b16 %v2217, %v2213
    %v2274 = vpack.c.b16 %v2218, %v2214
    %v2275 = vpack.c.b16 %v2219, %v2215
    %v2276 = vpack.c.b16 %v2224, %v2220
    %v2277 = vpack.c.b16 %v2225, %v2221
    %v2278 = vpack.c.b16 %v2226, %v2222
    %v2279 = vpack.c.b16 %v2227, %v2223
    %v2280 = vpack.c.b16 %v2232, %v2228
    %v2281 = vpack.c.b16 %v2233, %v2229
    %v2282 = vpack.c.b16 %v2234, %v2230
    %v2283 = vpack.c.b16 %v2235, %v2231
    %v2284 = vpack.c.b16 %v2240, %v2236
    %v2285 = vpack.c.b16 %v2241, %v2237
    %v2286 = vpack.c.b16 %v2242, %v2238
    %v2287 = vpack.c.b16 %v2243, %v2239
    %v2288 = vpack.c.b16 %v2248, %v2244
    %v2289 = vpack.c.b16 %v2249, %v2245
    %v2290 = vpack.c.b16 %v2250, %v2246
    %v2291 = vpack.c.b16 %v2251, %v2247
    %v2292 = vpack.c.b16 %v2256, %v2252
    %v2293 = vpack.c.b16 %v2257, %v2253
    %v2294 = vpack.c.b16 %v2258, %v2254
    %v2295 = vpack.c.b16 %v2259, %v2255
    %v2296 = vpack.c.b16 %v2264, %v2260
    %v2297 = vpack.c.b16 %v2265, %v2261
    %v2298 = vpack.c.b16 %v2266, %v2262
    %v2299 = vpack.c.b16 %v2267, %v2263
    %2332 = vmatprep.subr.bf16.mxu0 %v2269
    %2333 = vmatpush1.bf16.msra.mxu0 %v2268
    %2334 = vmatprep.subr.bf16.mxu0 %v2273
    %2335 = vmatpush1.bf16.msra.mxu0 %v2272
    %2336 = vmatprep.subr.bf16.mxu0 %v2277
    %2337 = vmatpush1.bf16.msra.mxu0 %v2276
    %2338 = vmatprep.subr.bf16.mxu0 %v2281
    %2339 = vmatpush1.bf16.msra.mxu0 %v2280
    %2340 = vmatprep.subr.bf16.mxu0 %v2285
    %2341 = vmatpush1.bf16.msra.mxu0 %v2284
    %2342 = vmatprep.subr.bf16.mxu0 %v2289
    %2343 = vmatpush1.bf16.msra.mxu0 %v2288
    %2344 = vmatprep.subr.bf16.mxu0 %v2293
    %2345 = vmatpush1.bf16.msra.mxu0 %v2292
    %2346 = vmatprep.subr.bf16.mxu0 %v2297
    %2347 = vmatpush1.bf16.msra.mxu0 %v2296
    %2348 = vmatprep.subr.bf16.mxu0 0
    %2349 = vmatpush1.bf16.msra.mxu0 0
    %2350 = vmatprep.subr.bf16.mxu0 0
    %2351 = vmatpush1.bf16.msra.mxu0 0
    %2352 = vmatprep.subr.bf16.mxu0 0
    %2353 = vmatpush1.bf16.msra.mxu0 0
    %2354 = vmatprep.subr.bf16.mxu0 0
    %2355 = vmatpush1.bf16.msra.mxu0 0
    %2356 = vmatprep.subr.bf16.mxu0 0
    %2357 = vmatpush1.bf16.msra.mxu0 0
    %2358 = vmatprep.subr.bf16.mxu0 0
    %2359 = vmatpush1.bf16.msra.mxu0 0
    %2360 = vmatprep.subr.bf16.mxu0 0
    %2361 = vmatpush1.bf16.msra.mxu0 0
    %2362 = vmatprep.subr.bf16.mxu0 0
    %2363 = vmatpush1.bf16.msra.mxu0 0
    %2364 = vmatprep.mubr.bf16.mxu0 0
    %2365 = vmatmul.mubr.bf16.gmra.mrb[0].mxu0 %v2110
    %v2366 = vpop.f32.mrb[0].mxu0
    %v2367 = vadd.f32 %v2155, %v2366
    %v2368 = vpop.f32.mrb[0].mxu0
    %v2369 = vadd.f32 %v2159, %v2368
    %v2370 = vpop.f32.mrb[0].mxu0
    %v2371 = vadd.f32 %v2155, %v2370
    %v2372 = vpop.f32.mrb[0].mxu0
    %v2373 = vadd.f32 %v2159, %v2372
    %2374 = vmatprep.mubr.bf16.mxu0 0
    %2375 = vmatmul.mubr.bf16.gmra.mrb[0].mxu0 %v2111
    %v2376 = vpop.f32.mrb[0].mxu0
    %v2377 = vadd.f32 %v2155, %v2376
    %v2378 = vpop.f32.mrb[0].mxu0
    %v2379 = vadd.f32 %v2159, %v2378
    %v2380 = vpop.f32.mrb[0].mxu0
    %v2381 = vadd.f32 %v2155, %v2380
    %v2382 = vpop.f32.mrb[0].mxu0
    %v2383 = vadd.f32 %v2159, %v2382
    %2384 = vmatprep.mubr.bf16.mxu0 0
    %2385 = vmatmul.mubr.bf16.gmra.mrb[0].mxu0 %v2112
    %v2386 = vpop.f32.mrb[0].mxu0
    %v2387 = vadd.f32 %v2155, %v2386
    %v2388 = vpop.f32.mrb[0].mxu0
    %v2389 = vadd.f32 %v2159, %v2388
    %v2390 = vpop.f32.mrb[0].mxu0
    %v2391 = vadd.f32 %v2155, %v2390
    %v2392 = vpop.f32.mrb[0].mxu0
    %v2393 = vadd.f32 %v2159, %v2392
    %2394 = vmatprep.mubr.bf16.mxu0 0
    %2395 = vmatmul.mubr.bf16.gmra.mrb[0].mxu0 %v2113
    %v2396 = vpop.f32.mrb[0].mxu0
    %v2397 = vadd.f32 %v2155, %v2396
    %v2398 = vpop.f32.mrb[0].mxu0
    %v2399 = vadd.f32 %v2159, %v2398
    %v2400 = vpop.f32.mrb[0].mxu0
    %v2401 = vadd.f32 %v2155, %v2400
    %v2402 = vpop.f32.mrb[0].mxu0
    %v2403 = vadd.f32 %v2159, %v2402
    %2404 = vmatprep.mubr.bf16.mxu0 0
    %2405 = vmatmul.mubr.bf16.gmra.mrb[0].mxu0 %v2114
    %v2406 = vpop.f32.mrb[0].mxu0
    %v2407 = vadd.f32 %v2155, %v2406
    %v2408 = vpop.f32.mrb[0].mxu0
    %v2409 = vadd.f32 %v2159, %v2408
    %v2410 = vpop.f32.mrb[0].mxu0
    %v2411 = vadd.f32 %v2155, %v2410
    %v2412 = vpop.f32.mrb[0].mxu0
    %v2413 = vadd.f32 %v2159, %v2412
    %2414 = vmatprep.mubr.bf16.mxu0 0
    %2415 = vmatmul.mubr.bf16.gmra.mrb[0].mxu0 %v2115
    %v2416 = vpop.f32.mrb[0].mxu0
    %v2417 = vadd.f32 %v2155, %v2416
    %v2418 = vpop.f32.mrb[0].mxu0
    %v2419 = vadd.f32 %v2159, %v2418
    %v2420 = vpop.f32.mrb[0].mxu0
    %v2421 = vadd.f32 %v2155, %v2420
    %v2422 = vpop.f32.mrb[0].mxu0
    %v2423 = vadd.f32 %v2159, %v2422
    %2424 = vmatprep.mubr.bf16.mxu0 0
    %2425 = vmatmul.mubr.bf16.gmra.mrb[0].mxu0 %v2116
    %v2426 = vpop.f32.mrb[0].mxu0
    %v2427 = vadd.f32 %v2155, %v2426
    %v2428 = vpop.f32.mrb[0].mxu0
    %v2429 = vadd.f32 %v2159, %v2428
    %v2430 = vpop.f32.mrb[0].mxu0
    %v2431 = vadd.f32 %v2155, %v2430
    %v2432 = vpop.f32.mrb[0].mxu0
    %v2433 = vadd.f32 %v2159, %v2432
    %2434 = vmatprep.mubr.bf16.mxu0 0
    %2435 = vmatmul.mubr.bf16.gmra.mrb[0].mxu0 %v2117
    %v2436 = vpop.f32.mrb[0].mxu0
    %v2437 = vadd.f32 %v2155, %v2436
    %v2438 = vpop.f32.mrb[0].mxu0
    %v2439 = vadd.f32 %v2159, %v2438
    %v2440 = vpop.f32.mrb[0].mxu0
    %v2441 = vadd.f32 %v2155, %v2440
    %v2442 = vpop.f32.mrb[0].mxu0
    %v2443 = vadd.f32 %v2159, %v2442
    %2444 = vdwg.mxu0
    %2445 = vmatprep.subr.bf16.mxu0 %v2271
    %2446 = vmatpush1.bf16.msra.mxu0 %v2270
    %2447 = vmatprep.subr.bf16.mxu0 %v2275
    %2448 = vmatpush1.bf16.msra.mxu0 %v2274
    %2449 = vmatprep.subr.bf16.mxu0 %v2279
    %2450 = vmatpush1.bf16.msra.mxu0 %v2278
    %2451 = vmatprep.subr.bf16.mxu0 %v2283
    %2452 = vmatpush1.bf16.msra.mxu0 %v2282
    %2453 = vmatprep.subr.bf16.mxu0 %v2287
    %2454 = vmatpush1.bf16.msra.mxu0 %v2286
    %2455 = vmatprep.subr.bf16.mxu0 %v2291
    %2456 = vmatpush1.bf16.msra.mxu0 %v2290
    %2457 = vmatprep.subr.bf16.mxu0 %v2295
    %2458 = vmatpush1.bf16.msra.mxu0 %v2294
    %2459 = vmatprep.subr.bf16.mxu0 %v2299
    %2460 = vmatpush1.bf16.msra.mxu0 %v2298
    %2461 = vmatprep.subr.bf16.mxu0 0
    %2462 = vmatpush1.bf16.msra.mxu0 0
    %2463 = vmatprep.subr.bf16.mxu0 0
    %2464 = vmatpush1.bf16.msra.mxu0 0
    %2465 = vmatprep.subr.bf16.mxu0 0
    %2466 = vmatpush1.bf16.msra.mxu0 0
    %2467 = vmatprep.subr.bf16.mxu0 0
    %2468 = vmatpush1.bf16.msra.mxu0 0
    %2469 = vmatprep.subr.bf16.mxu0 0
    %2470 = vmatpush1.bf16.msra.mxu0 0
    %2471 = vmatprep.subr.bf16.mxu0 0
    %2472 = vmatpush1.bf16.msra.mxu0 0
    %2473 = vmatprep.subr.bf16.mxu0 0
    %2474 = vmatpush1.bf16.msra.mxu0 0
    %2475 = vmatprep.subr.bf16.mxu0 0
    %2476 = vmatpush1.bf16.msra.mxu0 0
    %2477 = vmatprep.mubr.bf16.mxu0 0
    %2478 = vmatmul.mubr.bf16.gmra.mrb[0].mxu0 %v2110
    %v2479 = vpop.f32.mrb[0].mxu0
    %v2480 = vadd.f32 %v2163, %v2479
    %v2481 = vpop.f32.mrb[0].mxu0
    %v2482 = vadd.f32 %v2167, %v2481
    %v2483 = vpop.f32.mrb[0].mxu0
    %v2484 = vadd.f32 %v2163, %v2483
    %v2485 = vpop.f32.mrb[0].mxu0
    %v2486 = vadd.f32 %v2167, %v2485
    %2487 = vmatprep.mubr.bf16.mxu0 0
    %2488 = vmatmul.mubr.bf16.gmra.mrb[0].mxu0 %v2111
    %v2489 = vpop.f32.mrb[0].mxu0
    %v2490 = vadd.f32 %v2163, %v2489
    %v2491 = vpop.f32.mrb[0].mxu0
    %v2492 = vadd.f32 %v2167, %v2491
    %v2493 = vpop.f32.mrb[0].mxu0
    %v2494 = vadd.f32 %v2163, %v2493
    %v2495 = vpop.f32.mrb[0].mxu0
    %v2496 = vadd.f32 %v2167, %v2495
    %2497 = vmatprep.mubr.bf16.mxu0 0
    %2498 = vmatmul.mubr.bf16.gmra.mrb[0].mxu0 %v2112
    %v2499 = vpop.f32.mrb[0].mxu0
    %v2500 = vadd.f32 %v2163, %v2499
    %v2501 = vpop.f32.mrb[0].mxu0
    %v2502 = vadd.f32 %v2167, %v2501
    %v2503 = vpop.f32.mrb[0].mxu0
    %v2504 = vadd.f32 %v2163, %v2503
    %v2505 = vpop.f32.mrb[0].mxu0
    %v2506 = vadd.f32 %v2167, %v2505
    %2507 = vmatprep.mubr.bf16.mxu0 0
    %2508 = vmatmul.mubr.bf16.gmra.mrb[0].mxu0 %v2113
    %v2509 = vpop.f32.mrb[0].mxu0
    %v2510 = vadd.f32 %v2163, %v2509
    %v2511 = vpop.f32.mrb[0].mxu0
    %v2512 = vadd.f32 %v2167, %v2511
    %v2513 = vpop.f32.mrb[0].mxu0
    %v2514 = vadd.f32 %v2163, %v2513
    %v2515 = vpop.f32.mrb[0].mxu0
    %v2516 = vadd.f32 %v2167, %v2515
    %2517 = vmatprep.mubr.bf16.mxu0 0
    %2518 = vmatmul.mubr.bf16.gmra.mrb[0].mxu0 %v2114
    %v2519 = vpop.f32.mrb[0].mxu0
    %v2520 = vadd.f32 %v2163, %v2519
    %v2521 = vpop.f32.mrb[0].mxu0
    %v2522 = vadd.f32 %v2167, %v2521
    %v2523 = vpop.f32.mrb[0].mxu0
    %v2524 = vadd.f32 %v2163, %v2523
    %v2525 = vpop.f32.mrb[0].mxu0
    %v2526 = vadd.f32 %v2167, %v2525
    %2527 = vmatprep.mubr.bf16.mxu0 0
    %2528 = vmatmul.mubr.bf16.gmra.mrb[0].mxu0 %v2115
    %v2529 = vpop.f32.mrb[0].mxu0
    %v2530 = vadd.f32 %v2163, %v2529
    %v2531 = vpop.f32.mrb[0].mxu0
    %v2532 = vadd.f32 %v2167, %v2531
    %v2533 = vpop.f32.mrb[0].mxu0
    %v2534 = vadd.f32 %v2163, %v2533
    %v2535 = vpop.f32.mrb[0].mxu0
    %v2536 = vadd.f32 %v2167, %v2535
    %2537 = vmatprep.mubr.bf16.mxu0 0
    %2538 = vmatmul.mubr.bf16.gmra.mrb[0].mxu0 %v2116
    %v2539 = vpop.f32.mrb[0].mxu0
    %v2540 = vadd.f32 %v2163, %v2539
    %v2541 = vpop.f32.mrb[0].mxu0
    %v2542 = vadd.f32 %v2167, %v2541
    %v2543 = vpop.f32.mrb[0].mxu0
    %v2544 = vadd.f32 %v2163, %v2543
    %v2545 = vpop.f32.mrb[0].mxu0
    %v2546 = vadd.f32 %v2167, %v2545
    %2547 = vmatprep.mubr.bf16.mxu0 0
    %2548 = vmatmul.mubr.bf16.gmra.mrb[0].mxu0 %v2117
    %v2549 = vpop.f32.mrb[0].mxu0
    %v2550 = vadd.f32 %v2163, %v2549
    %v2551 = vpop.f32.mrb[0].mxu0
    %v2552 = vadd.f32 %v2167, %v2551
    %v2553 = vpop.f32.mrb[0].mxu0
    %v2554 = vadd.f32 %v2163, %v2553
    %v2555 = vpop.f32.mrb[0].mxu0
    %v2556 = vadd.f32 %v2167, %v2555
    %2557 = vdwg.mxu0
    %2558 = vst [vmem:[#allocation2] sm:$0xff] %v2367
    %2559 = vst [vmem:[#allocation2 + $0x8] sm:$0xff] %v2369
    %2560 = vst [vmem:[#allocation2 + $0x10] sm:$0xff] %v2480
    %2561 = vst [vmem:[#allocation2 + $0x18] sm:$0xff] %v2482
    %2562 = vst [vmem:[#allocation2 + $0x20] sm:$0xff] %v2371
    %2563 = vst [vmem:[#allocation2 + $0x28] sm:$0xff] %v2373
    %2564 = vst [vmem:[#allocation2 + $0x30] sm:$0xff] %v2484
    %2565 = vst [vmem:[#allocation2 + $0x38] sm:$0xff] %v2486
    %2566 = vst [vmem:[#allocation2 + $0x40] sm:$0xff] %v2377
    %2567 = vst [vmem:[#allocation2 + $0x48] sm:$0xff] %v2379
    %2568 = vst [vmem:[#allocation2 + $0x50] sm:$0xff] %v2490
    %2569 = vst [vmem:[#allocation2 + $0x58] sm:$0xff] %v2492
    %2570 = vst [vmem:[#allocation2 + $0x60] sm:$0xff] %v2381
    %2571 = vst [vmem:[#allocation2 + $0x68] sm:$0xff] %v2383
    %2572 = vst [vmem:[#allocation2 + $0x70] sm:$0xff] %v2494
    %2573 = vst [vmem:[#allocation2 + $0x78] sm:$0xff] %v2496
    %2574 = vst [vmem:[#allocation2 + $0x80] sm:$0xff] %v2387
    %2575 = vst [vmem:[#allocation2 + $0x88] sm:$0xff] %v2389
    %2576 = vst [vmem:[#allocation2 + $0x90] sm:$0xff] %v2500
    %2577 = vst [vmem:[#allocation2 + $0x98] sm:$0xff] %v2502
    %2578 = vst [vmem:[#allocation2 + $0xa0] sm:$0xff] %v2391
    %2579 = vst [vmem:[#allocation2 + $0xa8] sm:$0xff] %v2393
    %2580 = vst [vmem:[#allocation2 + $0xb0] sm:$0xff] %v2504
    %2581 = vst [vmem:[#allocation2 + $0xb8] sm:$0xff] %v2506
    %2582 = vst [vmem:[#allocation2 + $0xc0] sm:$0xff] %v2397
    %2583 = vst [vmem:[#allocation2 + $0xc8] sm:$0xff] %v2399
    %2584 = vst [vmem:[#allocation2 + $0xd0] sm:$0xff] %v2510
    %2585 = vst [vmem:[#allocation2 + $0xd8] sm:$0xff] %v2512
    %2586 = vst [vmem:[#allocation2 + $0xe0] sm:$0xff] %v2401
    %2587 = vst [vmem:[#allocation2 + $0xe8] sm:$0xff] %v2403
    %2588 = vst [vmem:[#allocation2 + $0xf0] sm:$0xff] %v2514
    %2589 = vst [vmem:[#allocation2 + $0xf8] sm:$0xff] %v2516
    %2590 = vst [vmem:[#allocation2 + $0x100] sm:$0xff] %v2407
    %2591 = vst [vmem:[#allocation2 + $0x108] sm:$0xff] %v2409
    %2592 = vst [vmem:[#allocation2 + $0x110] sm:$0xff] %v2520
    %2593 = vst [vmem:[#allocation2 + $0x118] sm:$0xff] %v2522
    %2594 = vst [vmem:[#allocation2 + $0x120] sm:$0xff] %v2411
    %2595 = vst [vmem:[#allocation2 + $0x128] sm:$0xff] %v2413
    %2596 = vst [vmem:[#allocation2 + $0x130] sm:$0xff] %v2524
    %2597 = vst [vmem:[#allocation2 + $0x138] sm:$0xff] %v2526
    %2598 = vst [vmem:[#allocation2 + $0x140] sm:$0xff] %v2417
    %2599 = vst [vmem:[#allocation2 + $0x148] sm:$0xff] %v2419
    %2600 = vst [vmem:[#allocation2 + $0x150] sm:$0xff] %v2530
    %2601 = vst [vmem:[#allocation2 + $0x158] sm:$0xff] %v2532
    %2602 = vst [vmem:[#allocation2 + $0x160] sm:$0xff] %v2421
    %2603 = vst [vmem:[#allocation2 + $0x168] sm:$0xff] %v2423
    %2604 = vst [vmem:[#allocation2 + $0x170] sm:$0xff] %v2534
    %2605 = vst [vmem:[#allocation2 + $0x178] sm:$0xff] %v2536
    %2606 = vst [vmem:[#allocation2 + $0x180] sm:$0xff] %v2427
    %2607 = vst [vmem:[#allocation2 + $0x188] sm:$0xff] %v2429
    %2608 = vst [vmem:[#allocation2 + $0x190] sm:$0xff] %v2540
    %2609 = vst [vmem:[#allocation2 + $0x198] sm:$0xff] %v2542
    %2610 = vst [vmem:[#allocation2 + $0x1a0] sm:$0xff] %v2431
    %2611 = vst [vmem:[#allocation2 + $0x1a8] sm:$0xff] %v2433
    %2612 = vst [vmem:[#allocation2 + $0x1b0] sm:$0xff] %v2544
    %2613 = vst [vmem:[#allocation2 + $0x1b8] sm:$0xff] %v2546
    %2614 = vst [vmem:[#allocation2 + $0x1c0] sm:$0xff] %v2437
    %2615 = vst [vmem:[#allocation2 + $0x1c8] sm:$0xff] %v2439
    %2616 = vst [vmem:[#allocation2 + $0x1d0] sm:$0xff] %v2550
    %2617 = vst [vmem:[#allocation2 + $0x1d8] sm:$0xff] %v2552
    %2618 = vst [vmem:[#allocation2 + $0x1e0] sm:$0xff] %v2441
    %2619 = vst [vmem:[#allocation2 + $0x1e8] sm:$0xff] %v2443
    %2620 = vst [vmem:[#allocation2 + $0x1f0] sm:$0xff] %v2554
    %2621 = vst [vmem:[#allocation2 + $0x1f8] sm:$0xff] %v2556
    %v2622 = vld [vmem:[#allocation11] sm:$0xff]
    %v2623 = vld [vmem:[#allocation11 + $0x8] sm:$0xff]
    %v2624 = vld [vmem:[#allocation11 + $0x10] sm:$0xff]
    %v2625 = vld [vmem:[#allocation11 + $0x18] sm:$0xff]
    %v2626 = vld [vmem:[#allocation11 + $0x20] sm:$0xff]
    %v2627 = vld [vmem:[#allocation11 + $0x28] sm:$0xff]
    %v2628 = vld [vmem:[#allocation11 + $0x30] sm:$0xff]
    %v2629 = vld [vmem:[#allocation11 + $0x38] sm:$0xff]
    %v2630 = vld [vmem:[#allocation11 + $0x40] sm:$0xff]
    %v2631 = vld [vmem:[#allocation11 + $0x48] sm:$0xff]
    %v2632 = vld [vmem:[#allocation11 + $0x50] sm:$0xff]
    %v2633 = vld [vmem:[#allocation11 + $0x58] sm:$0xff]
    %v2634 = vld [vmem:[#allocation11 + $0x60] sm:$0xff]
    %v2635 = vld [vmem:[#allocation11 + $0x68] sm:$0xff]
    %v2636 = vld [vmem:[#allocation11 + $0x70] sm:$0xff]
    %v2637 = vld [vmem:[#allocation11 + $0x78] sm:$0xff]
    %v2638 = vld [vmem:[#allocation11 + $0x80] sm:$0xff]
    %v2639 = vld [vmem:[#allocation11 + $0x88] sm:$0xff]
    %v2640 = vld [vmem:[#allocation11 + $0x90] sm:$0xff]
    %v2641 = vld [vmem:[#allocation11 + $0x98] sm:$0xff]
    %v2642 = vld [vmem:[#allocation11 + $0xa0] sm:$0xff]
    %v2643 = vld [vmem:[#allocation11 + $0xa8] sm:$0xff]
    %v2644 = vld [vmem:[#allocation11 + $0xb0] sm:$0xff]
    %v2645 = vld [vmem:[#allocation11 + $0xb8] sm:$0xff]
    %v2646 = vld [vmem:[#allocation11 + $0xc0] sm:$0xff]
    %v2647 = vld [vmem:[#allocation11 + $0xc8] sm:$0xff]
    %v2648 = vld [vmem:[#allocation11 + $0xd0] sm:$0xff]
    %v2649 = vld [vmem:[#allocation11 + $0xd8] sm:$0xff]
    %v2650 = vld [vmem:[#allocation11 + $0xe0] sm:$0xff]
    %v2651 = vld [vmem:[#allocation11 + $0xe8] sm:$0xff]
    %v2652 = vld [vmem:[#allocation11 + $0xf0] sm:$0xff]
    %v2653 = vld [vmem:[#allocation11 + $0xf8] sm:$0xff]
    %v2654 = vld [vmem:[#allocation2] sm:$0xff]
    %v2655 = vld [vmem:[#allocation2 + $0x8] sm:$0xff]
    %v2656 = vld [vmem:[#allocation2 + $0x10] sm:$0xff]
    %v2657 = vld [vmem:[#allocation2 + $0x18] sm:$0xff]
    %v2658 = vld [vmem:[#allocation2 + $0x20] sm:$0xff]
    %v2659 = vld [vmem:[#allocation2 + $0x28] sm:$0xff]
    %v2660 = vld [vmem:[#allocation2 + $0x30] sm:$0xff]
    %v2661 = vld [vmem:[#allocation2 + $0x38] sm:$0xff]
    %v2694 = vunpack.c.l.b16 %v2622
    %v2695 = vunpack.c.h.b16 %v2622
    %v2696 = vunpack.c.l.b16 %v2623
    %v2697 = vunpack.c.h.b16 %v2623
    %v2698 = vunpack.c.l.b16 %v2624
    %v2699 = vunpack.c.h.b16 %v2624
    %v2700 = vunpack.c.l.b16 %v2625
    %v2701 = vunpack.c.h.b16 %v2625
    %v2702 = vunpack.c.l.b16 %v2626
    %v2703 = vunpack.c.h.b16 %v2626
    %v2704 = vunpack.c.l.b16 %v2627
    %v2705 = vunpack.c.h.b16 %v2627
    %v2706 = vunpack.c.l.b16 %v2628
    %v2707 = vunpack.c.h.b16 %v2628
    %v2708 = vunpack.c.l.b16 %v2629
    %v2709 = vunpack.c.h.b16 %v2629
    %v2710 = vunpack.c.l.b16 %v2630
    %v2711 = vunpack.c.h.b16 %v2630
    %v2712 = vunpack.c.l.b16 %v2631
    %v2713 = vunpack.c.h.b16 %v2631
    %v2714 = vunpack.c.l.b16 %v2632
    %v2715 = vunpack.c.h.b16 %v2632
    %v2716 = vunpack.c.l.b16 %v2633
    %v2717 = vunpack.c.h.b16 %v2633
    %v2718 = vunpack.c.l.b16 %v2634
    %v2719 = vunpack.c.h.b16 %v2634
    %v2720 = vunpack.c.l.b16 %v2635
    %v2721 = vunpack.c.h.b16 %v2635
    %v2722 = vunpack.c.l.b16 %v2636
    %v2723 = vunpack.c.h.b16 %v2636
    %v2724 = vunpack.c.l.b16 %v2637
    %v2725 = vunpack.c.h.b16 %v2637
    %v2726 = vunpack.c.l.b16 %v2638
    %v2727 = vunpack.c.h.b16 %v2638
    %v2728 = vunpack.c.l.b16 %v2639
    %v2729 = vunpack.c.h.b16 %v2639
    %v2730 = vunpack.c.l.b16 %v2640
    %v2731 = vunpack.c.h.b16 %v2640
    %v2732 = vunpack.c.l.b16 %v2641
    %v2733 = vunpack.c.h.b16 %v2641
    %v2734 = vunpack.c.l.b16 %v2642
    %v2735 = vunpack.c.h.b16 %v2642
    %v2736 = vunpack.c.l.b16 %v2643
    %v2737 = vunpack.c.h.b16 %v2643
    %v2738 = vunpack.c.l.b16 %v2644
    %v2739 = vunpack.c.h.b16 %v2644
    %v2740 = vunpack.c.l.b16 %v2645
    %v2741 = vunpack.c.h.b16 %v2645
    %v2742 = vunpack.c.l.b16 %v2646
    %v2743 = vunpack.c.h.b16 %v2646
    %v2744 = vunpack.c.l.b16 %v2647
    %v2745 = vunpack.c.h.b16 %v2647
    %v2746 = vunpack.c.l.b16 %v2648
    %v2747 = vunpack.c.h.b16 %v2648
    %v2748 = vunpack.c.l.b16 %v2649
    %v2749 = vunpack.c.h.b16 %v2649
    %v2750 = vunpack.c.l.b16 %v2650
    %v2751 = vunpack.c.h.b16 %v2650
    %v2752 = vunpack.c.l.b16 %v2651
    %v2753 = vunpack.c.h.b16 %v2651
    %v2754 = vunpack.c.l.b16 %v2652
    %v2755 = vunpack.c.h.b16 %v2652
    %v2756 = vunpack.c.l.b16 %v2653
    %v2757 = vunpack.c.h.b16 %v2653
    %v2758 = vpack.c.b16 %v2698, %v2694
    %v2759 = vpack.c.b16 %v2699, %v2695
    %v2760 = vpack.c.b16 %v2700, %v2696
    %v2761 = vpack.c.b16 %v2701, %v2697
    %v2762 = vpack.c.b16 %v2706, %v2702
    %v2763 = vpack.c.b16 %v2707, %v2703
    %v2764 = vpack.c.b16 %v2708, %v2704
    %v2765 = vpack.c.b16 %v2709, %v2705
    %v2766 = vpack.c.b16 %v2714, %v2710
    %v2767 = vpack.c.b16 %v2715, %v2711
    %v2768 = vpack.c.b16 %v2716, %v2712
    %v2769 = vpack.c.b16 %v2717, %v2713
    %v2770 = vpack.c.b16 %v2722, %v2718
    %v2771 = vpack.c.b16 %v2723, %v2719
    %v2772 = vpack.c.b16 %v2724, %v2720
    %v2773 = vpack.c.b16 %v2725, %v2721
    %v2774 = vpack.c.b16 %v2730, %v2726
    %v2775 = vpack.c.b16 %v2731, %v2727
    %v2776 = vpack.c.b16 %v2732, %v2728
    %v2777 = vpack.c.b16 %v2733, %v2729
    %v2778 = vpack.c.b16 %v2738, %v2734
    %v2779 = vpack.c.b16 %v2739, %v2735
    %v2780 = vpack.c.b16 %v2740, %v2736
    %v2781 = vpack.c.b16 %v2741, %v2737
    %v2782 = vpack.c.b16 %v2746, %v2742
    %v2783 = vpack.c.b16 %v2747, %v2743
    %v2784 = vpack.c.b16 %v2748, %v2744
    %v2785 = vpack.c.b16 %v2749, %v2745
    %v2786 = vpack.c.b16 %v2754, %v2750
    %v2787 = vpack.c.b16 %v2755, %v2751
    %v2788 = vpack.c.b16 %v2756, %v2752
    %v2789 = vpack.c.b16 %v2757, %v2753
    %2822 = vmatprep.subr.bf16.mxu0 %v2759
    %2823 = vmatpush1.bf16.msra.mxu0 %v2758
    %2824 = vmatprep.subr.bf16.mxu0 %v2763
    %2825 = vmatpush1.bf16.msra.mxu0 %v2762
    %2826 = vmatprep.subr.bf16.mxu0 %v2767
    %2827 = vmatpush1.bf16.msra.mxu0 %v2766
    %2828 = vmatprep.subr.bf16.mxu0 %v2771
    %2829 = vmatpush1.bf16.msra.mxu0 %v2770
    %2830 = vmatprep.subr.bf16.mxu0 %v2775
    %2831 = vmatpush1.bf16.msra.mxu0 %v2774
    %2832 = vmatprep.subr.bf16.mxu0 %v2779
    %2833 = vmatpush1.bf16.msra.mxu0 %v2778
    %2834 = vmatprep.subr.bf16.mxu0 %v2783
    %2835 = vmatpush1.bf16.msra.mxu0 %v2782
    %2836 = vmatprep.subr.bf16.mxu0 %v2787
    %2837 = vmatpush1.bf16.msra.mxu0 %v2786
    %2838 = vmatprep.subr.bf16.mxu0 0
    %2839 = vmatpush1.bf16.msra.mxu0 0
    %2840 = vmatprep.subr.bf16.mxu0 0
    %2841 = vmatpush1.bf16.msra.mxu0 0
    %2842 = vmatprep.subr.bf16.mxu0 0
    %2843 = vmatpush1.bf16.msra.mxu0 0
    %2844 = vmatprep.subr.bf16.mxu0 0
    %2845 = vmatpush1.bf16.msra.mxu0 0
    %2846 = vmatprep.subr.bf16.mxu0 0
    %2847 = vmatpush1.bf16.msra.mxu0 0
    %2848 = vmatprep.subr.bf16.mxu0 0
    %2849 = vmatpush1.bf16.msra.mxu0 0
    %2850 = vmatprep.subr.bf16.mxu0 0
    %2851 = vmatpush1.bf16.msra.mxu0 0
    %2852 = vmatprep.subr.bf16.mxu0 0
    %2853 = vmatpush1.bf16.msra.mxu0 0
    %2854 = vmatprep.mubr.bf16.mxu0 0
    %2855 = vmatmul.mubr.bf16.gmra.mrb[0].mxu0 0
    %v2856 = vpop.f32.mrb[0].mxu0
    %v2857 = vadd.f32 0.0, %v2856
    %v2858 = vpop.f32.mrb[0].mxu0
    %v2859 = vadd.f32 0.0, %v2858
    %v2860 = vpop.f32.mrb[0].mxu0
    %v2861 = vadd.f32 0.0, %v2860
    %v2862 = vpop.f32.mrb[0].mxu0
    %v2863 = vadd.f32 0.0, %v2862
    %2864 = vdwg.mxu0
    %2865 = vmatprep.subr.bf16.mxu0 %v2761
    %2866 = vmatpush1.bf16.msra.mxu0 %v2760
    %2867 = vmatprep.subr.bf16.mxu0 %v2765
    %2868 = vmatpush1.bf16.msra.mxu0 %v2764
    %2869 = vmatprep.subr.bf16.mxu0 %v2769
    %2870 = vmatpush1.bf16.msra.mxu0 %v2768
    %2871 = vmatprep.subr.bf16.mxu0 %v2773
    %2872 = vmatpush1.bf16.msra.mxu0 %v2772
    %2873 = vmatprep.subr.bf16.mxu0 %v2777
    %2874 = vmatpush1.bf16.msra.mxu0 %v2776
    %2875 = vmatprep.subr.bf16.mxu0 %v2781
    %2876 = vmatpush1.bf16.msra.mxu0 %v2780
    %2877 = vmatprep.subr.bf16.mxu0 %v2785
    %2878 = vmatpush1.bf16.msra.mxu0 %v2784
    %2879 = vmatprep.subr.bf16.mxu0 %v2789
    %2880 = vmatpush1.bf16.msra.mxu0 %v2788
    %2881 = vmatprep.subr.bf16.mxu0 0
    %2882 = vmatpush1.bf16.msra.mxu0 0
    %2883 = vmatprep.subr.bf16.mxu0 0
    %2884 = vmatpush1.bf16.msra.mxu0 0
    %2885 = vmatprep.subr.bf16.mxu0 0
    %2886 = vmatpush1.bf16.msra.mxu0 0
    %2887 = vmatprep.subr.bf16.mxu0 0
    %2888 = vmatpush1.bf16.msra.mxu0 0
    %2889 = vmatprep.subr.bf16.mxu0 0
    %2890 = vmatpush1.bf16.msra.mxu0 0
    %2891 = vmatprep.subr.bf16.mxu0 0
    %2892 = vmatpush1.bf16.msra.mxu0 0
    %2893 = vmatprep.subr.bf16.mxu0 0
    %2894 = vmatpush1.bf16.msra.mxu0 0
    %2895 = vmatprep.subr.bf16.mxu0 0
    %2896 = vmatpush1.bf16.msra.mxu0 0
    %2897 = vmatprep.mubr.bf16.mxu0 0
    %2898 = vmatmul.mubr.bf16.gmra.mrb[0].mxu0 0
    %v2899 = vpop.f32.mrb[0].mxu0
    %v2900 = vadd.f32 0.0, %v2899
    %v2901 = vpop.f32.mrb[0].mxu0
    %v2902 = vadd.f32 0.0, %v2901
    %v2903 = vpop.f32.mrb[0].mxu0
    %v2904 = vadd.f32 0.0, %v2903
    %v2905 = vpop.f32.mrb[0].mxu0
    %v2906 = vadd.f32 0.0, %v2905
    %2907 = vdwg.mxu0
    %v2908 = vadd.f32 %v2654, %v2857
    %v2909 = vadd.f32 %v2655, %v2859
    %v2910 = vadd.f32 %v2656, %v2900
    %v2911 = vadd.f32 %v2657, %v2902
    %v2912 = vadd.f32 %v2658, %v2861
    %v2913 = vadd.f32 %v2659, %v2863
    %v2914 = vadd.f32 %v2660, %v2904
    %v2915 = vadd.f32 %v2661, %v2906
    %v2916 = vxor.u32 %v2908, 2147483648
    %v2917 = vxor.u32 %v2912, 2147483648
    %v2918 = vmul.f32 %v2916, 1.442695
    %v2919 = vpow.pop %v2918
    %v2920 = vmul.f32 %v2917, 1.442695
    %v2921 = vpow.pop %v2920
    %v2922 = vadd.f32 %v2919, 1.0
    %v2923 = vadd.f32 %v2921, 1.0
    %v2924 = vrcp.pop %v2922
    %v2925 = vmul.f32 1.0, %v2924
    %v2926 = vrcp.pop %v2923
    %v2927 = vmul.f32 1.0, %v2926
    %v2928 = vxor.u32 %v2909, 2147483648
    %v2929 = vxor.u32 %v2913, 2147483648
    %v2930 = vmul.f32 %v2928, 1.442695
    %v2931 = vpow.pop %v2930
    %v2932 = vmul.f32 %v2929, 1.442695
    %v2933 = vpow.pop %v2932
    %v2934 = vadd.f32 %v2931, 1.0
    %v2935 = vadd.f32 %v2933, 1.0
    %v2936 = vrcp.pop %v2934
    %v2937 = vmul.f32 1.0, %v2936
    %v2938 = vrcp.pop %v2935
    %v2939 = vmul.f32 1.0, %v2938
    %v2940 = vtanh.pop %v2910
    %v2941 = vtanh.pop %v2914
    %v2942 = vxor.u32 %v2911, 2147483648
    %v2943 = vxor.u32 %v2915, 2147483648
    %v2944 = vmul.f32 %v2942, 1.442695
    %v2945 = vpow.pop %v2944
    %v2946 = vmul.f32 %v2943, 1.442695
    %v2947 = vpow.pop %v2946
    %v2948 = vadd.f32 %v2945, 1.0
    %v2949 = vadd.f32 %v2947, 1.0
    %v2950 = vrcp.pop %v2948
    %v2951 = vmul.f32 1.0, %v2950
    %v2952 = vrcp.pop %v2949
    %v2953 = vmul.f32 1.0, %v2952
    %v2954 = vmul.f32 %v2937, 0.0
    %v2955 = vmul.f32 %v2939, 0.0
    %v2956 = vmul.f32 %v2925, %v2940
    %v2957 = vmul.f32 %v2927, %v2941
    %v2958 = vadd.f32 %v2954, %v2956
    %v2959 = vadd.f32 %v2955, %v2957
    %v2960 = vtanh.pop %v2958
    %v2961 = vtanh.pop %v2959
    %v2962 = vmul.f32 %v2951, %v2960
    %v2963 = vmul.f32 %v2953, %v2961
    %v2964 = vld [vmem:[#allocation2 + $0x40] sm:$0xff]
    %v2965 = vld [vmem:[#allocation2 + $0x48] sm:$0xff]
    %v2966 = vld [vmem:[#allocation2 + $0x50] sm:$0xff]
    %v2967 = vld [vmem:[#allocation2 + $0x58] sm:$0xff]
    %v2968 = vld [vmem:[#allocation2 + $0x60] sm:$0xff]
    %v2969 = vld [vmem:[#allocation2 + $0x68] sm:$0xff]
    %v2970 = vld [vmem:[#allocation2 + $0x70] sm:$0xff]
    %v2971 = vld [vmem:[#allocation2 + $0x78] sm:$0xff]
    %v2972 = vpack.c.bf16 %v2963, %v2962
    %2973 = vmatprep.subr.bf16.mxu0 %v2759
    %2974 = vmatpush1.bf16.msra.mxu0 %v2758
    %2975 = vmatprep.subr.bf16.mxu0 %v2763
    %2976 = vmatpush1.bf16.msra.mxu0 %v2762
    %2977 = vmatprep.subr.bf16.mxu0 %v2767
    %2978 = vmatpush1.bf16.msra.mxu0 %v2766
    %2979 = vmatprep.subr.bf16.mxu0 %v2771
    %2980 = vmatpush1.bf16.msra.mxu0 %v2770
    %2981 = vmatprep.subr.bf16.mxu0 %v2775
    %2982 = vmatpush1.bf16.msra.mxu0 %v2774
    %2983 = vmatprep.subr.bf16.mxu0 %v2779
    %2984 = vmatpush1.bf16.msra.mxu0 %v2778
    %2985 = vmatprep.subr.bf16.mxu0 %v2783
    %2986 = vmatpush1.bf16.msra.mxu0 %v2782
    %2987 = vmatprep.subr.bf16.mxu0 %v2787
    %2988 = vmatpush1.bf16.msra.mxu0 %v2786
    %2989 = vmatprep.subr.bf16.mxu0 0
    %2990 = vmatpush1.bf16.msra.mxu0 0
    %2991 = vmatprep.subr.bf16.mxu0 0
    %2992 = vmatpush1.bf16.msra.mxu0 0
    %2993 = vmatprep.subr.bf16.mxu0 0
    %2994 = vmatpush1.bf16.msra.mxu0 0
    %2995 = vmatprep.subr.bf16.mxu0 0
    %2996 = vmatpush1.bf16.msra.mxu0 0
    %2997 = vmatprep.subr.bf16.mxu0 0
    %2998 = vmatpush1.bf16.msra.mxu0 0
    %2999 = vmatprep.subr.bf16.mxu0 0
    %3000 = vmatpush1.bf16.msra.mxu0 0
    %3001 = vmatprep.subr.bf16.mxu0 0
    %3002 = vmatpush1.bf16.msra.mxu0 0
    %3003 = vmatprep.subr.bf16.mxu0 0
    %3004 = vmatpush1.bf16.msra.mxu0 0
    %3005 = vmatprep.mubr.bf16.mxu0 0
    %3006 = vmatmul.mubr.bf16.gmra.mrb[0].mxu0 %v2972
    %v3007 = vpop.f32.mrb[0].mxu0
    %v3008 = vadd.f32 0.0, %v3007
    %v3009 = vpop.f32.mrb[0].mxu0
    %v3010 = vadd.f32 0.0, %v3009
    %v3011 = vpop.f32.mrb[0].mxu0
    %v3012 = vadd.f32 0.0, %v3011
    %v3013 = vpop.f32.mrb[0].mxu0
    %v3014 = vadd.f32 0.0, %v3013
    %3015 = vdwg.mxu0
    %3016 = vmatprep.subr.bf16.mxu0 %v2761
    %3017 = vmatpush1.bf16.msra.mxu0 %v2760
    %3018 = vmatprep.subr.bf16.mxu0 %v2765
    %3019 = vmatpush1.bf16.msra.mxu0 %v2764
    %3020 = vmatprep.subr.bf16.mxu0 %v2769
    %3021 = vmatpush1.bf16.msra.mxu0 %v2768
    %3022 = vmatprep.subr.bf16.mxu0 %v2773
    %3023 = vmatpush1.bf16.msra.mxu0 %v2772
    %3024 = vmatprep.subr.bf16.mxu0 %v2777
    %3025 = vmatpush1.bf16.msra.mxu0 %v2776
    %3026 = vmatprep.subr.bf16.mxu0 %v2781
    %3027 = vmatpush1.bf16.msra.mxu0 %v2780
    %3028 = vmatprep.subr.bf16.mxu0 %v2785
    %3029 = vmatpush1.bf16.msra.mxu0 %v2784
    %3030 = vmatprep.subr.bf16.mxu0 %v2789
    %3031 = vmatpush1.bf16.msra.mxu0 %v2788
    %3032 = vmatprep.subr.bf16.mxu0 0
    %3033 = vmatpush1.bf16.msra.mxu0 0
    %3034 = vmatprep.subr.bf16.mxu0 0
    %3035 = vmatpush1.bf16.msra.mxu0 0
    %3036 = vmatprep.subr.bf16.mxu0 0
    %3037 = vmatpush1.bf16.msra.mxu0 0
    %3038 = vmatprep.subr.bf16.mxu0 0
    %3039 = vmatpush1.bf16.msra.mxu0 0
    %3040 = vmatprep.subr.bf16.mxu0 0
    %3041 = vmatpush1.bf16.msra.mxu0 0
    %3042 = vmatprep.subr.bf16.mxu0 0
    %3043 = vmatpush1.bf16.msra.mxu0 0
    %3044 = vmatprep.subr.bf16.mxu0 0
    %3045 = vmatpush1.bf16.msra.mxu0 0
    %3046 = vmatprep.subr.bf16.mxu0 0
    %3047 = vmatpush1.bf16.msra.mxu0 0
    %3048 = vmatprep.mubr.bf16.mxu0 0
    %3049 = vmatmul.mubr.bf16.gmra.mrb[0].mxu0 %v2972
    %v3050 = vpop.f32.mrb[0].mxu0
    %v3051 = vadd.f32 0.0, %v3050
    %v3052 = vpop.f32.mrb[0].mxu0
    %v3053 = vadd.f32 0.0, %v3052
    %v3054 = vpop.f32.mrb[0].mxu0
    %v3055 = vadd.f32 0.0, %v3054
    %v3056 = vpop.f32.mrb[0].mxu0
    %v3057 = vadd.f32 0.0, %v3056
    %3058 = vdwg.mxu0
    %v3059 = vadd.f32 %v2964, %v3008
    %v3060 = vadd.f32 %v2965, %v3010
    %v3061 = vadd.f32 %v2966, %v3051
    %v3062 = vadd.f32 %v2967, %v3053
    %v3063 = vadd.f32 %v2968, %v3012
    %v3064 = vadd.f32 %v2969, %v3014
    %v3065 = vadd.f32 %v2970, %v3055
    %v3066 = vadd.f32 %v2971, %v3057
    %v3067 = vxor.u32 %v3059, 2147483648
    %v3068 = vxor.u32 %v3063, 2147483648
    %v3069 = vmul.f32 %v3067, 1.442695
    %v3070 = vpow.pop %v3069
    %v3071 = vmul.f32 %v3068, 1.442695
    %v3072 = vpow.pop %v3071
    %v3073 = vadd.f32 %v3070, 1.0
    %v3074 = vadd.f32 %v3072, 1.0
    %v3075 = vrcp.pop %v3073
    %v3076 = vmul.f32 1.0, %v3075
    %v3077 = vrcp.pop %v3074
    %v3078 = vmul.f32 1.0, %v3077
    %v3079 = vxor.u32 %v3060, 2147483648
    %v3080 = vxor.u32 %v3064, 2147483648
    %v3081 = vmul.f32 %v3079, 1.442695
    %v3082 = vpow.pop %v3081
    %v3083 = vmul.f32 %v3080, 1.442695
    %v3084 = vpow.pop %v3083
    %v3085 = vadd.f32 %v3082, 1.0
    %v3086 = vadd.f32 %v3084, 1.0
    %v3087 = vrcp.pop %v3085
    %v3088 = vmul.f32 1.0, %v3087
    %v3089 = vrcp.pop %v3086
    %v3090 = vmul.f32 1.0, %v3089
    %v3091 = vtanh.pop %v3061
    %v3092 = vtanh.pop %v3065
    %v3093 = vxor.u32 %v3062, 2147483648
    %v3094 = vxor.u32 %v3066, 2147483648
    %v3095 = vmul.f32 %v3093, 1.442695
    %v3096 = vpow.pop %v3095
    %v3097 = vmul.f32 %v3094, 1.442695
    %v3098 = vpow.pop %v3097
    %v3099 = vadd.f32 %v3096, 1.0
    %v3100 = vadd.f32 %v3098, 1.0
    %v3101 = vrcp.pop %v3099
    %v3102 = vmul.f32 1.0, %v3101
    %v3103 = vrcp.pop %v3100
    %v3104 = vmul.f32 1.0, %v3103
    %v3105 = vmul.f32 %v3088, %v2958
    %v3106 = vmul.f32 %v3090, %v2959
    %v3107 = vmul.f32 %v3076, %v3091
    %v3108 = vmul.f32 %v3078, %v3092
    %v3109 = vadd.f32 %v3105, %v3107
    %v3110 = vadd.f32 %v3106, %v3108
    %v3111 = vtanh.pop %v3109
    %v3112 = vtanh.pop %v3110
    %v3113 = vmul.f32 %v3102, %v3111
    %v3114 = vmul.f32 %v3104, %v3112
    %v3115 = vld [vmem:[#allocation2 + $0x80] sm:$0xff]
    %v3116 = vld [vmem:[#allocation2 + $0x88] sm:$0xff]
    %v3117 = vld [vmem:[#allocation2 + $0x90] sm:$0xff]
    %v3118 = vld [vmem:[#allocation2 + $0x98] sm:$0xff]
    %v3119 = vld [vmem:[#allocation2 + $0xa0] sm:$0xff]
    %v3120 = vld [vmem:[#allocation2 + $0xa8] sm:$0xff]
    %v3121 = vld [vmem:[#allocation2 + $0xb0] sm:$0xff]
    %v3122 = vld [vmem:[#allocation2 + $0xb8] sm:$0xff]
    %v3123 = vpack.c.bf16 %v3114, %v3113
    %3124 = vmatprep.subr.bf16.mxu0 %v2759
    %3125 = vmatpush1.bf16.msra.mxu0 %v2758
    %3126 = vmatprep.subr.bf16.mxu0 %v2763
    %3127 = vmatpush1.bf16.msra.mxu0 %v2762
    %3128 = vmatprep.subr.bf16.mxu0 %v2767
    %3129 = vmatpush1.bf16.msra.mxu0 %v2766
    %3130 = vmatprep.subr.bf16.mxu0 %v2771
    %3131 = vmatpush1.bf16.msra.mxu0 %v2770
    %3132 = vmatprep.subr.bf16.mxu0 %v2775
    %3133 = vmatpush1.bf16.msra.mxu0 %v2774
    %3134 = vmatprep.subr.bf16.mxu0 %v2779
    %3135 = vmatpush1.bf16.msra.mxu0 %v2778
    %3136 = vmatprep.subr.bf16.mxu0 %v2783
    %3137 = vmatpush1.bf16.msra.mxu0 %v2782
    %3138 = vmatprep.subr.bf16.mxu0 %v2787
    %3139 = vmatpush1.bf16.msra.mxu0 %v2786
    %3140 = vmatprep.subr.bf16.mxu0 0
    %3141 = vmatpush1.bf16.msra.mxu0 0
    %3142 = vmatprep.subr.bf16.mxu0 0
    %3143 = vmatpush1.bf16.msra.mxu0 0
    %3144 = vmatprep.subr.bf16.mxu0 0
    %3145 = vmatpush1.bf16.msra.mxu0 0
    %3146 = vmatprep.subr.bf16.mxu0 0
    %3147 = vmatpush1.bf16.msra.mxu0 0
    %3148 = vmatprep.subr.bf16.mxu0 0
    %3149 = vmatpush1.bf16.msra.mxu0 0
    %3150 = vmatprep.subr.bf16.mxu0 0
    %3151 = vmatpush1.bf16.msra.mxu0 0
    %3152 = vmatprep.subr.bf16.mxu0 0
    %3153 = vmatpush1.bf16.msra.mxu0 0
    %3154 = vmatprep.subr.bf16.mxu0 0
    %3155 = vmatpush1.bf16.msra.mxu0 0
    %3156 = vmatprep.mubr.bf16.mxu0 0
    %3157 = vmatmul.mubr.bf16.gmra.mrb[0].mxu0 %v3123
    %v3158 = vpop.f32.mrb[0].mxu0
    %v3159 = vadd.f32 0.0, %v3158
    %v3160 = vpop.f32.mrb[0].mxu0
    %v3161 = vadd.f32 0.0, %v3160
    %v3162 = vpop.f32.mrb[0].mxu0
    %v3163 = vadd.f32 0.0, %v3162
    %v3164 = vpop.f32.mrb[0].mxu0
    %v3165 = vadd.f32 0.0, %v3164
    %3166 = vdwg.mxu0
    %3167 = vmatprep.subr.bf16.mxu0 %v2761
    %3168 = vmatpush1.bf16.msra.mxu0 %v2760
    %3169 = vmatprep.subr.bf16.mxu0 %v2765
    %3170 = vmatpush1.bf16.msra.mxu0 %v2764
    %3171 = vmatprep.subr.bf16.mxu0 %v2769
    %3172 = vmatpush1.bf16.msra.mxu0 %v2768
    %3173 = vmatprep.subr.bf16.mxu0 %v2773
    %3174 = vmatpush1.bf16.msra.mxu0 %v2772
    %3175 = vmatprep.subr.bf16.mxu0 %v2777
    %3176 = vmatpush1.bf16.msra.mxu0 %v2776
    %3177 = vmatprep.subr.bf16.mxu0 %v2781
    %3178 = vmatpush1.bf16.msra.mxu0 %v2780
    %3179 = vmatprep.subr.bf16.mxu0 %v2785
    %3180 = vmatpush1.bf16.msra.mxu0 %v2784
    %3181 = vmatprep.subr.bf16.mxu0 %v2789
    %3182 = vmatpush1.bf16.msra.mxu0 %v2788
    %3183 = vmatprep.subr.bf16.mxu0 0
    %3184 = vmatpush1.bf16.msra.mxu0 0
    %3185 = vmatprep.subr.bf16.mxu0 0
    %3186 = vmatpush1.bf16.msra.mxu0 0
    %3187 = vmatprep.subr.bf16.mxu0 0
    %3188 = vmatpush1.bf16.msra.mxu0 0
    %3189 = vmatprep.subr.bf16.mxu0 0
    %3190 = vmatpush1.bf16.msra.mxu0 0
    %3191 = vmatprep.subr.bf16.mxu0 0
    %3192 = vmatpush1.bf16.msra.mxu0 0
    %3193 = vmatprep.subr.bf16.mxu0 0
    %3194 = vmatpush1.bf16.msra.mxu0 0
    %3195 = vmatprep.subr.bf16.mxu0 0
    %3196 = vmatpush1.bf16.msra.mxu0 0
    %3197 = vmatprep.subr.bf16.mxu0 0
    %3198 = vmatpush1.bf16.msra.mxu0 0
    %3199 = vmatprep.mubr.bf16.mxu0 0
    %3200 = vmatmul.mubr.bf16.gmra.mrb[0].mxu0 %v3123
    %v3201 = vpop.f32.mrb[0].mxu0
    %v3202 = vadd.f32 0.0, %v3201
    %v3203 = vpop.f32.mrb[0].mxu0
    %v3204 = vadd.f32 0.0, %v3203
    %v3205 = vpop.f32.mrb[0].mxu0
    %v3206 = vadd.f32 0.0, %v3205
    %v3207 = vpop.f32.mrb[0].mxu0
    %v3208 = vadd.f32 0.0, %v3207
    %3209 = vdwg.mxu0
    %v3210 = vadd.f32 %v3115, %v3159
    %v3211 = vadd.f32 %v3116, %v3161
    %v3212 = vadd.f32 %v3117, %v3202
    %v3213 = vadd.f32 %v3118, %v3204
    %v3214 = vadd.f32 %v3119, %v3163
    %v3215 = vadd.f32 %v3120, %v3165
    %v3216 = vadd.f32 %v3121, %v3206
    %v3217 = vadd.f32 %v3122, %v3208
    %v3218 = vxor.u32 %v3210, 2147483648
    %v3219 = vxor.u32 %v3214, 2147483648
    %v3220 = vmul.f32 %v3218, 1.442695
    %v3221 = vpow.pop %v3220
    %v3222 = vmul.f32 %v3219, 1.442695
    %v3223 = vpow.pop %v3222
    %v3224 = vadd.f32 %v3221, 1.0
    %v3225 = vadd.f32 %v3223, 1.0
    %v3226 = vrcp.pop %v3224
    %v3227 = vmul.f32 1.0, %v3226
    %v3228 = vrcp.pop %v3225
    %v3229 = vmul.f32 1.0, %v3228
    %v3230 = vxor.u32 %v3211, 2147483648
    %v3231 = vxor.u32 %v3215, 2147483648
    %v3232 = vmul.f32 %v3230, 1.442695
    %v3233 = vpow.pop %v3232
    %v3234 = vmul.f32 %v3231, 1.442695
    %v3235 = vpow.pop %v3234
    %v3236 = vadd.f32 %v3233, 1.0
    %v3237 = vadd.f32 %v3235, 1.0
    %v3238 = vrcp.pop %v3236
    %v3239 = vmul.f32 1.0, %v3238
    %v3240 = vrcp.pop %v3237
    %v3241 = vmul.f32 1.0, %v3240
    %v3242 = vtanh.pop %v3212
    %v3243 = vtanh.pop %v3216
    %v3244 = vxor.u32 %v3213, 2147483648
    %v3245 = vxor.u32 %v3217, 2147483648
    %v3246 = vmul.f32 %v3244, 1.442695
    %v3247 = vpow.pop %v3246
    %v3248 = vmul.f32 %v3245, 1.442695
    %v3249 = vpow.pop %v3248
    %v3250 = vadd.f32 %v3247, 1.0
    %v3251 = vadd.f32 %v3249, 1.0
    %v3252 = vrcp.pop %v3250
    %v3253 = vmul.f32 1.0, %v3252
    %v3254 = vrcp.pop %v3251
    %v3255 = vmul.f32 1.0, %v3254
    %v3256 = vmul.f32 %v3239, %v3109
    %v3257 = vmul.f32 %v3241, %v3110
    %v3258 = vmul.f32 %v3227, %v3242
    %v3259 = vmul.f32 %v3229, %v3243
    %v3260 = vadd.f32 %v3256, %v3258
    %v3261 = vadd.f32 %v3257, %v3259
    %v3262 = vtanh.pop %v3260
    %v3263 = vtanh.pop %v3261
    %v3264 = vmul.f32 %v3253, %v3262
    %v3265 = vmul.f32 %v3255, %v3263
    %v3266 = vld [vmem:[#allocation2 + $0xc0] sm:$0xff]
    %v3267 = vld [vmem:[#allocation2 + $0xc8] sm:$0xff]
    %v3268 = vld [vmem:[#allocation2 + $0xd0] sm:$0xff]
    %v3269 = vld [vmem:[#allocation2 + $0xd8] sm:$0xff]
    %v3270 = vld [vmem:[#allocation2 + $0xe0] sm:$0xff]
    %v3271 = vld [vmem:[#allocation2 + $0xe8] sm:$0xff]
    %v3272 = vld [vmem:[#allocation2 + $0xf0] sm:$0xff]
    %v3273 = vld [vmem:[#allocation2 + $0xf8] sm:$0xff]
    %v3274 = vpack.c.bf16 %v3265, %v3264
    %3275 = vmatprep.subr.bf16.mxu0 %v2759
    %3276 = vmatpush1.bf16.msra.mxu0 %v2758
    %3277 = vmatprep.subr.bf16.mxu0 %v2763
    %3278 = vmatpush1.bf16.msra.mxu0 %v2762
    %3279 = vmatprep.subr.bf16.mxu0 %v2767
    %3280 = vmatpush1.bf16.msra.mxu0 %v2766
    %3281 = vmatprep.subr.bf16.mxu0 %v2771
    %3282 = vmatpush1.bf16.msra.mxu0 %v2770
    %3283 = vmatprep.subr.bf16.mxu0 %v2775
    %3284 = vmatpush1.bf16.msra.mxu0 %v2774
    %3285 = vmatprep.subr.bf16.mxu0 %v2779
    %3286 = vmatpush1.bf16.msra.mxu0 %v2778
    %3287 = vmatprep.subr.bf16.mxu0 %v2783
    %3288 = vmatpush1.bf16.msra.mxu0 %v2782
    %3289 = vmatprep.subr.bf16.mxu0 %v2787
    %3290 = vmatpush1.bf16.msra.mxu0 %v2786
    %3291 = vmatprep.subr.bf16.mxu0 0
    %3292 = vmatpush1.bf16.msra.mxu0 0
    %3293 = vmatprep.subr.bf16.mxu0 0
    %3294 = vmatpush1.bf16.msra.mxu0 0
    %3295 = vmatprep.subr.bf16.mxu0 0
    %3296 = vmatpush1.bf16.msra.mxu0 0
    %3297 = vmatprep.subr.bf16.mxu0 0
    %3298 = vmatpush1.bf16.msra.mxu0 0
    %3299 = vmatprep.subr.bf16.mxu0 0
    %3300 = vmatpush1.bf16.msra.mxu0 0
    %3301 = vmatprep.subr.bf16.mxu0 0
    %3302 = vmatpush1.bf16.msra.mxu0 0
    %3303 = vmatprep.subr.bf16.mxu0 0
    %3304 = vmatpush1.bf16.msra.mxu0 0
    %3305 = vmatprep.subr.bf16.mxu0 0
    %3306 = vmatpush1.bf16.msra.mxu0 0
    %3307 = vmatprep.mubr.bf16.mxu0 0
    %3308 = vmatmul.mubr.bf16.gmra.mrb[0].mxu0 %v3274
    %v3309 = vpop.f32.mrb[0].mxu0
    %v3310 = vadd.f32 0.0, %v3309
    %v3311 = vpop.f32.mrb[0].mxu0
    %v3312 = vadd.f32 0.0, %v3311
    %v3313 = vpop.f32.mrb[0].mxu0
    %v3314 = vadd.f32 0.0, %v3313
    %v3315 = vpop.f32.mrb[0].mxu0
    %v3316 = vadd.f32 0.0, %v3315
    %3317 = vdwg.mxu0
    %3318 = vmatprep.subr.bf16.mxu0 %v2761
    %3319 = vmatpush1.bf16.msra.mxu0 %v2760
    %3320 = vmatprep.subr.bf16.mxu0 %v2765
    %3321 = vmatpush1.bf16.msra.mxu0 %v2764
    %3322 = vmatprep.subr.bf16.mxu0 %v2769
    %3323 = vmatpush1.bf16.msra.mxu0 %v2768
    %3324 = vmatprep.subr.bf16.mxu0 %v2773
    %3325 = vmatpush1.bf16.msra.mxu0 %v2772
    %3326 = vmatprep.subr.bf16.mxu0 %v2777
    %3327 = vmatpush1.bf16.msra.mxu0 %v2776
    %3328 = vmatprep.subr.bf16.mxu0 %v2781
    %3329 = vmatpush1.bf16.msra.mxu0 %v2780
    %3330 = vmatprep.subr.bf16.mxu0 %v2785
    %3331 = vmatpush1.bf16.msra.mxu0 %v2784
    %3332 = vmatprep.subr.bf16.mxu0 %v2789
    %3333 = vmatpush1.bf16.msra.mxu0 %v2788
    %3334 = vmatprep.subr.bf16.mxu0 0
    %3335 = vmatpush1.bf16.msra.mxu0 0
    %3336 = vmatprep.subr.bf16.mxu0 0
    %3337 = vmatpush1.bf16.msra.mxu0 0
    %3338 = vmatprep.subr.bf16.mxu0 0
    %3339 = vmatpush1.bf16.msra.mxu0 0
    %3340 = vmatprep.subr.bf16.mxu0 0
    %3341 = vmatpush1.bf16.msra.mxu0 0
    %3342 = vmatprep.subr.bf16.mxu0 0
    %3343 = vmatpush1.bf16.msra.mxu0 0
    %3344 = vmatprep.subr.bf16.mxu0 0
    %3345 = vmatpush1.bf16.msra.mxu0 0
    %3346 = vmatprep.subr.bf16.mxu0 0
    %3347 = vmatpush1.bf16.msra.mxu0 0
    %3348 = vmatprep.subr.bf16.mxu0 0
    %3349 = vmatpush1.bf16.msra.mxu0 0
    %3350 = vmatprep.mubr.bf16.mxu0 0
    %3351 = vmatmul.mubr.bf16.gmra.mrb[0].mxu0 %v3274
    %v3352 = vpop.f32.mrb[0].mxu0
    %v3353 = vadd.f32 0.0, %v3352
    %v3354 = vpop.f32.mrb[0].mxu0
    %v3355 = vadd.f32 0.0, %v3354
    %v3356 = vpop.f32.mrb[0].mxu0
    %v3357 = vadd.f32 0.0, %v3356
    %v3358 = vpop.f32.mrb[0].mxu0
    %v3359 = vadd.f32 0.0, %v3358
    %3360 = vdwg.mxu0
    %v3361 = vadd.f32 %v3266, %v3310
    %v3362 = vadd.f32 %v3267, %v3312
    %v3363 = vadd.f32 %v3268, %v3353
    %v3364 = vadd.f32 %v3269, %v3355
    %v3365 = vadd.f32 %v3270, %v3314
    %v3366 = vadd.f32 %v3271, %v3316
    %v3367 = vadd.f32 %v3272, %v3357
    %v3368 = vadd.f32 %v3273, %v3359
    %v3369 = vxor.u32 %v3361, 2147483648
    %v3370 = vxor.u32 %v3365, 2147483648
    %v3371 = vmul.f32 %v3369, 1.442695
    %v3372 = vpow.pop %v3371
    %v3373 = vmul.f32 %v3370, 1.442695
    %v3374 = vpow.pop %v3373
    %v3375 = vadd.f32 %v3372, 1.0
    %v3376 = vadd.f32 %v3374, 1.0
    %v3377 = vrcp.pop %v3375
    %v3378 = vmul.f32 1.0, %v3377
    %v3379 = vrcp.pop %v3376
    %v3380 = vmul.f32 1.0, %v3379
    %v3381 = vxor.u32 %v3362, 2147483648
    %v3382 = vxor.u32 %v3366, 2147483648
    %v3383 = vmul.f32 %v3381, 1.442695
    %v3384 = vpow.pop %v3383
    %v3385 = vmul.f32 %v3382, 1.442695
    %v3386 = vpow.pop %v3385
    %v3387 = vadd.f32 %v3384, 1.0
    %v3388 = vadd.f32 %v3386, 1.0
    %v3389 = vrcp.pop %v3387
    %v3390 = vmul.f32 1.0, %v3389
    %v3391 = vrcp.pop %v3388
    %v3392 = vmul.f32 1.0, %v3391
    %v3393 = vtanh.pop %v3363
    %v3394 = vtanh.pop %v3367
    %v3395 = vxor.u32 %v3364, 2147483648
    %v3396 = vxor.u32 %v3368, 2147483648
    %v3397 = vmul.f32 %v3395, 1.442695
    %v3398 = vpow.pop %v3397
    %v3399 = vmul.f32 %v3396, 1.442695
    %v3400 = vpow.pop %v3399
    %v3401 = vadd.f32 %v3398, 1.0
    %v3402 = vadd.f32 %v3400, 1.0
    %v3403 = vrcp.pop %v3401
    %v3404 = vmul.f32 1.0, %v3403
    %v3405 = vrcp.pop %v3402
    %v3406 = vmul.f32 1.0, %v3405
    %v3407 = vmul.f32 %v3390, %v3260
    %v3408 = vmul.f32 %v3392, %v3261
    %v3409 = vmul.f32 %v3378, %v3393
    %v3410 = vmul.f32 %v3380, %v3394
    %v3411 = vadd.f32 %v3407, %v3409
    %v3412 = vadd.f32 %v3408, %v3410
    %v3413 = vtanh.pop %v3411
    %v3414 = vtanh.pop %v3412
    %v3415 = vmul.f32 %v3404, %v3413
    %v3416 = vmul.f32 %v3406, %v3414
    %v3417 = vld [vmem:[#allocation2 + $0x100] sm:$0xff]
    %v3418 = vld [vmem:[#allocation2 + $0x108] sm:$0xff]
    %v3419 = vld [vmem:[#allocation2 + $0x110] sm:$0xff]
    %v3420 = vld [vmem:[#allocation2 + $0x118] sm:$0xff]
    %v3421 = vld [vmem:[#allocation2 + $0x120] sm:$0xff]
    %v3422 = vld [vmem:[#allocation2 + $0x128] sm:$0xff]
    %v3423 = vld [vmem:[#allocation2 + $0x130] sm:$0xff]
    %v3424 = vld [vmem:[#allocation2 + $0x138] sm:$0xff]
    %v3425 = vpack.c.bf16 %v3416, %v3415
    %3426 = vmatprep.subr.bf16.mxu0 %v2759
    %3427 = vmatpush1.bf16.msra.mxu0 %v2758
    %3428 = vmatprep.subr.bf16.mxu0 %v2763
    %3429 = vmatpush1.bf16.msra.mxu0 %v2762
    %3430 = vmatprep.subr.bf16.mxu0 %v2767
    %3431 = vmatpush1.bf16.msra.mxu0 %v2766
    %3432 = vmatprep.subr.bf16.mxu0 %v2771
    %3433 = vmatpush1.bf16.msra.mxu0 %v2770
    %3434 = vmatprep.subr.bf16.mxu0 %v2775
    %3435 = vmatpush1.bf16.msra.mxu0 %v2774
    %3436 = vmatprep.subr.bf16.mxu0 %v2779
    %3437 = vmatpush1.bf16.msra.mxu0 %v2778
    %3438 = vmatprep.subr.bf16.mxu0 %v2783
    %3439 = vmatpush1.bf16.msra.mxu0 %v2782
    %3440 = vmatprep.subr.bf16.mxu0 %v2787
    %3441 = vmatpush1.bf16.msra.mxu0 %v2786
    %3442 = vmatprep.subr.bf16.mxu0 0
    %3443 = vmatpush1.bf16.msra.mxu0 0
    %3444 = vmatprep.subr.bf16.mxu0 0
    %3445 = vmatpush1.bf16.msra.mxu0 0
    %3446 = vmatprep.subr.bf16.mxu0 0
    %3447 = vmatpush1.bf16.msra.mxu0 0
    %3448 = vmatprep.subr.bf16.mxu0 0
    %3449 = vmatpush1.bf16.msra.mxu0 0
    %3450 = vmatprep.subr.bf16.mxu0 0
    %3451 = vmatpush1.bf16.msra.mxu0 0
    %3452 = vmatprep.subr.bf16.mxu0 0
    %3453 = vmatpush1.bf16.msra.mxu0 0
    %3454 = vmatprep.subr.bf16.mxu0 0
    %3455 = vmatpush1.bf16.msra.mxu0 0
    %3456 = vmatprep.subr.bf16.mxu0 0
    %3457 = vmatpush1.bf16.msra.mxu0 0
    %3458 = vmatprep.mubr.bf16.mxu0 0
    %3459 = vmatmul.mubr.bf16.gmra.mrb[0].mxu0 %v3425
    %v3460 = vpop.f32.mrb[0].mxu0
    %v3461 = vadd.f32 0.0, %v3460
    %v3462 = vpop.f32.mrb[0].mxu0
    %v3463 = vadd.f32 0.0, %v3462
    %v3464 = vpop.f32.mrb[0].mxu0
    %v3465 = vadd.f32 0.0, %v3464
    %v3466 = vpop.f32.mrb[0].mxu0
    %v3467 = vadd.f32 0.0, %v3466
    %3468 = vdwg.mxu0
    %3469 = vmatprep.subr.bf16.mxu0 %v2761
    %3470 = vmatpush1.bf16.msra.mxu0 %v2760
    %3471 = vmatprep.subr.bf16.mxu0 %v2765
    %3472 = vmatpush1.bf16.msra.mxu0 %v2764
    %3473 = vmatprep.subr.bf16.mxu0 %v2769
    %3474 = vmatpush1.bf16.msra.mxu0 %v2768
    %3475 = vmatprep.subr.bf16.mxu0 %v2773
    %3476 = vmatpush1.bf16.msra.mxu0 %v2772
    %3477 = vmatprep.subr.bf16.mxu0 %v2777
    %3478 = vmatpush1.bf16.msra.mxu0 %v2776
    %3479 = vmatprep.subr.bf16.mxu0 %v2781
    %3480 = vmatpush1.bf16.msra.mxu0 %v2780
    %3481 = vmatprep.subr.bf16.mxu0 %v2785
    %3482 = vmatpush1.bf16.msra.mxu0 %v2784
    %3483 = vmatprep.subr.bf16.mxu0 %v2789
    %3484 = vmatpush1.bf16.msra.mxu0 %v2788
    %3485 = vmatprep.subr.bf16.mxu0 0
    %3486 = vmatpush1.bf16.msra.mxu0 0
    %3487 = vmatprep.subr.bf16.mxu0 0
    %3488 = vmatpush1.bf16.msra.mxu0 0
    %3489 = vmatprep.subr.bf16.mxu0 0
    %3490 = vmatpush1.bf16.msra.mxu0 0
    %3491 = vmatprep.subr.bf16.mxu0 0
    %3492 = vmatpush1.bf16.msra.mxu0 0
    %3493 = vmatprep.subr.bf16.mxu0 0
    %3494 = vmatpush1.bf16.msra.mxu0 0
    %3495 = vmatprep.subr.bf16.mxu0 0
    %3496 = vmatpush1.bf16.msra.mxu0 0
    %3497 = vmatprep.subr.bf16.mxu0 0
    %3498 = vmatpush1.bf16.msra.mxu0 0
    %3499 = vmatprep.subr.bf16.mxu0 0
    %3500 = vmatpush1.bf16.msra.mxu0 0
    %3501 = vmatprep.mubr.bf16.mxu0 0
    %3502 = vmatmul.mubr.bf16.gmra.mrb[0].mxu0 %v3425
    %v3503 = vpop.f32.mrb[0].mxu0
    %v3504 = vadd.f32 0.0, %v3503
    %v3505 = vpop.f32.mrb[0].mxu0
    %v3506 = vadd.f32 0.0, %v3505
    %v3507 = vpop.f32.mrb[0].mxu0
    %v3508 = vadd.f32 0.0, %v3507
    %v3509 = vpop.f32.mrb[0].mxu0
    %v3510 = vadd.f32 0.0, %v3509
    %3511 = vdwg.mxu0
    %v3512 = vadd.f32 %v3417, %v3461
    %v3513 = vadd.f32 %v3418, %v3463
    %v3514 = vadd.f32 %v3419, %v3504
    %v3515 = vadd.f32 %v3420, %v3506
    %v3516 = vadd.f32 %v3421, %v3465
    %v3517 = vadd.f32 %v3422, %v3467
    %v3518 = vadd.f32 %v3423, %v3508
    %v3519 = vadd.f32 %v3424, %v3510
    %v3520 = vxor.u32 %v3512, 2147483648
    %v3521 = vxor.u32 %v3516, 2147483648
    %v3522 = vmul.f32 %v3520, 1.442695
    %v3523 = vpow.pop %v3522
    %v3524 = vmul.f32 %v3521, 1.442695
    %v3525 = vpow.pop %v3524
    %v3526 = vadd.f32 %v3523, 1.0
    %v3527 = vadd.f32 %v3525, 1.0
    %v3528 = vrcp.pop %v3526
    %v3529 = vmul.f32 1.0, %v3528
    %v3530 = vrcp.pop %v3527
    %v3531 = vmul.f32 1.0, %v3530
    %v3532 = vxor.u32 %v3513, 2147483648
    %v3533 = vxor.u32 %v3517, 2147483648
    %v3534 = vmul.f32 %v3532, 1.442695
    %v3535 = vpow.pop %v3534
    %v3536 = vmul.f32 %v3533, 1.442695
    %v3537 = vpow.pop %v3536
    %v3538 = vadd.f32 %v3535, 1.0
    %v3539 = vadd.f32 %v3537, 1.0
    %v3540 = vrcp.pop %v3538
    %v3541 = vmul.f32 1.0, %v3540
    %v3542 = vrcp.pop %v3539
    %v3543 = vmul.f32 1.0, %v3542
    %v3544 = vtanh.pop %v3514
    %v3545 = vtanh.pop %v3518
    %v3546 = vxor.u32 %v3515, 2147483648
    %v3547 = vxor.u32 %v3519, 2147483648
    %v3548 = vmul.f32 %v3546, 1.442695
    %v3549 = vpow.pop %v3548
    %v3550 = vmul.f32 %v3547, 1.442695
    %v3551 = vpow.pop %v3550
    %v3552 = vadd.f32 %v3549, 1.0
    %v3553 = vadd.f32 %v3551, 1.0
    %v3554 = vrcp.pop %v3552
    %v3555 = vmul.f32 1.0, %v3554
    %v3556 = vrcp.pop %v3553
    %v3557 = vmul.f32 1.0, %v3556
    %v3558 = vmul.f32 %v3541, %v3411
    %v3559 = vmul.f32 %v3543, %v3412
    %v3560 = vmul.f32 %v3529, %v3544
    %v3561 = vmul.f32 %v3531, %v3545
    %v3562 = vadd.f32 %v3558, %v3560
    %v3563 = vadd.f32 %v3559, %v3561
    %v3564 = vtanh.pop %v3562
    %v3565 = vtanh.pop %v3563
    %v3566 = vmul.f32 %v3555, %v3564
    %v3567 = vmul.f32 %v3557, %v3565
    %v3568 = vld [vmem:[#allocation2 + $0x140] sm:$0xff]
    %v3569 = vld [vmem:[#allocation2 + $0x148] sm:$0xff]
    %v3570 = vld [vmem:[#allocation2 + $0x150] sm:$0xff]
    %v3571 = vld [vmem:[#allocation2 + $0x158] sm:$0xff]
    %v3572 = vld [vmem:[#allocation2 + $0x160] sm:$0xff]
    %v3573 = vld [vmem:[#allocation2 + $0x168] sm:$0xff]
    %v3574 = vld [vmem:[#allocation2 + $0x170] sm:$0xff]
    %v3575 = vld [vmem:[#allocation2 + $0x178] sm:$0xff]
    %v3576 = vpack.c.bf16 %v3567, %v3566
    %3577 = vmatprep.subr.bf16.mxu0 %v2759
    %3578 = vmatpush1.bf16.msra.mxu0 %v2758
    %3579 = vmatprep.subr.bf16.mxu0 %v2763
    %3580 = vmatpush1.bf16.msra.mxu0 %v2762
    %3581 = vmatprep.subr.bf16.mxu0 %v2767
    %3582 = vmatpush1.bf16.msra.mxu0 %v2766
    %3583 = vmatprep.subr.bf16.mxu0 %v2771
    %3584 = vmatpush1.bf16.msra.mxu0 %v2770
    %3585 = vmatprep.subr.bf16.mxu0 %v2775
    %3586 = vmatpush1.bf16.msra.mxu0 %v2774
    %3587 = vmatprep.subr.bf16.mxu0 %v2779
    %3588 = vmatpush1.bf16.msra.mxu0 %v2778
    %3589 = vmatprep.subr.bf16.mxu0 %v2783
    %3590 = vmatpush1.bf16.msra.mxu0 %v2782
    %3591 = vmatprep.subr.bf16.mxu0 %v2787
    %3592 = vmatpush1.bf16.msra.mxu0 %v2786
    %3593 = vmatprep.subr.bf16.mxu0 0
    %3594 = vmatpush1.bf16.msra.mxu0 0
    %3595 = vmatprep.subr.bf16.mxu0 0
    %3596 = vmatpush1.bf16.msra.mxu0 0
    %3597 = vmatprep.subr.bf16.mxu0 0
    %3598 = vmatpush1.bf16.msra.mxu0 0
    %3599 = vmatprep.subr.bf16.mxu0 0
    %3600 = vmatpush1.bf16.msra.mxu0 0
    %3601 = vmatprep.subr.bf16.mxu0 0
    %3602 = vmatpush1.bf16.msra.mxu0 0
    %3603 = vmatprep.subr.bf16.mxu0 0
    %3604 = vmatpush1.bf16.msra.mxu0 0
    %3605 = vmatprep.subr.bf16.mxu0 0
    %3606 = vmatpush1.bf16.msra.mxu0 0
    %3607 = vmatprep.subr.bf16.mxu0 0
    %3608 = vmatpush1.bf16.msra.mxu0 0
    %3609 = vmatprep.mubr.bf16.mxu0 0
    %3610 = vmatmul.mubr.bf16.gmra.mrb[0].mxu0 %v3576
    %v3611 = vpop.f32.mrb[0].mxu0
    %v3612 = vadd.f32 0.0, %v3611
    %v3613 = vpop.f32.mrb[0].mxu0
    %v3614 = vadd.f32 0.0, %v3613
    %v3615 = vpop.f32.mrb[0].mxu0
    %v3616 = vadd.f32 0.0, %v3615
    %v3617 = vpop.f32.mrb[0].mxu0
    %v3618 = vadd.f32 0.0, %v3617
    %3619 = vdwg.mxu0
    %3620 = vmatprep.subr.bf16.mxu0 %v2761
    %3621 = vmatpush1.bf16.msra.mxu0 %v2760
    %3622 = vmatprep.subr.bf16.mxu0 %v2765
    %3623 = vmatpush1.bf16.msra.mxu0 %v2764
    %3624 = vmatprep.subr.bf16.mxu0 %v2769
    %3625 = vmatpush1.bf16.msra.mxu0 %v2768
    %3626 = vmatprep.subr.bf16.mxu0 %v2773
    %3627 = vmatpush1.bf16.msra.mxu0 %v2772
    %3628 = vmatprep.subr.bf16.mxu0 %v2777
    %3629 = vmatpush1.bf16.msra.mxu0 %v2776
    %3630 = vmatprep.subr.bf16.mxu0 %v2781
    %3631 = vmatpush1.bf16.msra.mxu0 %v2780
    %3632 = vmatprep.subr.bf16.mxu0 %v2785
    %3633 = vmatpush1.bf16.msra.mxu0 %v2784
    %3634 = vmatprep.subr.bf16.mxu0 %v2789
    %3635 = vmatpush1.bf16.msra.mxu0 %v2788
    %3636 = vmatprep.subr.bf16.mxu0 0
    %3637 = vmatpush1.bf16.msra.mxu0 0
    %3638 = vmatprep.subr.bf16.mxu0 0
    %3639 = vmatpush1.bf16.msra.mxu0 0
    %3640 = vmatprep.subr.bf16.mxu0 0
    %3641 = vmatpush1.bf16.msra.mxu0 0
    %3642 = vmatprep.subr.bf16.mxu0 0
    %3643 = vmatpush1.bf16.msra.mxu0 0
    %3644 = vmatprep.subr.bf16.mxu0 0
    %3645 = vmatpush1.bf16.msra.mxu0 0
    %3646 = vmatprep.subr.bf16.mxu0 0
    %3647 = vmatpush1.bf16.msra.mxu0 0
    %3648 = vmatprep.subr.bf16.mxu0 0
    %3649 = vmatpush1.bf16.msra.mxu0 0
    %3650 = vmatprep.subr.bf16.mxu0 0
    %3651 = vmatpush1.bf16.msra.mxu0 0
    %3652 = vmatprep.mubr.bf16.mxu0 0
    %3653 = vmatmul.mubr.bf16.gmra.mrb[0].mxu0 %v3576
    %v3654 = vpop.f32.mrb[0].mxu0
    %v3655 = vadd.f32 0.0, %v3654
    %v3656 = vpop.f32.mrb[0].mxu0
    %v3657 = vadd.f32 0.0, %v3656
    %v3658 = vpop.f32.mrb[0].mxu0
    %v3659 = vadd.f32 0.0, %v3658
    %v3660 = vpop.f32.mrb[0].mxu0
    %v3661 = vadd.f32 0.0, %v3660
    %3662 = vdwg.mxu0
    %v3663 = vadd.f32 %v3568, %v3612
    %v3664 = vadd.f32 %v3569, %v3614
    %v3665 = vadd.f32 %v3570, %v3655
    %v3666 = vadd.f32 %v3571, %v3657
    %v3667 = vadd.f32 %v3572, %v3616
    %v3668 = vadd.f32 %v3573, %v3618
    %v3669 = vadd.f32 %v3574, %v3659
    %v3670 = vadd.f32 %v3575, %v3661
    %v3671 = vxor.u32 %v3663, 2147483648
    %v3672 = vxor.u32 %v3667, 2147483648
    %v3673 = vmul.f32 %v3671, 1.442695
    %v3674 = vpow.pop %v3673
    %v3675 = vmul.f32 %v3672, 1.442695
    %v3676 = vpow.pop %v3675
    %v3677 = vadd.f32 %v3674, 1.0
    %v3678 = vadd.f32 %v3676, 1.0
    %v3679 = vrcp.pop %v3677
    %v3680 = vmul.f32 1.0, %v3679
    %v3681 = vrcp.pop %v3678
    %v3682 = vmul.f32 1.0, %v3681
    %v3683 = vxor.u32 %v3664, 2147483648
    %v3684 = vxor.u32 %v3668, 2147483648
    %v3685 = vmul.f32 %v3683, 1.442695
    %v3686 = vpow.pop %v3685
    %v3687 = vmul.f32 %v3684, 1.442695
    %v3688 = vpow.pop %v3687
    %v3689 = vadd.f32 %v3686, 1.0
    %v3690 = vadd.f32 %v3688, 1.0
    %v3691 = vrcp.pop %v3689
    %v3692 = vmul.f32 1.0, %v3691
    %v3693 = vrcp.pop %v3690
    %v3694 = vmul.f32 1.0, %v3693
    %v3695 = vtanh.pop %v3665
    %v3696 = vtanh.pop %v3669
    %v3697 = vxor.u32 %v3666, 2147483648
    %v3698 = vxor.u32 %v3670, 2147483648
    %v3699 = vmul.f32 %v3697, 1.442695
    %v3700 = vpow.pop %v3699
    %v3701 = vmul.f32 %v3698, 1.442695
    %v3702 = vpow.pop %v3701
    %v3703 = vadd.f32 %v3700, 1.0
    %v3704 = vadd.f32 %v3702, 1.0
    %v3705 = vrcp.pop %v3703
    %v3706 = vmul.f32 1.0, %v3705
    %v3707 = vrcp.pop %v3704
    %v3708 = vmul.f32 1.0, %v3707
    %v3709 = vmul.f32 %v3692, %v3562
    %v3710 = vmul.f32 %v3694, %v3563
    %v3711 = vmul.f32 %v3680, %v3695
    %v3712 = vmul.f32 %v3682, %v3696
    %v3713 = vadd.f32 %v3709, %v3711
    %v3714 = vadd.f32 %v3710, %v3712
    %v3715 = vtanh.pop %v3713
    %v3716 = vtanh.pop %v3714
    %v3717 = vmul.f32 %v3706, %v3715
    %v3718 = vmul.f32 %v3708, %v3716
    %v3719 = vld [vmem:[#allocation2 + $0x180] sm:$0xff]
    %v3720 = vld [vmem:[#allocation2 + $0x188] sm:$0xff]
    %v3721 = vld [vmem:[#allocation2 + $0x190] sm:$0xff]
    %v3722 = vld [vmem:[#allocation2 + $0x198] sm:$0xff]
    %v3723 = vld [vmem:[#allocation2 + $0x1a0] sm:$0xff]
    %v3724 = vld [vmem:[#allocation2 + $0x1a8] sm:$0xff]
    %v3725 = vld [vmem:[#allocation2 + $0x1b0] sm:$0xff]
    %v3726 = vld [vmem:[#allocation2 + $0x1b8] sm:$0xff]
    %v3727 = vpack.c.bf16 %v3718, %v3717
    %3728 = vmatprep.subr.bf16.mxu0 %v2759
    %3729 = vmatpush1.bf16.msra.mxu0 %v2758
    %3730 = vmatprep.subr.bf16.mxu0 %v2763
    %3731 = vmatpush1.bf16.msra.mxu0 %v2762
    %3732 = vmatprep.subr.bf16.mxu0 %v2767
    %3733 = vmatpush1.bf16.msra.mxu0 %v2766
    %3734 = vmatprep.subr.bf16.mxu0 %v2771
    %3735 = vmatpush1.bf16.msra.mxu0 %v2770
    %3736 = vmatprep.subr.bf16.mxu0 %v2775
    %3737 = vmatpush1.bf16.msra.mxu0 %v2774
    %3738 = vmatprep.subr.bf16.mxu0 %v2779
    %3739 = vmatpush1.bf16.msra.mxu0 %v2778
    %3740 = vmatprep.subr.bf16.mxu0 %v2783
    %3741 = vmatpush1.bf16.msra.mxu0 %v2782
    %3742 = vmatprep.subr.bf16.mxu0 %v2787
    %3743 = vmatpush1.bf16.msra.mxu0 %v2786
    %3744 = vmatprep.subr.bf16.mxu0 0
    %3745 = vmatpush1.bf16.msra.mxu0 0
    %3746 = vmatprep.subr.bf16.mxu0 0
    %3747 = vmatpush1.bf16.msra.mxu0 0
    %3748 = vmatprep.subr.bf16.mxu0 0
    %3749 = vmatpush1.bf16.msra.mxu0 0
    %3750 = vmatprep.subr.bf16.mxu0 0
    %3751 = vmatpush1.bf16.msra.mxu0 0
    %3752 = vmatprep.subr.bf16.mxu0 0
    %3753 = vmatpush1.bf16.msra.mxu0 0
    %3754 = vmatprep.subr.bf16.mxu0 0
    %3755 = vmatpush1.bf16.msra.mxu0 0
    %3756 = vmatprep.subr.bf16.mxu0 0
    %3757 = vmatpush1.bf16.msra.mxu0 0
    %3758 = vmatprep.subr.bf16.mxu0 0
    %3759 = vmatpush1.bf16.msra.mxu0 0
    %3760 = vmatprep.mubr.bf16.mxu0 0
    %3761 = vmatmul.mubr.bf16.gmra.mrb[0].mxu0 %v3727
    %v3762 = vpop.f32.mrb[0].mxu0
    %v3763 = vadd.f32 0.0, %v3762
    %v3764 = vpop.f32.mrb[0].mxu0
    %v3765 = vadd.f32 0.0, %v3764
    %v3766 = vpop.f32.mrb[0].mxu0
    %v3767 = vadd.f32 0.0, %v3766
    %v3768 = vpop.f32.mrb[0].mxu0
    %v3769 = vadd.f32 0.0, %v3768
    %3770 = vdwg.mxu0
    %3771 = vmatprep.subr.bf16.mxu0 %v2761
    %3772 = vmatpush1.bf16.msra.mxu0 %v2760
    %3773 = vmatprep.subr.bf16.mxu0 %v2765
    %3774 = vmatpush1.bf16.msra.mxu0 %v2764
    %3775 = vmatprep.subr.bf16.mxu0 %v2769
    %3776 = vmatpush1.bf16.msra.mxu0 %v2768
    %3777 = vmatprep.subr.bf16.mxu0 %v2773
    %3778 = vmatpush1.bf16.msra.mxu0 %v2772
    %3779 = vmatprep.subr.bf16.mxu0 %v2777
    %3780 = vmatpush1.bf16.msra.mxu0 %v2776
    %3781 = vmatprep.subr.bf16.mxu0 %v2781
    %3782 = vmatpush1.bf16.msra.mxu0 %v2780
    %3783 = vmatprep.subr.bf16.mxu0 %v2785
    %3784 = vmatpush1.bf16.msra.mxu0 %v2784
    %3785 = vmatprep.subr.bf16.mxu0 %v2789
    %3786 = vmatpush1.bf16.msra.mxu0 %v2788
    %3787 = vmatprep.subr.bf16.mxu0 0
    %3788 = vmatpush1.bf16.msra.mxu0 0
    %3789 = vmatprep.subr.bf16.mxu0 0
    %3790 = vmatpush1.bf16.msra.mxu0 0
    %3791 = vmatprep.subr.bf16.mxu0 0
    %3792 = vmatpush1.bf16.msra.mxu0 0
    %3793 = vmatprep.subr.bf16.mxu0 0
    %3794 = vmatpush1.bf16.msra.mxu0 0
    %3795 = vmatprep.subr.bf16.mxu0 0
    %3796 = vmatpush1.bf16.msra.mxu0 0
    %3797 = vmatprep.subr.bf16.mxu0 0
    %3798 = vmatpush1.bf16.msra.mxu0 0
    %3799 = vmatprep.subr.bf16.mxu0 0
    %3800 = vmatpush1.bf16.msra.mxu0 0
    %3801 = vmatprep.subr.bf16.mxu0 0
    %3802 = vmatpush1.bf16.msra.mxu0 0
    %3803 = vmatprep.mubr.bf16.mxu0 0
    %3804 = vmatmul.mubr.bf16.gmra.mrb[0].mxu0 %v3727
    %v3805 = vpop.f32.mrb[0].mxu0
    %v3806 = vadd.f32 0.0, %v3805
    %v3807 = vpop.f32.mrb[0].mxu0
    %v3808 = vadd.f32 0.0, %v3807
    %v3809 = vpop.f32.mrb[0].mxu0
    %v3810 = vadd.f32 0.0, %v3809
    %v3811 = vpop.f32.mrb[0].mxu0
    %v3812 = vadd.f32 0.0, %v3811
    %3813 = vdwg.mxu0
    %v3814 = vadd.f32 %v3719, %v3763
    %v3815 = vadd.f32 %v3720, %v3765
    %v3816 = vadd.f32 %v3721, %v3806
    %v3817 = vadd.f32 %v3722, %v3808
    %v3818 = vadd.f32 %v3723, %v3767
    %v3819 = vadd.f32 %v3724, %v3769
    %v3820 = vadd.f32 %v3725, %v3810
    %v3821 = vadd.f32 %v3726, %v3812
    %v3822 = vxor.u32 %v3814, 2147483648
    %v3823 = vxor.u32 %v3818, 2147483648
    %v3824 = vmul.f32 %v3822, 1.442695
    %v3825 = vpow.pop %v3824
    %v3826 = vmul.f32 %v3823, 1.442695
    %v3827 = vpow.pop %v3826
    %v3828 = vadd.f32 %v3825, 1.0
    %v3829 = vadd.f32 %v3827, 1.0
    %v3830 = vrcp.pop %v3828
    %v3831 = vmul.f32 1.0, %v3830
    %v3832 = vrcp.pop %v3829
    %v3833 = vmul.f32 1.0, %v3832
    %v3834 = vxor.u32 %v3815, 2147483648
    %v3835 = vxor.u32 %v3819, 2147483648
    %v3836 = vmul.f32 %v3834, 1.442695
    %v3837 = vpow.pop %v3836
    %v3838 = vmul.f32 %v3835, 1.442695
    %v3839 = vpow.pop %v3838
    %v3840 = vadd.f32 %v3837, 1.0
    %v3841 = vadd.f32 %v3839, 1.0
    %v3842 = vrcp.pop %v3840
    %v3843 = vmul.f32 1.0, %v3842
    %v3844 = vrcp.pop %v3841
    %v3845 = vmul.f32 1.0, %v3844
    %v3846 = vtanh.pop %v3816
    %v3847 = vtanh.pop %v3820
    %v3848 = vxor.u32 %v3817, 2147483648
    %v3849 = vxor.u32 %v3821, 2147483648
    %v3850 = vmul.f32 %v3848, 1.442695
    %v3851 = vpow.pop %v3850
    %v3852 = vmul.f32 %v3849, 1.442695
    %v3853 = vpow.pop %v3852
    %v3854 = vadd.f32 %v3851, 1.0
    %v3855 = vadd.f32 %v3853, 1.0
    %v3856 = vrcp.pop %v3854
    %v3857 = vmul.f32 1.0, %v3856
    %v3858 = vrcp.pop %v3855
    %v3859 = vmul.f32 1.0, %v3858
    %v3860 = vmul.f32 %v3843, %v3713
    %v3861 = vmul.f32 %v3845, %v3714
    %v3862 = vmul.f32 %v3831, %v3846
    %v3863 = vmul.f32 %v3833, %v3847
    %v3864 = vadd.f32 %v3860, %v3862
    %v3865 = vadd.f32 %v3861, %v3863
    %v3866 = vtanh.pop %v3864
    %v3867 = vtanh.pop %v3865
    %v3868 = vmul.f32 %v3857, %v3866
    %v3869 = vmul.f32 %v3859, %v3867
    %v3870 = vld [vmem:[#allocation2 + $0x1c0] sm:$0xff]
    %v3871 = vld [vmem:[#allocation2 + $0x1c8] sm:$0xff]
    %v3872 = vld [vmem:[#allocation2 + $0x1d0] sm:$0xff]
    %v3873 = vld [vmem:[#allocation2 + $0x1d8] sm:$0xff]
    %v3874 = vld [vmem:[#allocation2 + $0x1e0] sm:$0xff]
    %v3875 = vld [vmem:[#allocation2 + $0x1e8] sm:$0xff]
    %v3876 = vld [vmem:[#allocation2 + $0x1f0] sm:$0xff]
    %v3877 = vld [vmem:[#allocation2 + $0x1f8] sm:$0xff]
    %v3878 = vpack.c.bf16 %v3869, %v3868
    %3879 = vmatprep.subr.bf16.mxu0 %v2759
    %3880 = vmatpush1.bf16.msra.mxu0 %v2758
    %3881 = vmatprep.subr.bf16.mxu0 %v2763
    %3882 = vmatpush1.bf16.msra.mxu0 %v2762
    %3883 = vmatprep.subr.bf16.mxu0 %v2767
    %3884 = vmatpush1.bf16.msra.mxu0 %v2766
    %3885 = vmatprep.subr.bf16.mxu0 %v2771
    %3886 = vmatpush1.bf16.msra.mxu0 %v2770
    %3887 = vmatprep.subr.bf16.mxu0 %v2775
    %3888 = vmatpush1.bf16.msra.mxu0 %v2774
    %3889 = vmatprep.subr.bf16.mxu0 %v2779
    %3890 = vmatpush1.bf16.msra.mxu0 %v2778
    %3891 = vmatprep.subr.bf16.mxu0 %v2783
    %3892 = vmatpush1.bf16.msra.mxu0 %v2782
    %3893 = vmatprep.subr.bf16.mxu0 %v2787
    %3894 = vmatpush1.bf16.msra.mxu0 %v2786
    %3895 = vmatprep.subr.bf16.mxu0 0
    %3896 = vmatpush1.bf16.msra.mxu0 0
    %3897 = vmatprep.subr.bf16.mxu0 0
    %3898 = vmatpush1.bf16.msra.mxu0 0
    %3899 = vmatprep.subr.bf16.mxu0 0
    %3900 = vmatpush1.bf16.msra.mxu0 0
    %3901 = vmatprep.subr.bf16.mxu0 0
    %3902 = vmatpush1.bf16.msra.mxu0 0
    %3903 = vmatprep.subr.bf16.mxu0 0
    %3904 = vmatpush1.bf16.msra.mxu0 0
    %3905 = vmatprep.subr.bf16.mxu0 0
    %3906 = vmatpush1.bf16.msra.mxu0 0
    %3907 = vmatprep.subr.bf16.mxu0 0
    %3908 = vmatpush1.bf16.msra.mxu0 0
    %3909 = vmatprep.subr.bf16.mxu0 0
    %3910 = vmatpush1.bf16.msra.mxu0 0
    %3911 = vmatprep.mubr.bf16.mxu0 0
    %3912 = vmatmul.mubr.bf16.gmra.mrb[0].mxu0 %v3878
    %v3913 = vpop.f32.mrb[0].mxu0
    %v3914 = vadd.f32 0.0, %v3913
    %v3915 = vpop.f32.mrb[0].mxu0
    %v3916 = vadd.f32 0.0, %v3915
    %v3917 = vpop.f32.mrb[0].mxu0
    %v3918 = vadd.f32 0.0, %v3917
    %v3919 = vpop.f32.mrb[0].mxu0
    %v3920 = vadd.f32 0.0, %v3919
    %3921 = vdwg.mxu0
    %3922 = vmatprep.subr.bf16.mxu0 %v2761
    %3923 = vmatpush1.bf16.msra.mxu0 %v2760
    %3924 = vmatprep.subr.bf16.mxu0 %v2765
    %3925 = vmatpush1.bf16.msra.mxu0 %v2764
    %3926 = vmatprep.subr.bf16.mxu0 %v2769
    %3927 = vmatpush1.bf16.msra.mxu0 %v2768
    %3928 = vmatprep.subr.bf16.mxu0 %v2773
    %3929 = vmatpush1.bf16.msra.mxu0 %v2772
    %3930 = vmatprep.subr.bf16.mxu0 %v2777
    %3931 = vmatpush1.bf16.msra.mxu0 %v2776
    %3932 = vmatprep.subr.bf16.mxu0 %v2781
    %3933 = vmatpush1.bf16.msra.mxu0 %v2780
    %3934 = vmatprep.subr.bf16.mxu0 %v2785
    %3935 = vmatpush1.bf16.msra.mxu0 %v2784
    %3936 = vmatprep.subr.bf16.mxu0 %v2789
    %3937 = vmatpush1.bf16.msra.mxu0 %v2788
    %3938 = vmatprep.subr.bf16.mxu0 0
    %3939 = vmatpush1.bf16.msra.mxu0 0
    %3940 = vmatprep.subr.bf16.mxu0 0
    %3941 = vmatpush1.bf16.msra.mxu0 0
    %3942 = vmatprep.subr.bf16.mxu0 0
    %3943 = vmatpush1.bf16.msra.mxu0 0
    %3944 = vmatprep.subr.bf16.mxu0 0
    %3945 = vmatpush1.bf16.msra.mxu0 0
    %3946 = vmatprep.subr.bf16.mxu0 0
    %3947 = vmatpush1.bf16.msra.mxu0 0
    %3948 = vmatprep.subr.bf16.mxu0 0
    %3949 = vmatpush1.bf16.msra.mxu0 0
    %3950 = vmatprep.subr.bf16.mxu0 0
    %3951 = vmatpush1.bf16.msra.mxu0 0
    %3952 = vmatprep.subr.bf16.mxu0 0
    %3953 = vmatpush1.bf16.msra.mxu0 0
    %3954 = vmatprep.mubr.bf16.mxu0 0
    %3955 = vmatmul.mubr.bf16.gmra.mrb[0].mxu0 %v3878
    %v3956 = vpop.f32.mrb[0].mxu0
    %v3957 = vadd.f32 0.0, %v3956
    %v3958 = vpop.f32.mrb[0].mxu0
    %v3959 = vadd.f32 0.0, %v3958
    %v3960 = vpop.f32.mrb[0].mxu0
    %v3961 = vadd.f32 0.0, %v3960
    %v3962 = vpop.f32.mrb[0].mxu0
    %v3963 = vadd.f32 0.0, %v3962
    %3964 = vdwg.mxu0
    %v3965 = vadd.f32 %v3870, %v3914
    %v3966 = vadd.f32 %v3871, %v3916
    %v3967 = vadd.f32 %v3872, %v3957
    %v3968 = vadd.f32 %v3873, %v3959
    %v3969 = vadd.f32 %v3874, %v3918
    %v3970 = vadd.f32 %v3875, %v3920
    %v3971 = vadd.f32 %v3876, %v3961
    %v3972 = vadd.f32 %v3877, %v3963
    %v3973 = vxor.u32 %v3965, 2147483648
    %v3974 = vxor.u32 %v3969, 2147483648
    %v3975 = vmul.f32 %v3973, 1.442695
    %v3976 = vpow.pop %v3975
    %v3977 = vmul.f32 %v3974, 1.442695
    %v3978 = vpow.pop %v3977
    %v3979 = vadd.f32 %v3976, 1.0
    %v3980 = vadd.f32 %v3978, 1.0
    %v3981 = vrcp.pop %v3979
    %v3982 = vmul.f32 1.0, %v3981
    %v3983 = vrcp.pop %v3980
    %v3984 = vmul.f32 1.0, %v3983
    %v3985 = vxor.u32 %v3966, 2147483648
    %v3986 = vxor.u32 %v3970, 2147483648
    %v3987 = vmul.f32 %v3985, 1.442695
    %v3988 = vpow.pop %v3987
    %v3989 = vmul.f32 %v3986, 1.442695
    %v3990 = vpow.pop %v3989
    %v3991 = vadd.f32 %v3988, 1.0
    %v3992 = vadd.f32 %v3990, 1.0
    %v3993 = vrcp.pop %v3991
    %v3994 = vmul.f32 1.0, %v3993
    %v3995 = vrcp.pop %v3992
    %v3996 = vmul.f32 1.0, %v3995
    %v3997 = vtanh.pop %v3967
    %v3998 = vtanh.pop %v3971
    %v3999 = vxor.u32 %v3968, 2147483648
    %v4000 = vxor.u32 %v3972, 2147483648
    %v4001 = vmul.f32 %v3999, 1.442695
    %v4002 = vpow.pop %v4001
    %v4003 = vmul.f32 %v4000, 1.442695
    %v4004 = vpow.pop %v4003
    %v4005 = vadd.f32 %v4002, 1.0
    %v4006 = vadd.f32 %v4004, 1.0
    %v4007 = vrcp.pop %v4005
    %v4008 = vmul.f32 1.0, %v4007
    %v4009 = vrcp.pop %v4006
    %v4010 = vmul.f32 1.0, %v4009
    %v4011 = vmul.f32 %v3994, %v3864
    %v4012 = vmul.f32 %v3996, %v3865
    %v4013 = vmul.f32 %v3982, %v3997
    %v4014 = vmul.f32 %v3984, %v3998
    %v4015 = vadd.f32 %v4011, %v4013
    %v4016 = vadd.f32 %v4012, %v4014
    %v4017 = vtanh.pop %v4015
    %v4018 = vtanh.pop %v4016
    %v4019 = vmul.f32 %v4008, %v4017
    %v4020 = vmul.f32 %v4010, %v4018
    %v4021 = vpack.c.bf16 %v4020, %v4019
    %v4022 = vld [vmem:[%s7] sm:$0xf]
    %v4023 = vld [vmem:[%s7 + $0x4] sm:$0xf]
    %v4024 = vld [vmem:[%s7 + $0x8] sm:$0xf]
    %v4025 = vld [vmem:[%s7 + $0xc] sm:$0xf]
    %v4026 = vld [vmem:[%s7 + $0x10] sm:$0xf]
    %v4027 = vld [vmem:[%s7 + $0x14] sm:$0xf]
    %v4028 = vld [vmem:[%s7 + $0x18] sm:$0xf]
    %v4029 = vld [vmem:[%s7 + $0x1c] sm:$0xf]
    %v4030 = vld [vmem:[%s7 + $0x20] sm:$0xf]
    %v4031 = vld [vmem:[%s7 + $0x24] sm:$0xf]
    %v4032 = vld [vmem:[%s7 + $0x28] sm:$0xf]
    %v4033 = vld [vmem:[%s7 + $0x2c] sm:$0xf]
    %v4034 = vld [vmem:[%s7 + $0x30] sm:$0xf]
    %v4035 = vld [vmem:[%s7 + $0x34] sm:$0xf]
    %v4036 = vld [vmem:[%s7 + $0x38] sm:$0xf]
    %v4037 = vld [vmem:[%s7 + $0x3c] sm:$0xf]
    %v4038 = vld [vmem:[%s8] sm:$0x1]
    %v4040 = vlaneseq
    %v4041 = vshrl.u32 %v4040, 7
    %v4042 = vsub.s32 0, %v4041
    %v4043 = vrot.slane %v4038, %v4042
    %v4061 = vunpack.c.l.b16 %v4022
    %v4062 = vunpack.c.l.b16 %v4023
    %v4063 = vunpack.c.l.b16 %v4024
    %v4064 = vunpack.c.l.b16 %v4025
    %v4065 = vunpack.c.l.b16 %v4026
    %v4066 = vunpack.c.l.b16 %v4027
    %v4067 = vunpack.c.l.b16 %v4028
    %v4068 = vunpack.c.l.b16 %v4029
    %v4069 = vunpack.c.l.b16 %v4030
    %v4070 = vunpack.c.l.b16 %v4031
    %v4071 = vunpack.c.l.b16 %v4032
    %v4072 = vunpack.c.l.b16 %v4033
    %v4073 = vunpack.c.l.b16 %v4034
    %v4074 = vunpack.c.l.b16 %v4035
    %v4075 = vunpack.c.l.b16 %v4036
    %v4076 = vunpack.c.l.b16 %v4037
    %v4077 = vpack.c.b16 %v4062, %v4061
    %v4078 = vpack.c.b16 %v4064, %v4063
    %v4079 = vpack.c.b16 %v4066, %v4065
    %v4080 = vpack.c.b16 %v4068, %v4067
    %v4081 = vpack.c.b16 %v4070, %v4069
    %v4082 = vpack.c.b16 %v4072, %v4071
    %v4083 = vpack.c.b16 %v4074, %v4073
    %v4084 = vpack.c.b16 %v4076, %v4075
    %4093 = vmatprep.subr.bf16.mxu0 0
    %4094 = vmatpush1.bf16.msra.mxu0 %v4077
    %4095 = vmatprep.subr.bf16.mxu0 0
    %4096 = vmatpush1.bf16.msra.mxu0 %v4078
    %4097 = vmatprep.subr.bf16.mxu0 0
    %4098 = vmatpush1.bf16.msra.mxu0 %v4079
    %4099 = vmatprep.subr.bf16.mxu0 0
    %4100 = vmatpush1.bf16.msra.mxu0 %v4080
    %4101 = vmatprep.subr.bf16.mxu0 0
    %4102 = vmatpush1.bf16.msra.mxu0 %v4081
    %4103 = vmatprep.subr.bf16.mxu0 0
    %4104 = vmatpush1.bf16.msra.mxu0 %v4082
    %4105 = vmatprep.subr.bf16.mxu0 0
    %4106 = vmatpush1.bf16.msra.mxu0 %v4083
    %4107 = vmatprep.subr.bf16.mxu0 0
    %4108 = vmatpush1.bf16.msra.mxu0 %v4084
    %4109 = vmatprep.subr.bf16.mxu0 0
    %4110 = vmatpush1.bf16.msra.mxu0 0
    %4111 = vmatprep.subr.bf16.mxu0 0
    %4112 = vmatpush1.bf16.msra.mxu0 0
    %4113 = vmatprep.subr.bf16.mxu0 0
    %4114 = vmatpush1.bf16.msra.mxu0 0
    %4115 = vmatprep.subr.bf16.mxu0 0
    %4116 = vmatpush1.bf16.msra.mxu0 0
    %4117 = vmatprep.subr.bf16.mxu0 0
    %4118 = vmatpush1.bf16.msra.mxu0 0
    %4119 = vmatprep.subr.bf16.mxu0 0
    %4120 = vmatpush1.bf16.msra.mxu0 0
    %4121 = vmatprep.subr.bf16.mxu0 0
    %4122 = vmatpush1.bf16.msra.mxu0 0
    %4123 = vmatprep.subr.bf16.mxu0 0
    %4124 = vmatpush1.bf16.msra.mxu0 0
    %4125 = vmatprep.mubr.bf16.mxu0 0
    %4126 = vmatmul.mubr.bf16.gmra.mrb[0].mxu0 %v4021
    %v4127 = vpop.f32.mrb[0].mxu0
    %v4128 = vadd.f32 %v4043, %v4127
    %v4129 = vpop.f32.mrb[0].mxu0
    %v4130 = vpop.f32.mrb[0].mxu0
    %v4131 = vadd.f32 %v4043, %v4130
    %v4132 = vpop.f32.mrb[0].mxu0
    %4133 = vdwg.mxu0
    %v4134 = vlaneseq
    %v4135 = vshrl.u32 %v4134, 7
    %v4136 = vadd.s32 %v4135, 8
    %vm4137 = vcmp.lt.s32.totalorder %v4135, 2
    %vm4138 = vcmp.lt.s32.totalorder %v4136, 2
    %v4139 = vsel %vm4137, %v4128, 0.0
    %v4140 = vsel %vm4138, %v4131, 0.0
    %v4141 = vadd.f32 %v4139, %v4140
    %v4142 = vrot.slane %v4141, 4
    %v4143 = vadd.f32 %v4141, %v4142
    %v4144 = vrot.slane %v4143, 2
    %v4145 = vadd.f32 %v4143, %v4144
    %v4146 = vrot.slane %v4145, 1
    %v4147 = vadd.f32 %v4145, %v4146
    %v4148 = vmul.f32 %v4147, 0.5
    %v4149 = vsub.f32 %v4128, %v4148
    %v4150 = vsub.f32 %v4131, %v4148
    %v4151 = vsel %vm4137, %v4149, 0.0
    %v4152 = vsel %vm4138, %v4150, 0.0
    %v4153 = vmul.f32 %v4151, %v4151
    %v4154 = vmul.f32 %v4152, %v4152
    %v4155 = vadd.f32 %v4153, %v4154
    %v4156 = vrot.slane %v4155, 4
    %v4157 = vadd.f32 %v4155, %v4156
    %v4158 = vrot.slane %v4157, 2
    %v4159 = vadd.f32 %v4157, %v4158
    %v4160 = vrot.slane %v4159, 1
    %v4161 = vadd.f32 %v4159, %v4160
    %v4162 = vmul.f32 %v4161, 0.5
    %v4163 = vld [vmem:[%s9] sm:$0x1]
    %v4165 = vlaneseq
    %v4166 = vshrl.u32 %v4165, 7
    %v4167 = vsub.s32 0, %v4166
    %v4168 = vrot.slane %v4163, %v4167
    %v4170 = vmul.f32 %v4168, %v4149
    %v4171 = vmul.f32 %v4168, %v4150
    %v4172 = vadd.f32 %v4162, 1e-05
    %v4173 = vrsqrt.pop %v4172
    %v4174 = vmul.f32 %v4170, %v4173
    %v4175 = vmul.f32 %v4171, %v4173
    %v4176 = vld [vmem:[#allocation14] sm:$0x1]
    %v4178 = vlaneseq
    %v4179 = vshrl.u32 %v4178, 7
    %v4180 = vsub.s32 0, %v4179
    %v4181 = vrot.slane %v4176, %v4180
    %v4183 = vadd.f32 %v4174, %v4181
    %v4184 = vadd.f32 %v4175, %v4181
    %v4185 = vmax.f32 %v4183, 0.0
    %v4186 = vmax.f32 %v4184, 0.0
    %v4187 = vpack.c.bf16 %v4186, %v4185
    %v4188 = vld [vmem:[%s11] sm:$0xf]
    %v4189 = vld [vmem:[%s11 + $0x4] sm:$0xf]
    %v4190 = vld [vmem:[%s11 + $0x8] sm:$0xf]
    %v4191 = vld [vmem:[%s11 + $0xc] sm:$0xf]
    %v4192 = vld [vmem:[%s11 + $0x10] sm:$0xf]
    %v4193 = vld [vmem:[%s11 + $0x14] sm:$0xf]
    %v4194 = vld [vmem:[%s11 + $0x18] sm:$0xf]
    %v4195 = vld [vmem:[%s11 + $0x1c] sm:$0xf]
    %v4196 = vld [vmem:[%s11 + $0x20] sm:$0xf]
    %v4197 = vld [vmem:[%s11 + $0x24] sm:$0xf]
    %v4198 = vld [vmem:[%s11 + $0x28] sm:$0xf]
    %v4199 = vld [vmem:[%s11 + $0x2c] sm:$0xf]
    %v4200 = vld [vmem:[%s11 + $0x30] sm:$0xf]
    %v4201 = vld [vmem:[%s11 + $0x34] sm:$0xf]
    %v4202 = vld [vmem:[%s11 + $0x38] sm:$0xf]
    %v4203 = vld [vmem:[%s11 + $0x3c] sm:$0xf]
    %v4204 = vld [vmem:[%s12] sm:$0x1]
    %v4206 = vlaneseq
    %v4207 = vshrl.u32 %v4206, 7
    %v4208 = vsub.s32 0, %v4207
    %v4209 = vrot.slane %v4204, %v4208
    %v4227 = vunpack.c.l.b16 %v4188
    %v4228 = vunpack.c.l.b16 %v4189
    %v4229 = vunpack.c.l.b16 %v4190
    %v4230 = vunpack.c.l.b16 %v4191
    %v4231 = vunpack.c.l.b16 %v4192
    %v4232 = vunpack.c.l.b16 %v4193
    %v4233 = vunpack.c.l.b16 %v4194
    %v4234 = vunpack.c.l.b16 %v4195
    %v4235 = vunpack.c.l.b16 %v4196
    %v4236 = vunpack.c.l.b16 %v4197
    %v4237 = vunpack.c.l.b16 %v4198
    %v4238 = vunpack.c.l.b16 %v4199
    %v4239 = vunpack.c.l.b16 %v4200
    %v4240 = vunpack.c.l.b16 %v4201
    %v4241 = vunpack.c.l.b16 %v4202
    %v4242 = vunpack.c.l.b16 %v4203
    %v4243 = vpack.c.b16 %v4228, %v4227
    %v4244 = vpack.c.b16 %v4230, %v4229
    %v4245 = vpack.c.b16 %v4232, %v4231
    %v4246 = vpack.c.b16 %v4234, %v4233
    %v4247 = vpack.c.b16 %v4236, %v4235
    %v4248 = vpack.c.b16 %v4238, %v4237
    %v4249 = vpack.c.b16 %v4240, %v4239
    %v4250 = vpack.c.b16 %v4242, %v4241
    %4259 = vmatprep.subr.bf16.mxu0 0
    %4260 = vmatpush1.bf16.msra.mxu0 %v4243
    %4261 = vmatprep.subr.bf16.mxu0 0
    %4262 = vmatpush1.bf16.msra.mxu0 %v4244
    %4263 = vmatprep.subr.bf16.mxu0 0
    %4264 = vmatpush1.bf16.msra.mxu0 %v4245
    %4265 = vmatprep.subr.bf16.mxu0 0
    %4266 = vmatpush1.bf16.msra.mxu0 %v4246
    %4267 = vmatprep.subr.bf16.mxu0 0
    %4268 = vmatpush1.bf16.msra.mxu0 %v4247
    %4269 = vmatprep.subr.bf16.mxu0 0
    %4270 = vmatpush1.bf16.msra.mxu0 %v4248
    %4271 = vmatprep.subr.bf16.mxu0 0
    %4272 = vmatpush1.bf16.msra.mxu0 %v4249
    %4273 = vmatprep.subr.bf16.mxu0 0
    %4274 = vmatpush1.bf16.msra.mxu0 %v4250
    %4275 = vmatprep.subr.bf16.mxu0 0
    %4276 = vmatpush1.bf16.msra.mxu0 0
    %4277 = vmatprep.subr.bf16.mxu0 0
    %4278 = vmatpush1.bf16.msra.mxu0 0
    %4279 = vmatprep.subr.bf16.mxu0 0
    %4280 = vmatpush1.bf16.msra.mxu0 0
    %4281 = vmatprep.subr.bf16.mxu0 0
    %4282 = vmatpush1.bf16.msra.mxu0 0
    %4283 = vmatprep.subr.bf16.mxu0 0
    %4284 = vmatpush1.bf16.msra.mxu0 0
    %4285 = vmatprep.subr.bf16.mxu0 0
    %4286 = vmatpush1.bf16.msra.mxu0 0
    %4287 = vmatprep.subr.bf16.mxu0 0
    %4288 = vmatpush1.bf16.msra.mxu0 0
    %4289 = vmatprep.subr.bf16.mxu0 0
    %4290 = vmatpush1.bf16.msra.mxu0 0
    %4291 = vmatprep.mubr.bf16.mxu0 0
    %4292 = vmatmul.mubr.bf16.gmra.mrb[0].mxu0 %v4187
    %v4293 = vpop.f32.mrb[0].mxu0
    %v4294 = vadd.f32 %v4209, %v4293
    %v4295 = vpop.f32.mrb[0].mxu0
    %v4296 = vpop.f32.mrb[0].mxu0
    %v4297 = vadd.f32 %v4209, %v4296
    %v4298 = vpop.f32.mrb[0].mxu0
    %4299 = vdwg.mxu0
    %4300 = vmax.xlane.f32.xlu0 %v4294
    %v4301 = vpop.xlane.xlu0 %4300
    %4302 = vmax.xlane.f32.xlu0 %v4297
    %v4303 = vpop.xlane.xlu0 %4302
    %v4304 = vsub.f32 %v4294, %v4301
    %v4305 = vsub.f32 %v4297, %v4303
    %v4306 = vmul.f32 %v4304, 1.442695
    %v4307 = vpow.pop %v4306
    %v4308 = vmul.f32 %v4305, 1.442695
    %v4309 = vpow.pop %v4308
    %4310 = vadd.xlane.f32.xlu0 %v4307
    %v4311 = vpop.xlane.xlu0 %4310
    %4312 = vadd.xlane.f32.xlu0 %v4309
    %v4313 = vpop.xlane.xlu0 %4312
    %v4314 = vrcp.pop %v4311
    %v4315 = vmul.f32 %v4307, %v4314
    %v4316 = vrcp.pop %v4313
    %v4317 = vmul.f32 %v4309, %v4316
    %4318 = vst [vmem:[%s13] sm:$0xff] %v4315
    %4319 = vst [vmem:[%s13 + $0x8] sm:$0xff] %v4317
    // Predicated region
    $region82: #{forward.1} parent=1 // pred_check
      _
    $region83: #{forward.1} parent=1 // pred_check_branch
      %4321 = sbr.rel (0) target = $region85
    $region84: #{forward.1} parent=1 // pred_region
      _
    $region85: #{forward.1} parent=1 // pred_fallthru
      _
    // Predicated region
    $region86: #{forward.1} parent=1 // pred_check
      _
    $region87: #{forward.1} parent=1 // pred_check_branch
      %4323 = sbr.rel (0) target = $region89
    $region88: #{forward.1} parent=1 // pred_region
      _
    $region89: #{forward.1} parent=1 // pred_fallthru
      _
    %4324 = vsyncpa [#allocation5], 1
    %4325 = vsyncpa [#allocation7], 1
    %4326 = vsyncpa [#allocation10], 1
    %4327 = vsyncpa [#allocation13], 1

</llo_original>
